<compile_context>
chip_gen: v7x
topology: tpu7x:2x2x1
jax: 0.10.0
libtpu: 0.0.40
codegen_flags: <defaults>
</compile_context>

<pallas_src>
import functools

import jax
import jax.numpy as jnp
import numpy as np
from jax.experimental import pallas as pl
from jax.experimental.pallas import tpu as pltpu

# Width of the bias-augmentation block appended to stage-A activations/weights.
# 16 keeps the bf16 sublane packing (16,128) aligned for K = C_in+AUG, 512+AUG.
_AUG = 16


def _round_up(v, m):
    return ((v + m - 1) // m) * m


# ---------------------------------------------------------------------------
# Pallas kernel: full forward (6 matmuls + ReLUs) fused, whole batch at once.
# ---------------------------------------------------------------------------
def _p2o_kernel(x_ref, w1a_ref, bB_ref, wA2_hbm, wB_hbm, o_ref,
                wA2_v, wB_v, sem,
                *, batch, n_pts, r_dims, f1, rn, rn_pad, f2, lane_w):
    # Kick off the fc2/fc3 and stage-B weight DMAs immediately so they overlap
    # with the fc1 matmul (only x / w1a / bB are auto-DMA'd before the body).
    cp_a2 = pltpu.make_async_copy(wA2_hbm, wA2_v, sem.at[0])
    cp_b = pltpu.make_async_copy(wB_hbm, wB_v, sem.at[1])
    cp_a2.start()
    cp_b.start()

    bn = batch * n_pts

    # ---- batch fold in VMEM: (B, C_in, N) -> (C_in, B*N), bf16 --------------
    # Pure lane concat of the per-batch (C_in, N) tiles; columns are batch-major
    # (batch b occupies the aligned lane window [b*N, (b+1)*N)).
    if batch == 1:
        xa = x_ref[0]
    else:
        xa = jnp.concatenate([x_ref[b] for b in range(batch)], axis=-1)
    xa = xa.astype(jnp.bfloat16)                                   # (C_in, B*N)

    # Bias-augmentation block: row 0 = ones, rest zeros.  Appending it to the
    # activation turns every stage-A bias add into one extra MXU contraction
    # row (the bias lives as an extra column of the packed weight), so there is
    # no column-bias broadcast and no narrow bias DMA.
    aug = jnp.concatenate([jnp.ones((1, bn), jnp.bfloat16),
                           jnp.zeros((_AUG - 1, bn), jnp.bfloat16)], axis=0)

    # ---- fc1 -----------------------------------------------------------------
    x_aug = jnp.concatenate([xa, aug], axis=0)                     # (C_in+A, B*N)
    h = jnp.dot(w1a_ref[...], x_aug, preferred_element_type=jnp.float32)
    h = jnp.maximum(h, 0.0).astype(jnp.bfloat16)                   # (512, B*N)

    # ---- fc2 / fc3 (packed weights arrive via the overlapped DMA) -----------
    cp_a2.wait()
    h_aug = jnp.concatenate([h, aug], axis=0)                      # (512+A, B*N)
    h = jnp.dot(wA2_v[0:f1, :], h_aug, preferred_element_type=jnp.float32)
    h = jnp.maximum(h, 0.0).astype(jnp.bfloat16)                   # (512, B*N)
    h_aug = jnp.concatenate([h, aug], axis=0)
    h3 = jnp.dot(wA2_v[f1:f1 + r_dims, :], h_aug,
                 preferred_element_type=jnp.float32)
    h3 = jnp.maximum(h3, 0.0)                                      # (R, B*N) f32

    # ---- torch x.reshape(B, -1, 1): per-batch row-major flatten of (R, N) ----
    # Columns are batch-major, so batch b is the aligned lane window
    # [b*N, (b+1)*N).  For R == 1 this is pure lane slicing + one sublane
    # concat (no lane<->sublane relayout); for R > 1 each block also needs a
    # tiny (R, N) -> (1, R*N) fold.
    if r_dims == 1:
        rows = [h3[:, b * n_pts:(b + 1) * n_pts] for b in range(batch)]
    else:
        rows = [h3[:, b * n_pts:(b + 1) * n_pts].reshape(1, r_dims * n_pts)
                for b in range(batch)]
    v = rows[0] if batch == 1 else jnp.concatenate(rows, axis=0)   # (B, R*N)
    v = v.astype(jnp.bfloat16)

    # ---- stage B: fc4..fc6, whole batch as the M (sublane) dim ---------------
    cp_b.wait()
    b4 = bB_ref[0:1, 0:f2]                                         # (1, 128) f32
    b5 = bB_ref[1:2, 0:f2]
    b6 = bB_ref[2:3, :]                                            # (1, lane_w)
    h = jnp.dot(v, wB_v[0:rn, 0:f2], preferred_element_type=jnp.float32) + b4
    h = jnp.maximum(h, 0.0).astype(jnp.bfloat16)                   # (B, 128)
    h = jnp.dot(h, wB_v[rn_pad:rn_pad + f2, 0:f2],
                preferred_element_type=jnp.float32) + b5
    h = jnp.maximum(h, 0.0).astype(jnp.bfloat16)                   # (B, 128)
    out = jnp.dot(h, wB_v[rn_pad + f2:rn_pad + 2 * f2, :],
                  preferred_element_type=jnp.float32) + b6         # (B, lane_w)
    o_ref[...] = out                                               # lane-dense


# ---------------------------------------------------------------------------
# One-time parameter packing (hoisted out of the per-call path).
# ---------------------------------------------------------------------------
def prepare_params(params):
    """Pack the 6 weight-normed Conv1d layers into 4 lane-dense buffers."""
    (w1, b1), (w2, b2), (w3, b3), (w4, b4), (w5, b5), (w6, b6) = params
    f1, c_in = w1.shape                       # 512, C_in
    r = w3.shape[0]                           # reduced_dims
    f2, rn = w4.shape                         # 128, R*N
    f_out = w6.shape[0]
    n_pts = rn // r
    f_out_p = _round_up(f_out, 128)
    lane_w = max(f2, f_out_p)                 # lane-dense output width
    rn_pad = _round_up(rn, _AUG)
    r_pad = _round_up(r, _AUG)

    # fc1: bias folded as column c_in of an _AUG-wide augmentation block.
    w1a = jnp.zeros((f1, c_in + _AUG), jnp.float32)
    w1a = w1a.at[:, :c_in].set(w1).at[:, c_in].set(b1)
    w1a = w1a.astype(jnp.bfloat16)

    # fc2 (rows 0..f1-1) and fc3 (rows f1..f1+r-1) packed, biases folded.
    wA2 = jnp.zeros((f1 + r_pad, f1 + _AUG), jnp.float32)
    wA2 = wA2.at[:f1, :f1].set(w2).at[:f1, f1].set(b2)
    wA2 = wA2.at[f1:f1 + r, :f1].set(w3).at[f1:f1 + r, f1].set(b3)
    wA2 = wA2.astype(jnp.bfloat16)

    # fc4..fc6: pre-transposed (in, out), sublane-stacked, lane-padded.
    wB = jnp.zeros((rn_pad + 2 * f2, lane_w), jnp.float32)
    wB = wB.at[:rn, :f2].set(w4.T)
    wB = wB.at[rn_pad:rn_pad + f2, :f2].set(w5.T)
    wB = wB.at[rn_pad + f2:rn_pad + 2 * f2, :f_out].set(w6.T)
    wB = wB.astype(jnp.bfloat16)

    # Stage-B biases: one lane-dense f32 buffer (rows: b4, b5, b6-padded).
    bB = jnp.zeros((8, lane_w), jnp.float32)
    bB = bB.at[0, :f2].set(b4).at[1, :f2].set(b5).at[2, :f_out].set(b6)

    meta = dict(c_in=c_in, f1=f1, r=r, rn=rn, rn_pad=rn_pad, f2=f2,
                f_out=f_out, lane_w=lane_w, n_pts=n_pts)
    return (w1a, wA2, wB, bB), meta


def point2osim_forward(x, prepared, *, unpad=True):
    """x: (B, C_in, N) float32.  Returns (B, frame_pred_dims, 1) like PyTorch.

    With unpad=False the raw (B, 128)-padded lane-dense slab is returned so a
    downstream consumer can fuse the slice instead of paying an extra dispatch.
    """
    (w1a, wA2, wB, bB), meta = prepared
    B, c_in, n = x.shape
    assert c_in == meta["c_in"] and n == meta["n_pts"], (x.shape, meta)
    f1, r, rn = meta["f1"], meta["r"], meta["rn"]
    rn_pad, f2, f_out, lane_w = meta["rn_pad"], meta["f2"], meta["f_out"], meta["lane_w"]

    flops = (2 * B * n * (f1 * (c_in + _AUG) + f1 * (f1 + _AUG) + r * (f1 + _AUG))
             + 2 * B * (rn * f2 + f2 * f2 + f2 * lane_w))
    bytes_accessed = (int(x.size) * 4 + int(w1a.size) * 2 + int(wA2.size) * 2
                      + int(wB.size) * 2 + int(bB.size) * 4 + B * lane_w * 4)

    out = pl.pallas_call(
        functools.partial(_p2o_kernel, batch=B, n_pts=n, r_dims=r,
                          f1=f1, rn=rn, rn_pad=rn_pad, f2=f2, lane_w=lane_w),
        out_shape=jax.ShapeDtypeStruct((B, lane_w), jnp.float32),
        # No grid: tiny, latency/DMA-bound problem -> one invocation, weights
        # loaded once.  x / fc1-weight / stage-B-biases are auto-DMA'd (needed
        # first); fc2/fc3 and stage-B weights stay in HBM (pl.ANY) and are
        # DMA'd manually so the transfer overlaps fc1 compute.
        in_specs=[
            pl.BlockSpec(memory_space=pltpu.MemorySpace.VMEM),   # x
            pl.BlockSpec(memory_space=pltpu.MemorySpace.VMEM),   # w1a (fc1)
            pl.BlockSpec(memory_space=pltpu.MemorySpace.VMEM),   # bB  (stage-B biases)
            pl.BlockSpec(memory_space=pl.ANY),                   # wA2 (fc2+fc3)
            pl.BlockSpec(memory_space=pl.ANY),                   # wB  (fc4..fc6)
        ],
        out_specs=pl.BlockSpec(memory_space=pltpu.MemorySpace.VMEM),
        scratch_shapes=[
            pltpu.VMEM(wA2.shape, jnp.bfloat16),                 # fc2/fc3 landing buf
            pltpu.VMEM(wB.shape, jnp.bfloat16),                  # stage-B landing buf
            pltpu.SemaphoreType.DMA((2,)),
        ],
        compiler_params=pltpu.CompilerParams(
            vmem_limit_bytes=32 * 1024 * 1024),
        cost_estimate=pl.CostEstimate(flops=flops, transcendentals=0,
                                      bytes_accessed=bytes_accessed),
    )(x, w1a, bB, wA2, wB)

    if not unpad:
        return out
    # Optional: drop lane padding, back to PyTorch layout (B, frame_pred_dims, 1).
    return out[:, :f_out, None]


# ---------------------------------------------------------------------------
# Deterministic parameter init (weight_norm re-parameterization applied eagerly)
# ---------------------------------------------------------------------------
def wn_conv1d_params(key, out_c, in_c):
    kv, kg, kb = jax.random.split(key, 3)
    v = jax.random.normal(kv, (out_c, in_c), jnp.float32) * 0.05
    g = 1.0 + 0.1 * jax.random.normal(kg, (out_c, 1), jnp.float32)
    w = g * v / (jnp.linalg.norm(v, axis=1, keepdims=True) + 1e-12)
    b = jax.random.normal(kb, (out_c,), jnp.float32) * 0.05
    return w, b


def make_params(key, *, input_point_dimensions, num_input_points, reduced_dims,
                frame_pred_dims, point_feat_dim):
    feat_l1, feat_l2 = 512, 128
    ks = jax.random.split(key, 6)
    return (
        wn_conv1d_params(ks[0], feat_l1, point_feat_dim + input_point_dimensions),
        wn_conv1d_params(ks[1], feat_l1, feat_l1),
        wn_conv1d_params(ks[2], reduced_dims, feat_l1),
        wn_conv1d_params(ks[3], feat_l2, num_input_points * reduced_dims),
        wn_conv1d_params(ks[4], feat_l2, feat_l2),
        wn_conv1d_params(ks[5], frame_pred_dims, feat_l2),
    )


def reference_forward(x, params):
    """Pure-JAX f32 reference matching the PyTorch forward exactly."""
    (w1, b1), (w2, b2), (w3, b3), (w4, b4), (w5, b5), (w6, b6) = params

    def conv1x1(h, w, b):  # h: (B, C, L)
        return jnp.einsum('oc,bcl->bol', w, h) + b[None, :, None]

    h = jax.nn.relu(conv1x1(x, w1, b1))
    h = jax.nn.relu(conv1x1(h, w2, b2))
    h = jax.nn.relu(conv1x1(h, w3, b3))
    h = h.reshape(h.shape[0], -1, 1)
    h = jax.nn.relu(conv1x1(h, w4, b4))
    h = jax.nn.relu(conv1x1(h, w5, b5))
    return conv1x1(h, w6, b6)


if __name__ == "__main__":
    # Small, module-consistent shapes:
    #   point_feat_dim=125, input_point_dimensions=3 -> C_in = 128
    #   num_input_points=128, reduced_dims=1, frame_pred_dims=105, batch=2
    B = 2
    input_point_dimensions = 3
    num_input_points = 128
    reduced_dims = 1
    frame_pred_dims = 39 + 22 * 3          # 105
    point_feat_dim = 125

    key = jax.random.PRNGKey(0)
    kx, kp = jax.random.split(key)
    c_in = point_feat_dim + input_point_dimensions
    x = jax.random.normal(kx, (B, c_in, num_input_points), jnp.float32)

    params = make_params(
        kp,
        input_point_dimensions=input_point_dimensions,
        num_input_points=num_input_points,
        reduced_dims=reduced_dims,
        frame_pred_dims=frame_pred_dims,
        point_feat_dim=point_feat_dim,
    )

    # One-time packing (hoisted out of the per-call forward path).
    prepared = prepare_params(params)

    out = point2osim_forward(x, prepared)
    out = jax.block_until_ready(out)

    ref = jax.block_until_ready(reference_forward(x, params))
    assert out.shape == (B, frame_pred_dims, 1), out.shape
    # bf16 weights/activations (and bf16-folded biases) with f32 accumulation
    # -> loosened tolerance vs the pure-f32 reference.
    np.testing.assert_allclose(np.asarray(out), np.asarray(ref),
                               rtol=3e-2, atol=3e-2)

    print("KERNEL_OK")
</pallas_src>

<mosaic_0001>
module attributes {stable_mosaic.version = 11 : i64} {
  func.func @_p2o_kernel(%arg0: memref<2x128x128xf32, #tpu.memory_space<vmem>>, %arg1: memref<512x144xbf16, #tpu.memory_space<vmem>>, %arg2: memref<8x128xf32, #tpu.memory_space<vmem>>, %arg3: memref<528x528xbf16, #tpu.memory_space<any>>, %arg4: memref<384x128xbf16, #tpu.memory_space<any>>, %arg5: memref<2x128xf32, #tpu.memory_space<vmem>>, %arg6: memref<528x528xbf16, #tpu.memory_space<vmem>>, %arg7: memref<384x128xbf16, #tpu.memory_space<vmem>>, %arg8: memref<2x!tpu.dma_semaphore, #tpu.memory_space<semaphore_mem>>) attributes {dimension_semantics = [], scalar_prefetch = 0 : i64, scratch_operands = 3 : i64, tpu.core_type = #tpu.core_type<tc>} {
    %c0_i32 = arith.constant 0 : i32
    %0 = tpu.memref_slice %arg8[%c0_i32] : memref<2x!tpu.dma_semaphore, #tpu.memory_space<semaphore_mem>> -> memref<1x!tpu.dma_semaphore, #tpu.memory_space<semaphore_mem>>
    %1 = tpu.memref_squeeze %0 : memref<1x!tpu.dma_semaphore, #tpu.memory_space<semaphore_mem>> -> memref<!tpu.dma_semaphore, #tpu.memory_space<semaphore_mem>>
    tpu.enqueue_dma source(%arg3 : memref<528x528xbf16, #tpu.memory_space<any>>) target(%arg6 : memref<528x528xbf16, #tpu.memory_space<vmem>>) target_semaphore(%1 : memref<!tpu.dma_semaphore, #tpu.memory_space<semaphore_mem>>)
    %c1_i32 = arith.constant 1 : i32
    %2 = tpu.memref_slice %arg8[%c1_i32] : memref<2x!tpu.dma_semaphore, #tpu.memory_space<semaphore_mem>> -> memref<1x!tpu.dma_semaphore, #tpu.memory_space<semaphore_mem>>
    %3 = tpu.memref_squeeze %2 : memref<1x!tpu.dma_semaphore, #tpu.memory_space<semaphore_mem>> -> memref<!tpu.dma_semaphore, #tpu.memory_space<semaphore_mem>>
    tpu.enqueue_dma source(%arg4 : memref<384x128xbf16, #tpu.memory_space<any>>) target(%arg7 : memref<384x128xbf16, #tpu.memory_space<vmem>>) target_semaphore(%3 : memref<!tpu.dma_semaphore, #tpu.memory_space<semaphore_mem>>)
    %c0 = arith.constant 0 : index
    %c0_0 = arith.constant 0 : index
    %c0_1 = arith.constant 0 : index
    %4 = vector.load %arg0[%c0, %c0_0, %c0_1] : memref<2x128x128xf32, #tpu.memory_space<vmem>>, vector<1x128x128xf32>
    %5 = vector.shape_cast %4 : vector<1x128x128xf32> to vector<128x128xf32>
    %c1 = arith.constant 1 : index
    %c0_2 = arith.constant 0 : index
    %c0_3 = arith.constant 0 : index
    %6 = vector.load %arg0[%c1, %c0_2, %c0_3] : memref<2x128x128xf32, #tpu.memory_space<vmem>>, vector<1x128x128xf32>
    %7 = vector.shape_cast %6 : vector<1x128x128xf32> to vector<128x128xf32>
    %8 = tpu.concatenate %5, %7 in 1 : vector<128x128xf32>, vector<128x128xf32> -> vector<128x256xf32>
    %9 = arith.truncf %8 : vector<128x256xf32> to vector<128x256xbf16>
    %cst = arith.constant 1.000000e+00 : bf16
    %10 = vector.broadcast %cst : bf16 to vector<1x256xbf16>
    %cst_4 = arith.constant 0.000000e+00 : bf16
    %11 = vector.broadcast %cst_4 : bf16 to vector<15x256xbf16>
    %12 = tpu.concatenate %10, %11 in 0 : vector<1x256xbf16>, vector<15x256xbf16> -> vector<16x256xbf16>
    %13 = tpu.concatenate %9, %12 in 0 : vector<128x256xbf16>, vector<16x256xbf16> -> vector<144x256xbf16>
    %c0_5 = arith.constant 0 : index
    %c0_6 = arith.constant 0 : index
    %14 = vector.load %arg1[%c0_5, %c0_6] : memref<512x144xbf16, #tpu.memory_space<vmem>>, vector<512x144xbf16>
    %cst_7 = arith.constant dense<0.000000e+00> : vector<512x256xf32>
    %15 = tpu.matmul %14, %13, %cst_7 {dimension_numbers = #tpu.dot_dimension_numbers<[1], [0], [0], [1], [0, 0, 1, 1], [], []>} : vector<512x144xbf16>, vector<144x256xbf16>, vector<512x256xf32> -> vector<512x256xf32>
    %cst_8 = arith.constant 0.000000e+00 : f32
    %16 = vector.broadcast %cst_8 : f32 to vector<512x256xf32>
    %17 = arith.maximumf %15, %16 : vector<512x256xf32>
    %18 = arith.truncf %17 : vector<512x256xf32> to vector<512x256xbf16>
    %c0_i32_9 = arith.constant 0 : i32
    %19 = tpu.memref_slice %arg8[%c0_i32_9] : memref<2x!tpu.dma_semaphore, #tpu.memory_space<semaphore_mem>> -> memref<1x!tpu.dma_semaphore, #tpu.memory_space<semaphore_mem>>
    %20 = tpu.memref_squeeze %19 : memref<1x!tpu.dma_semaphore, #tpu.memory_space<semaphore_mem>> -> memref<!tpu.dma_semaphore, #tpu.memory_space<semaphore_mem>>
    tpu.wait_dma2 semaphore(%20 : memref<!tpu.dma_semaphore, #tpu.memory_space<semaphore_mem>>) src(%arg3 : memref<528x528xbf16, #tpu.memory_space<any>>) dst(%arg6 : memref<528x528xbf16, #tpu.memory_space<vmem>>)
    %21 = tpu.concatenate %18, %12 in 0 : vector<512x256xbf16>, vector<16x256xbf16> -> vector<528x256xbf16>
    %c0_10 = arith.constant 0 : index
    %c0_11 = arith.constant 0 : index
    %22 = vector.load %arg6[%c0_10, %c0_11] : memref<528x528xbf16, #tpu.memory_space<vmem>>, vector<512x528xbf16>
    %cst_12 = arith.constant dense<0.000000e+00> : vector<512x256xf32>
    %23 = tpu.matmul %22, %21, %cst_12 {dimension_numbers = #tpu.dot_dimension_numbers<[1], [0], [0], [1], [0, 0, 1, 1], [], []>} : vector<512x528xbf16>, vector<528x256xbf16>, vector<512x256xf32> -> vector<512x256xf32>
    %cst_13 = arith.constant 0.000000e+00 : f32
    %24 = vector.broadcast %cst_13 : f32 to vector<512x256xf32>
    %25 = arith.maximumf %23, %24 : vector<512x256xf32>
    %26 = arith.truncf %25 : vector<512x256xf32> to vector<512x256xbf16>
    %27 = tpu.concatenate %26, %12 in 0 : vector<512x256xbf16>, vector<16x256xbf16> -> vector<528x256xbf16>
    %c512 = arith.constant 512 : index
    %c0_14 = arith.constant 0 : index
    %28 = vector.load %arg6[%c512, %c0_14] : memref<528x528xbf16, #tpu.memory_space<vmem>>, vector<1x528xbf16>
    %cst_15 = arith.constant dense<0.000000e+00> : vector<1x256xf32>
    %29 = tpu.matmul %28, %27, %cst_15 {dimension_numbers = #tpu.dot_dimension_numbers<[1], [0], [0], [1], [0, 0, 1, 1], [], []>} : vector<1x528xbf16>, vector<528x256xbf16>, vector<1x256xf32> -> vector<1x256xf32>
    %cst_16 = arith.constant 0.000000e+00 : f32
    %30 = vector.broadcast %cst_16 : f32 to vector<1x256xf32>
    %31 = arith.maximumf %29, %30 : vector<1x256xf32>
    %32 = vector.extract_strided_slice %31 {offsets = [0, 0], sizes = [1, 128], strides = [1, 1]} : vector<1x256xf32> to vector<1x128xf32>
    %33 = vector.extract_strided_slice %31 {offsets = [0, 128], sizes = [1, 128], strides = [1, 1]} : vector<1x256xf32> to vector<1x128xf32>
    %34 = tpu.concatenate %32, %33 in 0 : vector<1x128xf32>, vector<1x128xf32> -> vector<2x128xf32>
    %35 = arith.truncf %34 : vector<2x128xf32> to vector<2x128xbf16>
    %c1_i32_17 = arith.constant 1 : i32
    %36 = tpu.memref_slice %arg8[%c1_i32_17] : memref<2x!tpu.dma_semaphore, #tpu.memory_space<semaphore_mem>> -> memref<1x!tpu.dma_semaphore, #tpu.memory_space<semaphore_mem>>
    %37 = tpu.memref_squeeze %36 : memref<1x!tpu.dma_semaphore, #tpu.memory_space<semaphore_mem>> -> memref<!tpu.dma_semaphore, #tpu.memory_space<semaphore_mem>>
    tpu.wait_dma2 semaphore(%37 : memref<!tpu.dma_semaphore, #tpu.memory_space<semaphore_mem>>) src(%arg4 : memref<384x128xbf16, #tpu.memory_space<any>>) dst(%arg7 : memref<384x128xbf16, #tpu.memory_space<vmem>>)
    %c0_18 = arith.constant 0 : index
    %c0_19 = arith.constant 0 : index
    %38 = vector.load %arg2[%c0_18, %c0_19] : memref<8x128xf32, #tpu.memory_space<vmem>>, vector<1x128xf32>
    %c1_20 = arith.constant 1 : index
    %c0_21 = arith.constant 0 : index
    %39 = vector.load %arg2[%c1_20, %c0_21] : memref<8x128xf32, #tpu.memory_space<vmem>>, vector<1x128xf32>
    %c2 = arith.constant 2 : index
    %c0_22 = arith.constant 0 : index
    %40 = vector.load %arg2[%c2, %c0_22] : memref<8x128xf32, #tpu.memory_space<vmem>>, vector<1x128xf32>
    %c0_23 = arith.constant 0 : index
    %c0_24 = arith.constant 0 : index
    %41 = vector.load %arg7[%c0_23, %c0_24] : memref<384x128xbf16, #tpu.memory_space<vmem>>, vector<128x128xbf16>
    %cst_25 = arith.constant dense<0.000000e+00> : vector<2x128xf32>
    %42 = tpu.matmul %35, %41, %cst_25 {dimension_numbers = #tpu.dot_dimension_numbers<[1], [0], [0], [1], [0, 0, 1, 1], [], []>} : vector<2x128xbf16>, vector<128x128xbf16>, vector<2x128xf32> -> vector<2x128xf32>
    %43 = vector.broadcast %38 : vector<1x128xf32> to vector<2x128xf32>
    %44 = arith.addf %42, %43 : vector<2x128xf32>
    %cst_26 = arith.constant 0.000000e+00 : f32
    %45 = vector.broadcast %cst_26 : f32 to vector<2x128xf32>
    %46 = arith.maximumf %44, %45 : vector<2x128xf32>
    %47 = arith.truncf %46 : vector<2x128xf32> to vector<2x128xbf16>
    %c128 = arith.constant 128 : index
    %c0_27 = arith.constant 0 : index
    %48 = vector.load %arg7[%c128, %c0_27] : memref<384x128xbf16, #tpu.memory_space<vmem>>, vector<128x128xbf16>
    %cst_28 = arith.constant dense<0.000000e+00> : vector<2x128xf32>
    %49 = tpu.matmul %47, %48, %cst_28 {dimension_numbers = #tpu.dot_dimension_numbers<[1], [0], [0], [1], [0, 0, 1, 1], [], []>} : vector<2x128xbf16>, vector<128x128xbf16>, vector<2x128xf32> -> vector<2x128xf32>
    %50 = vector.broadcast %39 : vector<1x128xf32> to vector<2x128xf32>
    %51 = arith.addf %49, %50 : vector<2x128xf32>
    %cst_29 = arith.constant 0.000000e+00 : f32
    %52 = vector.broadcast %cst_29 : f32 to vector<2x128xf32>
    %53 = arith.maximumf %51, %52 : vector<2x128xf32>
    %54 = arith.truncf %53 : vector<2x128xf32> to vector<2x128xbf16>
    %c256 = arith.constant 256 : index
    %c0_30 = arith.constant 0 : index
    %55 = vector.load %arg7[%c256, %c0_30] : memref<384x128xbf16, #tpu.memory_space<vmem>>, vector<128x128xbf16>
    %cst_31 = arith.constant dense<0.000000e+00> : vector<2x128xf32>
    %56 = tpu.matmul %54, %55, %cst_31 {dimension_numbers = #tpu.dot_dimension_numbers<[1], [0], [0], [1], [0, 0, 1, 1], [], []>} : vector<2x128xbf16>, vector<128x128xbf16>, vector<2x128xf32> -> vector<2x128xf32>
    %57 = vector.broadcast %40 : vector<1x128xf32> to vector<2x128xf32>
    %58 = arith.addf %56, %57 : vector<2x128xf32>
    %c0_32 = arith.constant 0 : index
    %c0_33 = arith.constant 0 : index
    %59 = vector.load %arg5[%c0_32, %c0_33] : memref<2x128xf32, #tpu.memory_space<vmem>>, vector<2x128xf32>
    tpu.vector_store %arg5[%c0_32, %c0_33], %58 {strides = array<i32>} : memref<2x128xf32, #tpu.memory_space<vmem>>, vector<2x128xf32>,
    return
  }
}

</mosaic_0001>

<llo_original>
// kernel: tpu_custom_call.1
$region0: #{tpu_custom_call.1}
  #allocation0 [shape = 'u32[]', space=smem, size = 0x4, offset = 0x4, fixed_abs, tag = 'smem constant byte address 0x4 - core index']
  #allocation1 [shape = 'u32[144,128]{1,0:T(1,128)}', space=vmem, size = 0x12000, scoped, tag = 'internal scratch']
  #allocation2 [shape = 'bf16[528,528]{1,0:T(16,128)(2,1)}', space=vmem, size = 0xa5000, scoped, tag = 'scratch operand']
  #allocation3 [shape = 'bf16[384,128]{1,0:T(16,128)(2,1)}', space=vmem, size = 0x18000, scoped, tag = 'scratch operand']
  #allocation4 [shape = 's32[2]{0}', space=sflag, size = 0x8, scoped, tag = 'scratch operand']
  #allocation7 [shape = 's32[]', space=sflag, size = 0x4, offset = 0, fixed_abs, tag = 'sflag constant byte address 0x0 - dummy sync flag']
  #allocation9 [shape = 's32[]', space=sflag, size = 0x4, offset = 0, fixed_abs, tag = 'sflag constant byte address 0x0 - dummy sync flag']
  %s0 = inlined_call_operand.vmem [shape: f32[2,128,128], index: 0, kind: input, shape index: {}]
  %s1 = inlined_call_operand.vmem [shape: bf16[512,144], index: 1, kind: input, shape index: {}]
  %s2 = inlined_call_operand.vmem [shape: f32[8,128], index: 2, kind: input, shape index: {}]
  %s3 = inlined_call_operand.hbm [shape: bf16[528,528], index: 3, kind: input, shape index: {}]
  %s4 = inlined_call_operand.vmem [shape: bf16[384,128], index: 4, kind: input, shape index: {}]
  %s5 = inlined_call_operand.hbm [shape: f32[2,128], index: 5, kind: output, shape index: {}]
  %s6 = sld [smem:[#allocation0]]
  $region56: #{tpu_custom_call.1} parent=0
    _
  %s8 = ssub.s32 1, %s6
  %s9 = scalar_select 0, %s8, %s6
  $region1: #{tpu_custom_call.1} parent=0
    #allocation5 [shape = 'u8[1024]{0}', space=vmem, size = 0x400, scoped, tag = 'output window, operand 0, single buffered']
    #allocation6 [shape = 's32[1]{0}', space=sflag, size = 0x4, scoped, tag = 'scoped memory for tpu_custom_call.1']
    #allocation8 [shape = 'u32[9]{0}', space=smem, size = 0x24, scoped, tag = 'DMA stride descriptor']
    %10 = vsyncpa [#allocation6], 0
    // Predicated region
    $region2: #{tpu_custom_call.1} parent=1 // pred_check
      _
    $region3: #{tpu_custom_call.1} parent=1 // pred_check_branch
      %12 = sbr.rel (0) target = $region5
    $region4: #{tpu_custom_call.1} parent=1 // pred_region
      _
    $region5: #{tpu_custom_call.1} parent=1 // pred_fallthru
      _
    // Predicated region
    $region6: #{tpu_custom_call.1} parent=1 // pred_check
      _
    $region7: #{tpu_custom_call.1} parent=1 // pred_check_branch
      %14 = sbr.rel (0) target = $region9
    $region8: #{tpu_custom_call.1} parent=1 // pred_region
      _
    $region9: #{tpu_custom_call.1} parent=1 // pred_fallthru
      _
    // Predicated region
    $region10: #{tpu_custom_call.1} parent=1 // pred_check
      _
    $region11: #{tpu_custom_call.1} parent=1 // pred_check_branch
      %16 = sbr.rel (0) target = $region13
    $region12: #{tpu_custom_call.1} parent=1 // pred_region
      _
    $region13: #{tpu_custom_call.1} parent=1 // pred_fallthru
      _
    %s20 = sshll.u32 1, 14
    %s21 = sxor.u32 4294967295, %s20
    %s23 = sld [smem:[#allocation0]]
    %s24 = sadd.s32 2, %s23
    %s26 = sshll.u32 7, 26
    %s27 = sxor.u32 4294967295, %s26
    %s28 = sand.u32 0, %s27
    %s29 = sshll.u32 %s24, 26
    %s30 = sor.u32 %s28, %s29
    %s31 = sshll.u32 [#allocation2], 4
    %s32 = int_to_ptr.vmem [resolvable:$true] %s31
    %35 = sst [smem:[#allocation8]] 640
    %s36 = scalar_lea.smem [#allocation8], 1
    %37 = sst [smem:[%s36]] 640
    %s38 = scalar_lea.smem [#allocation8], 2
    %39 = sst [smem:[%s38]] 5
    %s40 = scalar_lea.smem [#allocation8], 3
    %41 = sst [smem:[%s40]] 64
    %s42 = scalar_lea.smem [#allocation8], 4
    %43 = sst [smem:[%s42]] 128
    %s44 = scalar_lea.smem [#allocation8], 5
    %45 = sst [smem:[%s44]] 2
    %s46 = scalar_lea.smem [#allocation8], 6
    %47 = sst [smem:[%s46]] 320
    %s48 = scalar_lea.smem [#allocation8], 7
    %49 = sst [smem:[%s48]] 64
    %s50 = scalar_lea.smem [#allocation8], 8
    %51 = sst [smem:[%s50]] 4
    %53 = dma.general %s3, 21120, %s32, [#allocation4], [#allocation7], [#allocation8], %s30, 0
    %s54 = scalar_lea.sflag [#allocation4], 1
    %p56 = scmp.lt.u32.totalorder 192, 8
    %p57 = pneg %p56
    // Predicated region
    $region14: #{tpu_custom_call.1} parent=1 // pred_check
      _
    $region15: #{tpu_custom_call.1} parent=1 // pred_check_branch
      %59 = sbr.rel (%p56) target = $region17
    $region16: #{tpu_custom_call.1} parent=1 // pred_region
      %s74 = sand.u32 192, 7
      %p75 = scmp.eq.s32.totalorder %s74, 0
      // Predicated region
      $region29: #{tpu_custom_call.1} parent=16 // pred_check
        %p76 = pneg %p75
      $region30: #{tpu_custom_call.1} parent=16 // pred_check_branch
        %78 = sbr.rel (%p76) target = $region32
      $region31: #{tpu_custom_call.1} parent=16 // pred_region
        loop: start=0, step=1, limit=1
        $region33: #{tpu_custom_call.1} parent=31 // loop_pre_header
          _
        $region34: #{tpu_custom_call.1} parent=31 // loop_header
          %s80 = sphi 0, %s84
          %p81 = scmp.ge.s32.totalorder %s80, 1
          %s85 = sphi %s4, %s4
          %s86 = sphi [#allocation3], [#allocation3]
        $region35: #{tpu_custom_call.1} parent=31 // loop_header_branch
          %83 = sbr.rel (%p81) target = $region39
        $region36: #{tpu_custom_call.1} parent=31 // loop_body
          %v87 = vld [vmem:[%s85] sm:$0xff]
          %88 = vst [vmem:[%s86] sm:$0xff] %v87
          %v89 = vld [vmem:[%s85 + $0x8] sm:$0xff]
          %90 = vst [vmem:[%s86 + $0x8] sm:$0xff] %v89
          %v91 = vld [vmem:[%s85 + $0x10] sm:$0xff]
          %92 = vst [vmem:[%s86 + $0x10] sm:$0xff] %v91
          %v93 = vld [vmem:[%s85 + $0x18] sm:$0xff]
          %94 = vst [vmem:[%s86 + $0x18] sm:$0xff] %v93
          %v95 = vld [vmem:[%s85 + $0x20] sm:$0xff]
          %96 = vst [vmem:[%s86 + $0x20] sm:$0xff] %v95
          %v97 = vld [vmem:[%s85 + $0x28] sm:$0xff]
          %98 = vst [vmem:[%s86 + $0x28] sm:$0xff] %v97
          %v99 = vld [vmem:[%s85 + $0x30] sm:$0xff]
          %100 = vst [vmem:[%s86 + $0x30] sm:$0xff] %v99
          %v101 = vld [vmem:[%s85 + $0x38] sm:$0xff]
          %102 = vst [vmem:[%s86 + $0x38] sm:$0xff] %v101
          %v103 = vld [vmem:[%s85 + $0x40] sm:$0xff]
          %104 = vst [vmem:[%s86 + $0x40] sm:$0xff] %v103
          %v105 = vld [vmem:[%s85 + $0x48] sm:$0xff]
          %106 = vst [vmem:[%s86 + $0x48] sm:$0xff] %v105
          %v107 = vld [vmem:[%s85 + $0x50] sm:$0xff]
          %108 = vst [vmem:[%s86 + $0x50] sm:$0xff] %v107
          %v109 = vld [vmem:[%s85 + $0x58] sm:$0xff]
          %110 = vst [vmem:[%s86 + $0x58] sm:$0xff] %v109
          %v111 = vld [vmem:[%s85 + $0x60] sm:$0xff]
          %112 = vst [vmem:[%s86 + $0x60] sm:$0xff] %v111
          %v113 = vld [vmem:[%s85 + $0x68] sm:$0xff]
          %114 = vst [vmem:[%s86 + $0x68] sm:$0xff] %v113
          %v115 = vld [vmem:[%s85 + $0x70] sm:$0xff]
          %116 = vst [vmem:[%s86 + $0x70] sm:$0xff] %v115
          %v117 = vld [vmem:[%s85 + $0x78] sm:$0xff]
          %118 = vst [vmem:[%s86 + $0x78] sm:$0xff] %v117
          %v119 = vld [vmem:[%s85 + $0x80] sm:$0xff]
          %120 = vst [vmem:[%s86 + $0x80] sm:$0xff] %v119
          %v121 = vld [vmem:[%s85 + $0x88] sm:$0xff]
          %122 = vst [vmem:[%s86 + $0x88] sm:$0xff] %v121
          %v123 = vld [vmem:[%s85 + $0x90] sm:$0xff]
          %124 = vst [vmem:[%s86 + $0x90] sm:$0xff] %v123
          %v125 = vld [vmem:[%s85 + $0x98] sm:$0xff]
          %126 = vst [vmem:[%s86 + $0x98] sm:$0xff] %v125
          %v127 = vld [vmem:[%s85 + $0xa0] sm:$0xff]
          %128 = vst [vmem:[%s86 + $0xa0] sm:$0xff] %v127
          %v129 = vld [vmem:[%s85 + $0xa8] sm:$0xff]
          %130 = vst [vmem:[%s86 + $0xa8] sm:$0xff] %v129
          %v131 = vld [vmem:[%s85 + $0xb0] sm:$0xff]
          %132 = vst [vmem:[%s86 + $0xb0] sm:$0xff] %v131
          %v133 = vld [vmem:[%s85 + $0xb8] sm:$0xff]
          %134 = vst [vmem:[%s86 + $0xb8] sm:$0xff] %v133
        $region37: #{tpu_custom_call.1} parent=31 // loop_footer
          %s84 = sadd.s32 1, %s80
        $region38: #{tpu_custom_call.1} parent=31 // loop_footer_branch
          %79 = sbr.rel target = $region34
        $region39: #{tpu_custom_call.1} parent=31 // loop_exit
          _
      $region32: #{tpu_custom_call.1} parent=16 // pred_fallthru
        _
      %p135 = pneg %p75
      // Predicated region
      $region40: #{tpu_custom_call.1} parent=16 // pred_check
        _
      $region41: #{tpu_custom_call.1} parent=16 // pred_check_branch
        %137 = sbr.rel (%p75) target = $region43
      $region42: #{tpu_custom_call.1} parent=16 // pred_region
        %s138 = sand.u32 192, 7
      $region43: #{tpu_custom_call.1} parent=16 // pred_fallthru
        _
    $region17: #{tpu_custom_call.1} parent=1 // pred_fallthru
      _
    // Predicated region
    $region18: #{tpu_custom_call.1} parent=1 // pred_check
      %p60 = pneg %p56
    $region19: #{tpu_custom_call.1} parent=1 // pred_check_branch
      %62 = sbr.rel (%p60) target = $region21
    $region20: #{tpu_custom_call.1} parent=1 // pred_region
      %s63 = sshllo.u32 0, 192
      loop: start=0, step=1, limit=1
      $region22: #{tpu_custom_call.1} parent=20 // loop_pre_header
        _
      $region23: #{tpu_custom_call.1} parent=20 // loop_header
        %s65 = sphi 0, %s69
        %p66 = scmp.ge.s32.totalorder %s65, 1
        %s70 = sphi %s4, %s4
        %s71 = sphi [#allocation3], [#allocation3]
      $region24: #{tpu_custom_call.1} parent=20 // loop_header_branch
        %68 = sbr.rel (%p66) target = $region28
      $region25: #{tpu_custom_call.1} parent=20 // loop_body
        %v72 = vld [vmem:[%s70] sm:%s63]
        %73 = vst [vmem:[%s71] sm:%s63] %v72
      $region26: #{tpu_custom_call.1} parent=20 // loop_footer
        %s69 = sadd.s32 1, %s65
      $region27: #{tpu_custom_call.1} parent=20 // loop_footer_branch
        %64 = sbr.rel target = $region23
      $region28: #{tpu_custom_call.1} parent=20 // loop_exit
        _
    $region21: #{tpu_custom_call.1} parent=1 // pred_fallthru
      _
    // Predicated region
    $region44: #{tpu_custom_call.1} parent=1 // pred_check
      _
    $region45: #{tpu_custom_call.1} parent=1 // pred_check_branch
      %141 = sbr.rel (0) target = $region47
    $region46: #{tpu_custom_call.1} parent=1 // pred_region
      %142 = vsyncadd %s54, 3072
    $region47: #{tpu_custom_call.1} parent=1 // pred_fallthru
      _
    %v143 = vld [vmem:[%s0] sm:$0xff]
    %v144 = vld [vmem:[%s0 + $0x8] sm:$0xff]
    %v145 = vld [vmem:[%s0 + $0x10] sm:$0xff]
    %v146 = vld [vmem:[%s0 + $0x18] sm:$0xff]
    %v147 = vld [vmem:[%s0 + $0x20] sm:$0xff]
    %v148 = vld [vmem:[%s0 + $0x28] sm:$0xff]
    %v149 = vld [vmem:[%s0 + $0x30] sm:$0xff]
    %v150 = vld [vmem:[%s0 + $0x38] sm:$0xff]
    %v151 = vld [vmem:[%s0 + $0x40] sm:$0xff]
    %v152 = vld [vmem:[%s0 + $0x48] sm:$0xff]
    %v153 = vld [vmem:[%s0 + $0x50] sm:$0xff]
    %v154 = vld [vmem:[%s0 + $0x58] sm:$0xff]
    %v155 = vld [vmem:[%s0 + $0x60] sm:$0xff]
    %v156 = vld [vmem:[%s0 + $0x68] sm:$0xff]
    %v157 = vld [vmem:[%s0 + $0x70] sm:$0xff]
    %v158 = vld [vmem:[%s0 + $0x78] sm:$0xff]
    %s159 = scalar_lea.vmem %s0, 128
    %v160 = vld [vmem:[%s159] sm:$0xff]
    %v161 = vld [vmem:[%s159 + $0x8] sm:$0xff]
    %v162 = vld [vmem:[%s159 + $0x10] sm:$0xff]
    %v163 = vld [vmem:[%s159 + $0x18] sm:$0xff]
    %v164 = vld [vmem:[%s159 + $0x20] sm:$0xff]
    %v165 = vld [vmem:[%s159 + $0x28] sm:$0xff]
    %v166 = vld [vmem:[%s159 + $0x30] sm:$0xff]
    %v167 = vld [vmem:[%s159 + $0x38] sm:$0xff]
    %v168 = vld [vmem:[%s159 + $0x40] sm:$0xff]
    %v169 = vld [vmem:[%s159 + $0x48] sm:$0xff]
    %v170 = vld [vmem:[%s159 + $0x50] sm:$0xff]
    %v171 = vld [vmem:[%s159 + $0x58] sm:$0xff]
    %v172 = vld [vmem:[%s159 + $0x60] sm:$0xff]
    %v173 = vld [vmem:[%s159 + $0x68] sm:$0xff]
    %v174 = vld [vmem:[%s159 + $0x70] sm:$0xff]
    %v175 = vld [vmem:[%s159 + $0x78] sm:$0xff]
    %v176 = vpack.c.bf16 %v144, %v143
    %v177 = vpack.c.bf16 %v161, %v160
    %v178 = vpack.c.bf16 %v146, %v145
    %v179 = vpack.c.bf16 %v163, %v162
    %v180 = vpack.c.bf16 %v148, %v147
    %v181 = vpack.c.bf16 %v165, %v164
    %v182 = vpack.c.bf16 %v150, %v149
    %v183 = vpack.c.bf16 %v167, %v166
    %v184 = vpack.c.bf16 %v152, %v151
    %v185 = vpack.c.bf16 %v169, %v168
    %v186 = vpack.c.bf16 %v154, %v153
    %v187 = vpack.c.bf16 %v171, %v170
    %v188 = vpack.c.bf16 %v156, %v155
    %v189 = vpack.c.bf16 %v173, %v172
    %v190 = vpack.c.bf16 %v158, %v157
    %v191 = vpack.c.bf16 %v175, %v174
    %vm192 = vcmask 1040384
    %vm193 = vsmask.f32 256
    %vm194 = vmand %vm192, %vm193
    %v195 = vsel %vm194, 1065369472, 0
    %v196 = vld [vmem:[%s1] sm:$0xff]
    %v197 = vld [vmem:[%s1 + $0x8] sm:$0xff]
    %v198 = vld [vmem:[%s1 + $0x10] sm:$0xff]
    %v199 = vld [vmem:[%s1 + $0x18] sm:$0xff]
    %v200 = vld [vmem:[%s1 + $0x20] sm:$0xff]
    %v201 = vld [vmem:[%s1 + $0x28] sm:$0xff]
    %v202 = vld [vmem:[%s1 + $0x30] sm:$0xff]
    %v203 = vld [vmem:[%s1 + $0x38] sm:$0xff]
    %v204 = vld [vmem:[%s1 + $0x40] sm:$0xff]
    %v205 = vld [vmem:[%s1 + $0x48] sm:$0xff]
    %v206 = vld [vmem:[%s1 + $0x50] sm:$0xff]
    %v207 = vld [vmem:[%s1 + $0x58] sm:$0xff]
    %v208 = vld [vmem:[%s1 + $0x60] sm:$0xff]
    %v209 = vld [vmem:[%s1 + $0x68] sm:$0xff]
    %v210 = vld [vmem:[%s1 + $0x70] sm:$0xff]
    %v211 = vld [vmem:[%s1 + $0x78] sm:$0xff]
    %v212 = vld [vmem:[%s1 + $0x80] sm:$0xff]
    %v213 = vld [vmem:[%s1 + $0x88] sm:$0xff]
    %v214 = vld [vmem:[%s1 + $0x90] sm:$0xff]
    %v215 = vld [vmem:[%s1 + $0x98] sm:$0xff]
    %v216 = vld [vmem:[%s1 + $0xa0] sm:$0xff]
    %v217 = vld [vmem:[%s1 + $0xa8] sm:$0xff]
    %v218 = vld [vmem:[%s1 + $0xb0] sm:$0xff]
    %v219 = vld [vmem:[%s1 + $0xb8] sm:$0xff]
    %v220 = vld [vmem:[%s1 + $0xc0] sm:$0xff]
    %v221 = vld [vmem:[%s1 + $0xc8] sm:$0xff]
    %v222 = vld [vmem:[%s1 + $0xd0] sm:$0xff]
    %v223 = vld [vmem:[%s1 + $0xd8] sm:$0xff]
    %v224 = vld [vmem:[%s1 + $0xe0] sm:$0xff]
    %v225 = vld [vmem:[%s1 + $0xe8] sm:$0xff]
    %v226 = vld [vmem:[%s1 + $0xf0] sm:$0xff]
    %v227 = vld [vmem:[%s1 + $0xf8] sm:$0xff]
    %v228 = vld [vmem:[%s1 + $0x100] sm:$0xff]
    %v229 = vld [vmem:[%s1 + $0x108] sm:$0xff]
    %v230 = vld [vmem:[%s1 + $0x110] sm:$0xff]
    %v231 = vld [vmem:[%s1 + $0x118] sm:$0xff]
    %v232 = vld [vmem:[%s1 + $0x120] sm:$0xff]
    %v233 = vld [vmem:[%s1 + $0x128] sm:$0xff]
    %v234 = vld [vmem:[%s1 + $0x130] sm:$0xff]
    %v235 = vld [vmem:[%s1 + $0x138] sm:$0xff]
    %v236 = vld [vmem:[%s1 + $0x140] sm:$0xff]
    %v237 = vld [vmem:[%s1 + $0x148] sm:$0xff]
    %v238 = vld [vmem:[%s1 + $0x150] sm:$0xff]
    %v239 = vld [vmem:[%s1 + $0x158] sm:$0xff]
    %v240 = vld [vmem:[%s1 + $0x160] sm:$0xff]
    %v241 = vld [vmem:[%s1 + $0x168] sm:$0xff]
    %v242 = vld [vmem:[%s1 + $0x170] sm:$0xff]
    %v243 = vld [vmem:[%s1 + $0x178] sm:$0xff]
    %v244 = vld [vmem:[%s1 + $0x180] sm:$0xff]
    %v245 = vld [vmem:[%s1 + $0x188] sm:$0xff]
    %v246 = vld [vmem:[%s1 + $0x190] sm:$0xff]
    %v247 = vld [vmem:[%s1 + $0x198] sm:$0xff]
    %v248 = vld [vmem:[%s1 + $0x1a0] sm:$0xff]
    %v249 = vld [vmem:[%s1 + $0x1a8] sm:$0xff]
    %v250 = vld [vmem:[%s1 + $0x1b0] sm:$0xff]
    %v251 = vld [vmem:[%s1 + $0x1b8] sm:$0xff]
    %v252 = vld [vmem:[%s1 + $0x1c0] sm:$0xff]
    %v253 = vld [vmem:[%s1 + $0x1c8] sm:$0xff]
    %v254 = vld [vmem:[%s1 + $0x1d0] sm:$0xff]
    %v255 = vld [vmem:[%s1 + $0x1d8] sm:$0xff]
    %v256 = vld [vmem:[%s1 + $0x1e0] sm:$0xff]
    %v257 = vld [vmem:[%s1 + $0x1e8] sm:$0xff]
    %v258 = vld [vmem:[%s1 + $0x1f0] sm:$0xff]
    %v259 = vld [vmem:[%s1 + $0x1f8] sm:$0xff]
    %v324 = vunpack.c.l.b16 %v196
    %v325 = vunpack.c.h.b16 %v196
    %v326 = vunpack.c.l.b16 %v197
    %v327 = vunpack.c.h.b16 %v197
    %v328 = vunpack.c.l.b16 %v198
    %v329 = vunpack.c.h.b16 %v198
    %v330 = vunpack.c.l.b16 %v199
    %v331 = vunpack.c.h.b16 %v199
    %v332 = vunpack.c.l.b16 %v200
    %v333 = vunpack.c.h.b16 %v200
    %v334 = vunpack.c.l.b16 %v201
    %v335 = vunpack.c.h.b16 %v201
    %v336 = vunpack.c.l.b16 %v202
    %v337 = vunpack.c.h.b16 %v202
    %v338 = vunpack.c.l.b16 %v203
    %v339 = vunpack.c.h.b16 %v203
    %v340 = vunpack.c.l.b16 %v204
    %v341 = vunpack.c.h.b16 %v204
    %v342 = vunpack.c.l.b16 %v205
    %v343 = vunpack.c.h.b16 %v205
    %v344 = vunpack.c.l.b16 %v206
    %v345 = vunpack.c.h.b16 %v206
    %v346 = vunpack.c.l.b16 %v207
    %v347 = vunpack.c.h.b16 %v207
    %v348 = vunpack.c.l.b16 %v208
    %v349 = vunpack.c.h.b16 %v208
    %v350 = vunpack.c.l.b16 %v209
    %v351 = vunpack.c.h.b16 %v209
    %v352 = vunpack.c.l.b16 %v210
    %v353 = vunpack.c.h.b16 %v210
    %v354 = vunpack.c.l.b16 %v211
    %v355 = vunpack.c.h.b16 %v211
    %v356 = vunpack.c.l.b16 %v212
    %v357 = vunpack.c.h.b16 %v212
    %v358 = vunpack.c.l.b16 %v213
    %v359 = vunpack.c.h.b16 %v213
    %v360 = vunpack.c.l.b16 %v214
    %v361 = vunpack.c.h.b16 %v214
    %v362 = vunpack.c.l.b16 %v215
    %v363 = vunpack.c.h.b16 %v215
    %v364 = vunpack.c.l.b16 %v216
    %v365 = vunpack.c.h.b16 %v216
    %v366 = vunpack.c.l.b16 %v217
    %v367 = vunpack.c.h.b16 %v217
    %v368 = vunpack.c.l.b16 %v218
    %v369 = vunpack.c.h.b16 %v218
    %v370 = vunpack.c.l.b16 %v219
    %v371 = vunpack.c.h.b16 %v219
    %v372 = vunpack.c.l.b16 %v220
    %v373 = vunpack.c.h.b16 %v220
    %v374 = vunpack.c.l.b16 %v221
    %v375 = vunpack.c.h.b16 %v221
    %v376 = vunpack.c.l.b16 %v222
    %v377 = vunpack.c.h.b16 %v222
    %v378 = vunpack.c.l.b16 %v223
    %v379 = vunpack.c.h.b16 %v223
    %v380 = vunpack.c.l.b16 %v224
    %v381 = vunpack.c.h.b16 %v224
    %v382 = vunpack.c.l.b16 %v225
    %v383 = vunpack.c.h.b16 %v225
    %v384 = vunpack.c.l.b16 %v226
    %v385 = vunpack.c.h.b16 %v226
    %v386 = vunpack.c.l.b16 %v227
    %v387 = vunpack.c.h.b16 %v227
    %v388 = vunpack.c.l.b16 %v228
    %v389 = vunpack.c.h.b16 %v228
    %v390 = vunpack.c.l.b16 %v229
    %v391 = vunpack.c.h.b16 %v229
    %v392 = vunpack.c.l.b16 %v230
    %v393 = vunpack.c.h.b16 %v230
    %v394 = vunpack.c.l.b16 %v231
    %v395 = vunpack.c.h.b16 %v231
    %v396 = vunpack.c.l.b16 %v232
    %v397 = vunpack.c.h.b16 %v232
    %v398 = vunpack.c.l.b16 %v233
    %v399 = vunpack.c.h.b16 %v233
    %v400 = vunpack.c.l.b16 %v234
    %v401 = vunpack.c.h.b16 %v234
    %v402 = vunpack.c.l.b16 %v235
    %v403 = vunpack.c.h.b16 %v235
    %v404 = vunpack.c.l.b16 %v236
    %v405 = vunpack.c.h.b16 %v236
    %v406 = vunpack.c.l.b16 %v237
    %v407 = vunpack.c.h.b16 %v237
    %v408 = vunpack.c.l.b16 %v238
    %v409 = vunpack.c.h.b16 %v238
    %v410 = vunpack.c.l.b16 %v239
    %v411 = vunpack.c.h.b16 %v239
    %v412 = vunpack.c.l.b16 %v240
    %v413 = vunpack.c.h.b16 %v240
    %v414 = vunpack.c.l.b16 %v241
    %v415 = vunpack.c.h.b16 %v241
    %v416 = vunpack.c.l.b16 %v242
    %v417 = vunpack.c.h.b16 %v242
    %v418 = vunpack.c.l.b16 %v243
    %v419 = vunpack.c.h.b16 %v243
    %v420 = vunpack.c.l.b16 %v244
    %v421 = vunpack.c.h.b16 %v244
    %v422 = vunpack.c.l.b16 %v245
    %v423 = vunpack.c.h.b16 %v245
    %v424 = vunpack.c.l.b16 %v246
    %v425 = vunpack.c.h.b16 %v246
    %v426 = vunpack.c.l.b16 %v247
    %v427 = vunpack.c.h.b16 %v247
    %v428 = vunpack.c.l.b16 %v248
    %v429 = vunpack.c.h.b16 %v248
    %v430 = vunpack.c.l.b16 %v249
    %v431 = vunpack.c.h.b16 %v249
    %v432 = vunpack.c.l.b16 %v250
    %v433 = vunpack.c.h.b16 %v250
    %v434 = vunpack.c.l.b16 %v251
    %v435 = vunpack.c.h.b16 %v251
    %v436 = vunpack.c.l.b16 %v252
    %v437 = vunpack.c.h.b16 %v252
    %v438 = vunpack.c.l.b16 %v253
    %v439 = vunpack.c.h.b16 %v253
    %v440 = vunpack.c.l.b16 %v254
    %v441 = vunpack.c.h.b16 %v254
    %v442 = vunpack.c.l.b16 %v255
    %v443 = vunpack.c.h.b16 %v255
    %v444 = vunpack.c.l.b16 %v256
    %v445 = vunpack.c.h.b16 %v256
    %v446 = vunpack.c.l.b16 %v257
    %v447 = vunpack.c.h.b16 %v257
    %v448 = vunpack.c.l.b16 %v258
    %v449 = vunpack.c.h.b16 %v258
    %v450 = vunpack.c.l.b16 %v259
    %v451 = vunpack.c.h.b16 %v259
    %v452 = vpack.c.b16 %v326, %v324
    %v453 = vpack.c.b16 %v327, %v325
    %v454 = vpack.c.b16 %v330, %v328
    %v455 = vpack.c.b16 %v331, %v329
    %v456 = vpack.c.b16 %v334, %v332
    %v457 = vpack.c.b16 %v335, %v333
    %v458 = vpack.c.b16 %v338, %v336
    %v459 = vpack.c.b16 %v339, %v337
    %v460 = vpack.c.b16 %v342, %v340
    %v461 = vpack.c.b16 %v343, %v341
    %v462 = vpack.c.b16 %v346, %v344
    %v463 = vpack.c.b16 %v347, %v345
    %v464 = vpack.c.b16 %v350, %v348
    %v465 = vpack.c.b16 %v351, %v349
    %v466 = vpack.c.b16 %v354, %v352
    %v467 = vpack.c.b16 %v355, %v353
    %v468 = vpack.c.b16 %v358, %v356
    %v469 = vpack.c.b16 %v359, %v357
    %v470 = vpack.c.b16 %v362, %v360
    %v471 = vpack.c.b16 %v363, %v361
    %v472 = vpack.c.b16 %v366, %v364
    %v473 = vpack.c.b16 %v367, %v365
    %v474 = vpack.c.b16 %v370, %v368
    %v475 = vpack.c.b16 %v371, %v369
    %v476 = vpack.c.b16 %v374, %v372
    %v477 = vpack.c.b16 %v375, %v373
    %v478 = vpack.c.b16 %v378, %v376
    %v479 = vpack.c.b16 %v379, %v377
    %v480 = vpack.c.b16 %v382, %v380
    %v481 = vpack.c.b16 %v383, %v381
    %v482 = vpack.c.b16 %v386, %v384
    %v483 = vpack.c.b16 %v387, %v385
    %v484 = vpack.c.b16 %v390, %v388
    %v485 = vpack.c.b16 %v391, %v389
    %v486 = vpack.c.b16 %v394, %v392
    %v487 = vpack.c.b16 %v395, %v393
    %v488 = vpack.c.b16 %v398, %v396
    %v489 = vpack.c.b16 %v399, %v397
    %v490 = vpack.c.b16 %v402, %v400
    %v491 = vpack.c.b16 %v403, %v401
    %v492 = vpack.c.b16 %v406, %v404
    %v493 = vpack.c.b16 %v407, %v405
    %v494 = vpack.c.b16 %v410, %v408
    %v495 = vpack.c.b16 %v411, %v409
    %v496 = vpack.c.b16 %v414, %v412
    %v497 = vpack.c.b16 %v415, %v413
    %v498 = vpack.c.b16 %v418, %v416
    %v499 = vpack.c.b16 %v419, %v417
    %v500 = vpack.c.b16 %v422, %v420
    %v501 = vpack.c.b16 %v423, %v421
    %v502 = vpack.c.b16 %v426, %v424
    %v503 = vpack.c.b16 %v427, %v425
    %v504 = vpack.c.b16 %v430, %v428
    %v505 = vpack.c.b16 %v431, %v429
    %v506 = vpack.c.b16 %v434, %v432
    %v507 = vpack.c.b16 %v435, %v433
    %v508 = vpack.c.b16 %v438, %v436
    %v509 = vpack.c.b16 %v439, %v437
    %v510 = vpack.c.b16 %v442, %v440
    %v511 = vpack.c.b16 %v443, %v441
    %v512 = vpack.c.b16 %v446, %v444
    %v513 = vpack.c.b16 %v447, %v445
    %v514 = vpack.c.b16 %v450, %v448
    %v515 = vpack.c.b16 %v451, %v449
    %vm548 = vcmask 130048
    %v550 = vsel %vm548, %v453, 0
    %v553 = vsel %vm548, %v455, 0
    %v556 = vsel %vm548, %v457, 0
    %v559 = vsel %vm548, %v459, 0
    %v562 = vsel %vm548, %v461, 0
    %v565 = vsel %vm548, %v463, 0
    %v568 = vsel %vm548, %v465, 0
    %v571 = vsel %vm548, %v467, 0
    %v574 = vsel %vm548, %v469, 0
    %v577 = vsel %vm548, %v471, 0
    %v580 = vsel %vm548, %v473, 0
    %v583 = vsel %vm548, %v475, 0
    %v586 = vsel %vm548, %v477, 0
    %v589 = vsel %vm548, %v479, 0
    %v592 = vsel %vm548, %v481, 0
    %v595 = vsel %vm548, %v483, 0
    %v598 = vsel %vm548, %v485, 0
    %v601 = vsel %vm548, %v487, 0
    %v604 = vsel %vm548, %v489, 0
    %v607 = vsel %vm548, %v491, 0
    %v610 = vsel %vm548, %v493, 0
    %v613 = vsel %vm548, %v495, 0
    %v616 = vsel %vm548, %v497, 0
    %v619 = vsel %vm548, %v499, 0
    %v622 = vsel %vm548, %v501, 0
    %v625 = vsel %vm548, %v503, 0
    %v628 = vsel %vm548, %v505, 0
    %v631 = vsel %vm548, %v507, 0
    %v634 = vsel %vm548, %v509, 0
    %v637 = vsel %vm548, %v511, 0
    %v640 = vsel %vm548, %v513, 0
    %v643 = vsel %vm548, %v515, 0
    %645 = vmatprep.subr.bf16.mxu0 %v177
    %646 = vmatpush1.bf16.msra.mxu0 %v176
    %647 = vmatprep.subr.bf16.mxu0 %v179
    %648 = vmatpush1.bf16.msra.mxu0 %v178
    %649 = vmatprep.subr.bf16.mxu0 %v181
    %650 = vmatpush1.bf16.msra.mxu0 %v180
    %651 = vmatprep.subr.bf16.mxu0 %v183
    %652 = vmatpush1.bf16.msra.mxu0 %v182
    %653 = vmatprep.subr.bf16.mxu0 %v185
    %654 = vmatpush1.bf16.msra.mxu0 %v184
    %655 = vmatprep.subr.bf16.mxu0 %v187
    %656 = vmatpush1.bf16.msra.mxu0 %v186
    %657 = vmatprep.subr.bf16.mxu0 %v189
    %658 = vmatpush1.bf16.msra.mxu0 %v188
    %659 = vmatprep.subr.bf16.mxu0 %v191
    %660 = vmatpush1.bf16.msra.mxu0 %v190
    %661 = vmatprep.subr.bf16.mxu0 %v195
    %662 = vmatpush1.bf16.msra.mxu0 %v195
    %663 = vmatprep.subr.bf16.mxu0 0
    %664 = vmatpush1.bf16.msra.mxu0 0
    %665 = vmatprep.subr.bf16.mxu0 0
    %666 = vmatpush1.bf16.msra.mxu0 0
    %667 = vmatprep.subr.bf16.mxu0 0
    %668 = vmatpush1.bf16.msra.mxu0 0
    %669 = vmatprep.subr.bf16.mxu0 0
    %670 = vmatpush1.bf16.msra.mxu0 0
    %671 = vmatprep.subr.bf16.mxu0 0
    %672 = vmatpush1.bf16.msra.mxu0 0
    %673 = vmatprep.subr.bf16.mxu0 0
    %674 = vmatpush1.bf16.msra.mxu0 0
    %675 = vmatprep.subr.bf16.mxu0 0
    %676 = vmatpush1.bf16.msra.mxu0 0
    %677 = vmatprep.mubr.bf16.mxu0 %v550
    %678 = vmatmul.mubr.bf16.gmra.mrb[0].mxu0 %v452
    %v679 = vpop.f32.mrb[0].mxu0
    %v680 = vadd.f32 0.0, %v679
    %v681 = vpop.f32.mrb[0].mxu0
    %v682 = vadd.f32 0.0, %v681
    %v683 = vpop.f32.mrb[0].mxu0
    %v684 = vadd.f32 0.0, %v683
    %v685 = vpop.f32.mrb[0].mxu0
    %v686 = vadd.f32 0.0, %v685
    %687 = vmatprep.mubr.bf16.mxu0 %v553
    %688 = vmatmul.mubr.bf16.gmra.mrb[0].mxu0 %v454
    %v689 = vpop.f32.mrb[0].mxu0
    %v690 = vadd.f32 0.0, %v689
    %v691 = vpop.f32.mrb[0].mxu0
    %v692 = vadd.f32 0.0, %v691
    %v693 = vpop.f32.mrb[0].mxu0
    %v694 = vadd.f32 0.0, %v693
    %v695 = vpop.f32.mrb[0].mxu0
    %v696 = vadd.f32 0.0, %v695
    %697 = vmatprep.mubr.bf16.mxu0 %v556
    %698 = vmatmul.mubr.bf16.gmra.mrb[0].mxu0 %v456
    %v699 = vpop.f32.mrb[0].mxu0
    %v700 = vadd.f32 0.0, %v699
    %v701 = vpop.f32.mrb[0].mxu0
    %v702 = vadd.f32 0.0, %v701
    %v703 = vpop.f32.mrb[0].mxu0
    %v704 = vadd.f32 0.0, %v703
    %v705 = vpop.f32.mrb[0].mxu0
    %v706 = vadd.f32 0.0, %v705
    %707 = vmatprep.mubr.bf16.mxu0 %v559
    %708 = vmatmul.mubr.bf16.gmra.mrb[0].mxu0 %v458
    %v709 = vpop.f32.mrb[0].mxu0
    %v710 = vadd.f32 0.0, %v709
    %v711 = vpop.f32.mrb[0].mxu0
    %v712 = vadd.f32 0.0, %v711
    %v713 = vpop.f32.mrb[0].mxu0
    %v714 = vadd.f32 0.0, %v713
    %v715 = vpop.f32.mrb[0].mxu0
    %v716 = vadd.f32 0.0, %v715
    %717 = vmatprep.mubr.bf16.mxu0 %v562
    %718 = vmatmul.mubr.bf16.gmra.mrb[0].mxu0 %v460
    %v719 = vpop.f32.mrb[0].mxu0
    %v720 = vadd.f32 0.0, %v719
    %v721 = vpop.f32.mrb[0].mxu0
    %v722 = vadd.f32 0.0, %v721
    %v723 = vpop.f32.mrb[0].mxu0
    %v724 = vadd.f32 0.0, %v723
    %v725 = vpop.f32.mrb[0].mxu0
    %v726 = vadd.f32 0.0, %v725
    %727 = vmatprep.mubr.bf16.mxu0 %v565
    %728 = vmatmul.mubr.bf16.gmra.mrb[0].mxu0 %v462
    %v729 = vpop.f32.mrb[0].mxu0
    %v730 = vadd.f32 0.0, %v729
    %v731 = vpop.f32.mrb[0].mxu0
    %v732 = vadd.f32 0.0, %v731
    %v733 = vpop.f32.mrb[0].mxu0
    %v734 = vadd.f32 0.0, %v733
    %v735 = vpop.f32.mrb[0].mxu0
    %v736 = vadd.f32 0.0, %v735
    %737 = vmatprep.mubr.bf16.mxu0 %v568
    %738 = vmatmul.mubr.bf16.gmra.mrb[0].mxu0 %v464
    %v739 = vpop.f32.mrb[0].mxu0
    %v740 = vadd.f32 0.0, %v739
    %v741 = vpop.f32.mrb[0].mxu0
    %v742 = vadd.f32 0.0, %v741
    %v743 = vpop.f32.mrb[0].mxu0
    %v744 = vadd.f32 0.0, %v743
    %v745 = vpop.f32.mrb[0].mxu0
    %v746 = vadd.f32 0.0, %v745
    %747 = vmatprep.mubr.bf16.mxu0 %v571
    %748 = vmatmul.mubr.bf16.gmra.mrb[0].mxu0 %v466
    %v749 = vpop.f32.mrb[0].mxu0
    %v750 = vadd.f32 0.0, %v749
    %v751 = vpop.f32.mrb[0].mxu0
    %v752 = vadd.f32 0.0, %v751
    %v753 = vpop.f32.mrb[0].mxu0
    %v754 = vadd.f32 0.0, %v753
    %v755 = vpop.f32.mrb[0].mxu0
    %v756 = vadd.f32 0.0, %v755
    %757 = vmatprep.mubr.bf16.mxu0 %v574
    %758 = vmatmul.mubr.bf16.gmra.mrb[0].mxu0 %v468
    %v759 = vpop.f32.mrb[0].mxu0
    %v760 = vadd.f32 0.0, %v759
    %v761 = vpop.f32.mrb[0].mxu0
    %v762 = vadd.f32 0.0, %v761
    %v763 = vpop.f32.mrb[0].mxu0
    %v764 = vadd.f32 0.0, %v763
    %v765 = vpop.f32.mrb[0].mxu0
    %v766 = vadd.f32 0.0, %v765
    %767 = vmatprep.mubr.bf16.mxu0 %v577
    %768 = vmatmul.mubr.bf16.gmra.mrb[0].mxu0 %v470
    %v769 = vpop.f32.mrb[0].mxu0
    %v770 = vadd.f32 0.0, %v769
    %v771 = vpop.f32.mrb[0].mxu0
    %v772 = vadd.f32 0.0, %v771
    %v773 = vpop.f32.mrb[0].mxu0
    %v774 = vadd.f32 0.0, %v773
    %v775 = vpop.f32.mrb[0].mxu0
    %v776 = vadd.f32 0.0, %v775
    %777 = vmatprep.mubr.bf16.mxu0 %v580
    %778 = vmatmul.mubr.bf16.gmra.mrb[0].mxu0 %v472
    %v779 = vpop.f32.mrb[0].mxu0
    %v780 = vadd.f32 0.0, %v779
    %v781 = vpop.f32.mrb[0].mxu0
    %v782 = vadd.f32 0.0, %v781
    %v783 = vpop.f32.mrb[0].mxu0
    %v784 = vadd.f32 0.0, %v783
    %v785 = vpop.f32.mrb[0].mxu0
    %v786 = vadd.f32 0.0, %v785
    %787 = vmatprep.mubr.bf16.mxu0 %v583
    %788 = vmatmul.mubr.bf16.gmra.mrb[0].mxu0 %v474
    %v789 = vpop.f32.mrb[0].mxu0
    %v790 = vadd.f32 0.0, %v789
    %v791 = vpop.f32.mrb[0].mxu0
    %v792 = vadd.f32 0.0, %v791
    %v793 = vpop.f32.mrb[0].mxu0
    %v794 = vadd.f32 0.0, %v793
    %v795 = vpop.f32.mrb[0].mxu0
    %v796 = vadd.f32 0.0, %v795
    %797 = vmatprep.mubr.bf16.mxu0 %v586
    %798 = vmatmul.mubr.bf16.gmra.mrb[0].mxu0 %v476
    %v799 = vpop.f32.mrb[0].mxu0
    %v800 = vadd.f32 0.0, %v799
    %v801 = vpop.f32.mrb[0].mxu0
    %v802 = vadd.f32 0.0, %v801
    %v803 = vpop.f32.mrb[0].mxu0
    %v804 = vadd.f32 0.0, %v803
    %v805 = vpop.f32.mrb[0].mxu0
    %v806 = vadd.f32 0.0, %v805
    %807 = vmatprep.mubr.bf16.mxu0 %v589
    %808 = vmatmul.mubr.bf16.gmra.mrb[0].mxu0 %v478
    %v809 = vpop.f32.mrb[0].mxu0
    %v810 = vadd.f32 0.0, %v809
    %v811 = vpop.f32.mrb[0].mxu0
    %v812 = vadd.f32 0.0, %v811
    %v813 = vpop.f32.mrb[0].mxu0
    %v814 = vadd.f32 0.0, %v813
    %v815 = vpop.f32.mrb[0].mxu0
    %v816 = vadd.f32 0.0, %v815
    %817 = vmatprep.mubr.bf16.mxu0 %v592
    %818 = vmatmul.mubr.bf16.gmra.mrb[0].mxu0 %v480
    %v819 = vpop.f32.mrb[0].mxu0
    %v820 = vadd.f32 0.0, %v819
    %v821 = vpop.f32.mrb[0].mxu0
    %v822 = vadd.f32 0.0, %v821
    %v823 = vpop.f32.mrb[0].mxu0
    %v824 = vadd.f32 0.0, %v823
    %v825 = vpop.f32.mrb[0].mxu0
    %v826 = vadd.f32 0.0, %v825
    %827 = vmatprep.mubr.bf16.mxu0 %v595
    %828 = vmatmul.mubr.bf16.gmra.mrb[0].mxu0 %v482
    %v829 = vpop.f32.mrb[0].mxu0
    %v830 = vadd.f32 0.0, %v829
    %v831 = vpop.f32.mrb[0].mxu0
    %v832 = vadd.f32 0.0, %v831
    %v833 = vpop.f32.mrb[0].mxu0
    %v834 = vadd.f32 0.0, %v833
    %v835 = vpop.f32.mrb[0].mxu0
    %v836 = vadd.f32 0.0, %v835
    %837 = vmatprep.mubr.bf16.mxu0 %v598
    %838 = vmatmul.mubr.bf16.gmra.mrb[0].mxu0 %v484
    %v839 = vpop.f32.mrb[0].mxu0
    %v840 = vadd.f32 0.0, %v839
    %v841 = vpop.f32.mrb[0].mxu0
    %v842 = vadd.f32 0.0, %v841
    %v843 = vpop.f32.mrb[0].mxu0
    %v844 = vadd.f32 0.0, %v843
    %v845 = vpop.f32.mrb[0].mxu0
    %v846 = vadd.f32 0.0, %v845
    %847 = vmatprep.mubr.bf16.mxu0 %v601
    %848 = vmatmul.mubr.bf16.gmra.mrb[0].mxu0 %v486
    %v849 = vpop.f32.mrb[0].mxu0
    %v850 = vadd.f32 0.0, %v849
    %v851 = vpop.f32.mrb[0].mxu0
    %v852 = vadd.f32 0.0, %v851
    %v853 = vpop.f32.mrb[0].mxu0
    %v854 = vadd.f32 0.0, %v853
    %v855 = vpop.f32.mrb[0].mxu0
    %v856 = vadd.f32 0.0, %v855
    %857 = vmatprep.mubr.bf16.mxu0 %v604
    %858 = vmatmul.mubr.bf16.gmra.mrb[0].mxu0 %v488
    %v859 = vpop.f32.mrb[0].mxu0
    %v860 = vadd.f32 0.0, %v859
    %v861 = vpop.f32.mrb[0].mxu0
    %v862 = vadd.f32 0.0, %v861
    %v863 = vpop.f32.mrb[0].mxu0
    %v864 = vadd.f32 0.0, %v863
    %v865 = vpop.f32.mrb[0].mxu0
    %v866 = vadd.f32 0.0, %v865
    %867 = vmatprep.mubr.bf16.mxu0 %v607
    %868 = vmatmul.mubr.bf16.gmra.mrb[0].mxu0 %v490
    %v869 = vpop.f32.mrb[0].mxu0
    %v870 = vadd.f32 0.0, %v869
    %v871 = vpop.f32.mrb[0].mxu0
    %v872 = vadd.f32 0.0, %v871
    %v873 = vpop.f32.mrb[0].mxu0
    %v874 = vadd.f32 0.0, %v873
    %v875 = vpop.f32.mrb[0].mxu0
    %v876 = vadd.f32 0.0, %v875
    %877 = vmatprep.mubr.bf16.mxu0 %v610
    %878 = vmatmul.mubr.bf16.gmra.mrb[0].mxu0 %v492
    %v879 = vpop.f32.mrb[0].mxu0
    %v880 = vadd.f32 0.0, %v879
    %v881 = vpop.f32.mrb[0].mxu0
    %v882 = vadd.f32 0.0, %v881
    %v883 = vpop.f32.mrb[0].mxu0
    %v884 = vadd.f32 0.0, %v883
    %v885 = vpop.f32.mrb[0].mxu0
    %v886 = vadd.f32 0.0, %v885
    %887 = vmatprep.mubr.bf16.mxu0 %v613
    %888 = vmatmul.mubr.bf16.gmra.mrb[0].mxu0 %v494
    %v889 = vpop.f32.mrb[0].mxu0
    %v890 = vadd.f32 0.0, %v889
    %v891 = vpop.f32.mrb[0].mxu0
    %v892 = vadd.f32 0.0, %v891
    %v893 = vpop.f32.mrb[0].mxu0
    %v894 = vadd.f32 0.0, %v893
    %v895 = vpop.f32.mrb[0].mxu0
    %v896 = vadd.f32 0.0, %v895
    %897 = vmatprep.mubr.bf16.mxu0 %v616
    %898 = vmatmul.mubr.bf16.gmra.mrb[0].mxu0 %v496
    %v899 = vpop.f32.mrb[0].mxu0
    %v900 = vadd.f32 0.0, %v899
    %v901 = vpop.f32.mrb[0].mxu0
    %v902 = vadd.f32 0.0, %v901
    %v903 = vpop.f32.mrb[0].mxu0
    %v904 = vadd.f32 0.0, %v903
    %v905 = vpop.f32.mrb[0].mxu0
    %v906 = vadd.f32 0.0, %v905
    %907 = vmatprep.mubr.bf16.mxu0 %v619
    %908 = vmatmul.mubr.bf16.gmra.mrb[0].mxu0 %v498
    %v909 = vpop.f32.mrb[0].mxu0
    %v910 = vadd.f32 0.0, %v909
    %v911 = vpop.f32.mrb[0].mxu0
    %v912 = vadd.f32 0.0, %v911
    %v913 = vpop.f32.mrb[0].mxu0
    %v914 = vadd.f32 0.0, %v913
    %v915 = vpop.f32.mrb[0].mxu0
    %v916 = vadd.f32 0.0, %v915
    %917 = vmatprep.mubr.bf16.mxu0 %v622
    %918 = vmatmul.mubr.bf16.gmra.mrb[0].mxu0 %v500
    %v919 = vpop.f32.mrb[0].mxu0
    %v920 = vadd.f32 0.0, %v919
    %v921 = vpop.f32.mrb[0].mxu0
    %v922 = vadd.f32 0.0, %v921
    %v923 = vpop.f32.mrb[0].mxu0
    %v924 = vadd.f32 0.0, %v923
    %v925 = vpop.f32.mrb[0].mxu0
    %v926 = vadd.f32 0.0, %v925
    %927 = vmatprep.mubr.bf16.mxu0 %v625
    %928 = vmatmul.mubr.bf16.gmra.mrb[0].mxu0 %v502
    %v929 = vpop.f32.mrb[0].mxu0
    %v930 = vadd.f32 0.0, %v929
    %v931 = vpop.f32.mrb[0].mxu0
    %v932 = vadd.f32 0.0, %v931
    %v933 = vpop.f32.mrb[0].mxu0
    %v934 = vadd.f32 0.0, %v933
    %v935 = vpop.f32.mrb[0].mxu0
    %v936 = vadd.f32 0.0, %v935
    %937 = vmatprep.mubr.bf16.mxu0 %v628
    %938 = vmatmul.mubr.bf16.gmra.mrb[0].mxu0 %v504
    %v939 = vpop.f32.mrb[0].mxu0
    %v940 = vadd.f32 0.0, %v939
    %v941 = vpop.f32.mrb[0].mxu0
    %v942 = vadd.f32 0.0, %v941
    %v943 = vpop.f32.mrb[0].mxu0
    %v944 = vadd.f32 0.0, %v943
    %v945 = vpop.f32.mrb[0].mxu0
    %v946 = vadd.f32 0.0, %v945
    %947 = vmatprep.mubr.bf16.mxu0 %v631
    %948 = vmatmul.mubr.bf16.gmra.mrb[0].mxu0 %v506
    %v949 = vpop.f32.mrb[0].mxu0
    %v950 = vadd.f32 0.0, %v949
    %v951 = vpop.f32.mrb[0].mxu0
    %v952 = vadd.f32 0.0, %v951
    %v953 = vpop.f32.mrb[0].mxu0
    %v954 = vadd.f32 0.0, %v953
    %v955 = vpop.f32.mrb[0].mxu0
    %v956 = vadd.f32 0.0, %v955
    %957 = vmatprep.mubr.bf16.mxu0 %v634
    %958 = vmatmul.mubr.bf16.gmra.mrb[0].mxu0 %v508
    %v959 = vpop.f32.mrb[0].mxu0
    %v960 = vadd.f32 0.0, %v959
    %v961 = vpop.f32.mrb[0].mxu0
    %v962 = vadd.f32 0.0, %v961
    %v963 = vpop.f32.mrb[0].mxu0
    %v964 = vadd.f32 0.0, %v963
    %v965 = vpop.f32.mrb[0].mxu0
    %v966 = vadd.f32 0.0, %v965
    %967 = vmatprep.mubr.bf16.mxu0 %v637
    %968 = vmatmul.mubr.bf16.gmra.mrb[0].mxu0 %v510
    %v969 = vpop.f32.mrb[0].mxu0
    %v970 = vadd.f32 0.0, %v969
    %v971 = vpop.f32.mrb[0].mxu0
    %v972 = vadd.f32 0.0, %v971
    %v973 = vpop.f32.mrb[0].mxu0
    %v974 = vadd.f32 0.0, %v973
    %v975 = vpop.f32.mrb[0].mxu0
    %v976 = vadd.f32 0.0, %v975
    %977 = vmatprep.mubr.bf16.mxu0 %v640
    %978 = vmatmul.mubr.bf16.gmra.mrb[0].mxu0 %v512
    %v979 = vpop.f32.mrb[0].mxu0
    %v980 = vadd.f32 0.0, %v979
    %v981 = vpop.f32.mrb[0].mxu0
    %v982 = vadd.f32 0.0, %v981
    %v983 = vpop.f32.mrb[0].mxu0
    %v984 = vadd.f32 0.0, %v983
    %v985 = vpop.f32.mrb[0].mxu0
    %v986 = vadd.f32 0.0, %v985
    %987 = vmatprep.mubr.bf16.mxu0 %v643
    %988 = vmatmul.mubr.bf16.gmra.mrb[0].mxu0 %v514
    %v989 = vpop.f32.mrb[0].mxu0
    %v990 = vadd.f32 0.0, %v989
    %v991 = vpop.f32.mrb[0].mxu0
    %v992 = vadd.f32 0.0, %v991
    %v993 = vpop.f32.mrb[0].mxu0
    %v994 = vadd.f32 0.0, %v993
    %v995 = vpop.f32.mrb[0].mxu0
    %v996 = vadd.f32 0.0, %v995
    %997 = vdwg.mxu0
    %v998 = vmax.f32 %v680, 0.0
    %v999 = vmax.f32 %v682, 0.0
    %v1000 = vmax.f32 %v684, 0.0
    %v1001 = vmax.f32 %v686, 0.0
    %v1002 = vmax.f32 %v690, 0.0
    %v1003 = vmax.f32 %v692, 0.0
    %v1004 = vmax.f32 %v694, 0.0
    %v1005 = vmax.f32 %v696, 0.0
    %v1006 = vmax.f32 %v700, 0.0
    %v1007 = vmax.f32 %v702, 0.0
    %v1008 = vmax.f32 %v704, 0.0
    %v1009 = vmax.f32 %v706, 0.0
    %v1010 = vmax.f32 %v710, 0.0
    %v1011 = vmax.f32 %v712, 0.0
    %v1012 = vmax.f32 %v714, 0.0
    %v1013 = vmax.f32 %v716, 0.0
    %v1014 = vmax.f32 %v720, 0.0
    %v1015 = vmax.f32 %v722, 0.0
    %v1016 = vmax.f32 %v724, 0.0
    %v1017 = vmax.f32 %v726, 0.0
    %v1018 = vmax.f32 %v730, 0.0
    %v1019 = vmax.f32 %v732, 0.0
    %v1020 = vmax.f32 %v734, 0.0
    %v1021 = vmax.f32 %v736, 0.0
    %v1022 = vmax.f32 %v740, 0.0
    %v1023 = vmax.f32 %v742, 0.0
    %v1024 = vmax.f32 %v744, 0.0
    %v1025 = vmax.f32 %v746, 0.0
    %v1026 = vmax.f32 %v750, 0.0
    %v1027 = vmax.f32 %v752, 0.0
    %v1028 = vmax.f32 %v754, 0.0
    %v1029 = vmax.f32 %v756, 0.0
    %v1030 = vmax.f32 %v760, 0.0
    %v1031 = vmax.f32 %v762, 0.0
    %v1032 = vmax.f32 %v764, 0.0
    %v1033 = vmax.f32 %v766, 0.0
    %v1034 = vmax.f32 %v770, 0.0
    %v1035 = vmax.f32 %v772, 0.0
    %v1036 = vmax.f32 %v774, 0.0
    %v1037 = vmax.f32 %v776, 0.0
    %v1038 = vmax.f32 %v780, 0.0
    %v1039 = vmax.f32 %v782, 0.0
    %v1040 = vmax.f32 %v784, 0.0
    %v1041 = vmax.f32 %v786, 0.0
    %v1042 = vmax.f32 %v790, 0.0
    %v1043 = vmax.f32 %v792, 0.0
    %v1044 = vmax.f32 %v794, 0.0
    %v1045 = vmax.f32 %v796, 0.0
    %v1046 = vmax.f32 %v800, 0.0
    %v1047 = vmax.f32 %v802, 0.0
    %v1048 = vmax.f32 %v804, 0.0
    %v1049 = vmax.f32 %v806, 0.0
    %v1050 = vmax.f32 %v810, 0.0
    %v1051 = vmax.f32 %v812, 0.0
    %v1052 = vmax.f32 %v814, 0.0
    %v1053 = vmax.f32 %v816, 0.0
    %v1054 = vmax.f32 %v820, 0.0
    %v1055 = vmax.f32 %v822, 0.0
    %v1056 = vmax.f32 %v824, 0.0
    %v1057 = vmax.f32 %v826, 0.0
    %v1058 = vmax.f32 %v830, 0.0
    %v1059 = vmax.f32 %v832, 0.0
    %v1060 = vmax.f32 %v834, 0.0
    %v1061 = vmax.f32 %v836, 0.0
    %v1062 = vmax.f32 %v840, 0.0
    %v1063 = vmax.f32 %v842, 0.0
    %v1064 = vmax.f32 %v844, 0.0
    %v1065 = vmax.f32 %v846, 0.0
    %v1066 = vmax.f32 %v850, 0.0
    %v1067 = vmax.f32 %v852, 0.0
    %v1068 = vmax.f32 %v854, 0.0
    %v1069 = vmax.f32 %v856, 0.0
    %v1070 = vmax.f32 %v860, 0.0
    %v1071 = vmax.f32 %v862, 0.0
    %v1072 = vmax.f32 %v864, 0.0
    %v1073 = vmax.f32 %v866, 0.0
    %v1074 = vmax.f32 %v870, 0.0
    %v1075 = vmax.f32 %v872, 0.0
    %v1076 = vmax.f32 %v874, 0.0
    %v1077 = vmax.f32 %v876, 0.0
    %v1078 = vmax.f32 %v880, 0.0
    %v1079 = vmax.f32 %v882, 0.0
    %v1080 = vmax.f32 %v884, 0.0
    %v1081 = vmax.f32 %v886, 0.0
    %v1082 = vmax.f32 %v890, 0.0
    %v1083 = vmax.f32 %v892, 0.0
    %v1084 = vmax.f32 %v894, 0.0
    %v1085 = vmax.f32 %v896, 0.0
    %v1086 = vmax.f32 %v900, 0.0
    %v1087 = vmax.f32 %v902, 0.0
    %v1088 = vmax.f32 %v904, 0.0
    %v1089 = vmax.f32 %v906, 0.0
    %v1090 = vmax.f32 %v910, 0.0
    %v1091 = vmax.f32 %v912, 0.0
    %v1092 = vmax.f32 %v914, 0.0
    %v1093 = vmax.f32 %v916, 0.0
    %v1094 = vmax.f32 %v920, 0.0
    %v1095 = vmax.f32 %v922, 0.0
    %v1096 = vmax.f32 %v924, 0.0
    %v1097 = vmax.f32 %v926, 0.0
    %v1098 = vmax.f32 %v930, 0.0
    %v1099 = vmax.f32 %v932, 0.0
    %v1100 = vmax.f32 %v934, 0.0
    %v1101 = vmax.f32 %v936, 0.0
    %v1102 = vmax.f32 %v940, 0.0
    %v1103 = vmax.f32 %v942, 0.0
    %v1104 = vmax.f32 %v944, 0.0
    %v1105 = vmax.f32 %v946, 0.0
    %v1106 = vmax.f32 %v950, 0.0
    %v1107 = vmax.f32 %v952, 0.0
    %v1108 = vmax.f32 %v954, 0.0
    %v1109 = vmax.f32 %v956, 0.0
    %v1110 = vmax.f32 %v960, 0.0
    %v1111 = vmax.f32 %v962, 0.0
    %v1112 = vmax.f32 %v964, 0.0
    %v1113 = vmax.f32 %v966, 0.0
    %v1114 = vmax.f32 %v970, 0.0
    %v1115 = vmax.f32 %v972, 0.0
    %v1116 = vmax.f32 %v974, 0.0
    %v1117 = vmax.f32 %v976, 0.0
    %v1118 = vmax.f32 %v980, 0.0
    %v1119 = vmax.f32 %v982, 0.0
    %v1120 = vmax.f32 %v984, 0.0
    %v1121 = vmax.f32 %v986, 0.0
    %v1122 = vmax.f32 %v990, 0.0
    %v1123 = vmax.f32 %v992, 0.0
    %v1124 = vmax.f32 %v994, 0.0
    %v1125 = vmax.f32 %v996, 0.0
    %v1126 = vpack.c.bf16 %v1000, %v998
    %v1127 = vpack.c.bf16 %v1001, %v999
    %v1128 = vpack.c.bf16 %v1004, %v1002
    %v1129 = vpack.c.bf16 %v1005, %v1003
    %v1130 = vpack.c.bf16 %v1008, %v1006
    %v1131 = vpack.c.bf16 %v1009, %v1007
    %v1132 = vpack.c.bf16 %v1012, %v1010
    %v1133 = vpack.c.bf16 %v1013, %v1011
    %v1134 = vpack.c.bf16 %v1016, %v1014
    %v1135 = vpack.c.bf16 %v1017, %v1015
    %v1136 = vpack.c.bf16 %v1020, %v1018
    %v1137 = vpack.c.bf16 %v1021, %v1019
    %v1138 = vpack.c.bf16 %v1024, %v1022
    %v1139 = vpack.c.bf16 %v1025, %v1023
    %v1140 = vpack.c.bf16 %v1028, %v1026
    %v1141 = vpack.c.bf16 %v1029, %v1027
    %v1142 = vpack.c.bf16 %v1032, %v1030
    %v1143 = vpack.c.bf16 %v1033, %v1031
    %v1144 = vpack.c.bf16 %v1036, %v1034
    %v1145 = vpack.c.bf16 %v1037, %v1035
    %v1146 = vpack.c.bf16 %v1040, %v1038
    %v1147 = vpack.c.bf16 %v1041, %v1039
    %v1148 = vpack.c.bf16 %v1044, %v1042
    %v1149 = vpack.c.bf16 %v1045, %v1043
    %v1150 = vpack.c.bf16 %v1048, %v1046
    %v1151 = vpack.c.bf16 %v1049, %v1047
    %v1152 = vpack.c.bf16 %v1052, %v1050
    %v1153 = vpack.c.bf16 %v1053, %v1051
    %v1154 = vpack.c.bf16 %v1056, %v1054
    %v1155 = vpack.c.bf16 %v1057, %v1055
    %v1156 = vpack.c.bf16 %v1060, %v1058
    %v1157 = vpack.c.bf16 %v1061, %v1059
    %v1158 = vpack.c.bf16 %v1064, %v1062
    %v1159 = vpack.c.bf16 %v1065, %v1063
    %v1160 = vpack.c.bf16 %v1068, %v1066
    %v1161 = vpack.c.bf16 %v1069, %v1067
    %v1162 = vpack.c.bf16 %v1072, %v1070
    %v1163 = vpack.c.bf16 %v1073, %v1071
    %v1164 = vpack.c.bf16 %v1076, %v1074
    %v1165 = vpack.c.bf16 %v1077, %v1075
    %v1166 = vpack.c.bf16 %v1080, %v1078
    %v1167 = vpack.c.bf16 %v1081, %v1079
    %v1168 = vpack.c.bf16 %v1084, %v1082
    %v1169 = vpack.c.bf16 %v1085, %v1083
    %v1170 = vpack.c.bf16 %v1088, %v1086
    %v1171 = vpack.c.bf16 %v1089, %v1087
    %v1172 = vpack.c.bf16 %v1092, %v1090
    %v1173 = vpack.c.bf16 %v1093, %v1091
    %v1174 = vpack.c.bf16 %v1096, %v1094
    %v1175 = vpack.c.bf16 %v1097, %v1095
    %v1176 = vpack.c.bf16 %v1100, %v1098
    %v1177 = vpack.c.bf16 %v1101, %v1099
    %v1178 = vpack.c.bf16 %v1104, %v1102
    %v1179 = vpack.c.bf16 %v1105, %v1103
    %v1180 = vpack.c.bf16 %v1108, %v1106
    %v1181 = vpack.c.bf16 %v1109, %v1107
    %v1182 = vpack.c.bf16 %v1112, %v1110
    %v1183 = vpack.c.bf16 %v1113, %v1111
    %v1184 = vpack.c.bf16 %v1116, %v1114
    %v1185 = vpack.c.bf16 %v1117, %v1115
    %v1186 = vpack.c.bf16 %v1120, %v1118
    %v1187 = vpack.c.bf16 %v1121, %v1119
    %v1188 = vpack.c.bf16 %v1124, %v1122
    %v1189 = vpack.c.bf16 %v1125, %v1123
    %s1190 = smul.u32 4, 66
    %s1191 = smul.u32 %s1190, 5
    %s1192 = sshll.u32 %s1191, 4
    %1193 = dma.done [#allocation4], %s1192
    %v1194 = vld [vmem:[#allocation2] sm:$0xff]
    %v1195 = vld [vmem:[#allocation2 + $0x8] sm:$0xff]
    %v1196 = vld [vmem:[#allocation2 + $0x10] sm:$0xff]
    %v1197 = vld [vmem:[#allocation2 + $0x18] sm:$0xff]
    %v1198 = vld [vmem:[#allocation2 + $0x20] sm:$0xff]
    %v1199 = vld [vmem:[#allocation2 + $0x28] sm:$0xff]
    %v1200 = vld [vmem:[#allocation2 + $0x30] sm:$0xff]
    %v1201 = vld [vmem:[#allocation2 + $0x38] sm:$0xff]
    %v1202 = vld [vmem:[#allocation2 + $0x40] sm:$0xff]
    %v1203 = vld [vmem:[#allocation2 + $0x48] sm:$0xff]
    %v1204 = vld [vmem:[#allocation2 + $0x50] sm:$0xff]
    %v1205 = vld [vmem:[#allocation2 + $0x58] sm:$0xff]
    %v1206 = vld [vmem:[#allocation2 + $0x60] sm:$0xff]
    %v1207 = vld [vmem:[#allocation2 + $0x68] sm:$0xff]
    %v1208 = vld [vmem:[#allocation2 + $0x70] sm:$0xff]
    %v1209 = vld [vmem:[#allocation2 + $0x78] sm:$0xff]
    %v1210 = vld [vmem:[#allocation2 + $0x80] sm:$0xff]
    %v1211 = vld [vmem:[#allocation2 + $0x88] sm:$0xff]
    %v1212 = vld [vmem:[#allocation2 + $0x90] sm:$0xff]
    %v1213 = vld [vmem:[#allocation2 + $0x98] sm:$0xff]
    %v1214 = vld [vmem:[#allocation2 + $0xa0] sm:$0xff]
    %v1215 = vld [vmem:[#allocation2 + $0xa8] sm:$0xff]
    %v1216 = vld [vmem:[#allocation2 + $0xb0] sm:$0xff]
    %v1217 = vld [vmem:[#allocation2 + $0xb8] sm:$0xff]
    %v1218 = vld [vmem:[#allocation2 + $0xc0] sm:$0xff]
    %v1219 = vld [vmem:[#allocation2 + $0xc8] sm:$0xff]
    %v1220 = vld [vmem:[#allocation2 + $0xd0] sm:$0xff]
    %v1221 = vld [vmem:[#allocation2 + $0xd8] sm:$0xff]
    %v1222 = vld [vmem:[#allocation2 + $0xe0] sm:$0xff]
    %v1223 = vld [vmem:[#allocation2 + $0xe8] sm:$0xff]
    %v1224 = vld [vmem:[#allocation2 + $0xf0] sm:$0xff]
    %v1225 = vld [vmem:[#allocation2 + $0xf8] sm:$0xff]
    %v1226 = vld [vmem:[#allocation2 + $0x100] sm:$0xff]
    %v1227 = vld [vmem:[#allocation2 + $0x108] sm:$0xff]
    %v1228 = vld [vmem:[#allocation2 + $0x110] sm:$0xff]
    %v1229 = vld [vmem:[#allocation2 + $0x118] sm:$0xff]
    %v1230 = vld [vmem:[#allocation2 + $0x120] sm:$0xff]
    %v1231 = vld [vmem:[#allocation2 + $0x128] sm:$0xff]
    %v1232 = vld [vmem:[#allocation2 + $0x130] sm:$0xff]
    %v1233 = vld [vmem:[#allocation2 + $0x138] sm:$0xff]
    %v1234 = vld [vmem:[#allocation2 + $0x140] sm:$0xff]
    %v1235 = vld [vmem:[#allocation2 + $0x148] sm:$0xff]
    %v1236 = vld [vmem:[#allocation2 + $0x150] sm:$0xff]
    %v1237 = vld [vmem:[#allocation2 + $0x158] sm:$0xff]
    %v1238 = vld [vmem:[#allocation2 + $0x160] sm:$0xff]
    %v1239 = vld [vmem:[#allocation2 + $0x168] sm:$0xff]
    %v1240 = vld [vmem:[#allocation2 + $0x170] sm:$0xff]
    %v1241 = vld [vmem:[#allocation2 + $0x178] sm:$0xff]
    %v1242 = vld [vmem:[#allocation2 + $0x180] sm:$0xff]
    %v1243 = vld [vmem:[#allocation2 + $0x188] sm:$0xff]
    %v1244 = vld [vmem:[#allocation2 + $0x190] sm:$0xff]
    %v1245 = vld [vmem:[#allocation2 + $0x198] sm:$0xff]
    %v1246 = vld [vmem:[#allocation2 + $0x1a0] sm:$0xff]
    %v1247 = vld [vmem:[#allocation2 + $0x1a8] sm:$0xff]
    %v1248 = vld [vmem:[#allocation2 + $0x1b0] sm:$0xff]
    %v1249 = vld [vmem:[#allocation2 + $0x1b8] sm:$0xff]
    %v1250 = vld [vmem:[#allocation2 + $0x1c0] sm:$0xff]
    %v1251 = vld [vmem:[#allocation2 + $0x1c8] sm:$0xff]
    %v1252 = vld [vmem:[#allocation2 + $0x1d0] sm:$0xff]
    %v1253 = vld [vmem:[#allocation2 + $0x1d8] sm:$0xff]
    %v1254 = vld [vmem:[#allocation2 + $0x1e0] sm:$0xff]
    %v1255 = vld [vmem:[#allocation2 + $0x1e8] sm:$0xff]
    %v1256 = vld [vmem:[#allocation2 + $0x1f0] sm:$0xff]
    %v1257 = vld [vmem:[#allocation2 + $0x1f8] sm:$0xff]
    %v1258 = vld [vmem:[#allocation2 + $0x200] sm:$0xff]
    %v1259 = vld [vmem:[#allocation2 + $0x208] sm:$0xff]
    %v1260 = vld [vmem:[#allocation2 + $0x210] sm:$0xff]
    %v1261 = vld [vmem:[#allocation2 + $0x218] sm:$0xff]
    %v1262 = vld [vmem:[#allocation2 + $0x220] sm:$0xff]
    %v1263 = vld [vmem:[#allocation2 + $0x228] sm:$0xff]
    %v1264 = vld [vmem:[#allocation2 + $0x230] sm:$0xff]
    %v1265 = vld [vmem:[#allocation2 + $0x238] sm:$0xff]
    %v1266 = vld [vmem:[#allocation2 + $0x240] sm:$0xff]
    %v1267 = vld [vmem:[#allocation2 + $0x248] sm:$0xff]
    %v1268 = vld [vmem:[#allocation2 + $0x250] sm:$0xff]
    %v1269 = vld [vmem:[#allocation2 + $0x258] sm:$0xff]
    %v1270 = vld [vmem:[#allocation2 + $0x260] sm:$0xff]
    %v1271 = vld [vmem:[#allocation2 + $0x268] sm:$0xff]
    %v1272 = vld [vmem:[#allocation2 + $0x270] sm:$0xff]
    %v1273 = vld [vmem:[#allocation2 + $0x278] sm:$0xff]
    %v1274 = vld [vmem:[#allocation2 + $0x280] sm:$0xff]
    %v1275 = vld [vmem:[#allocation2 + $0x288] sm:$0xff]
    %v1276 = vld [vmem:[#allocation2 + $0x290] sm:$0xff]
    %v1277 = vld [vmem:[#allocation2 + $0x298] sm:$0xff]
    %v1278 = vld [vmem:[#allocation2 + $0x2a0] sm:$0xff]
    %v1279 = vld [vmem:[#allocation2 + $0x2a8] sm:$0xff]
    %v1280 = vld [vmem:[#allocation2 + $0x2b0] sm:$0xff]
    %v1281 = vld [vmem:[#allocation2 + $0x2b8] sm:$0xff]
    %v1282 = vld [vmem:[#allocation2 + $0x2c0] sm:$0xff]
    %v1283 = vld [vmem:[#allocation2 + $0x2c8] sm:$0xff]
    %v1284 = vld [vmem:[#allocation2 + $0x2d0] sm:$0xff]
    %v1285 = vld [vmem:[#allocation2 + $0x2d8] sm:$0xff]
    %v1286 = vld [vmem:[#allocation2 + $0x2e0] sm:$0xff]
    %v1287 = vld [vmem:[#allocation2 + $0x2e8] sm:$0xff]
    %v1288 = vld [vmem:[#allocation2 + $0x2f0] sm:$0xff]
    %v1289 = vld [vmem:[#allocation2 + $0x2f8] sm:$0xff]
    %v1290 = vld [vmem:[#allocation2 + $0x300] sm:$0xff]
    %v1291 = vld [vmem:[#allocation2 + $0x308] sm:$0xff]
    %v1292 = vld [vmem:[#allocation2 + $0x310] sm:$0xff]
    %v1293 = vld [vmem:[#allocation2 + $0x318] sm:$0xff]
    %v1294 = vld [vmem:[#allocation2 + $0x320] sm:$0xff]
    %v1295 = vld [vmem:[#allocation2 + $0x328] sm:$0xff]
    %v1296 = vld [vmem:[#allocation2 + $0x330] sm:$0xff]
    %v1297 = vld [vmem:[#allocation2 + $0x338] sm:$0xff]
    %v1298 = vld [vmem:[#allocation2 + $0x340] sm:$0xff]
    %v1299 = vld [vmem:[#allocation2 + $0x348] sm:$0xff]
    %v1300 = vld [vmem:[#allocation2 + $0x350] sm:$0xff]
    %v1301 = vld [vmem:[#allocation2 + $0x358] sm:$0xff]
    %v1302 = vld [vmem:[#allocation2 + $0x360] sm:$0xff]
    %v1303 = vld [vmem:[#allocation2 + $0x368] sm:$0xff]
    %v1304 = vld [vmem:[#allocation2 + $0x370] sm:$0xff]
    %v1305 = vld [vmem:[#allocation2 + $0x378] sm:$0xff]
    %v1306 = vld [vmem:[#allocation2 + $0x380] sm:$0xff]
    %v1307 = vld [vmem:[#allocation2 + $0x388] sm:$0xff]
    %v1308 = vld [vmem:[#allocation2 + $0x390] sm:$0xff]
    %v1309 = vld [vmem:[#allocation2 + $0x398] sm:$0xff]
    %v1310 = vld [vmem:[#allocation2 + $0x3a0] sm:$0xff]
    %v1311 = vld [vmem:[#allocation2 + $0x3a8] sm:$0xff]
    %v1312 = vld [vmem:[#allocation2 + $0x3b0] sm:$0xff]
    %v1313 = vld [vmem:[#allocation2 + $0x3b8] sm:$0xff]
    %v1314 = vld [vmem:[#allocation2 + $0x3c0] sm:$0xff]
    %v1315 = vld [vmem:[#allocation2 + $0x3c8] sm:$0xff]
    %v1316 = vld [vmem:[#allocation2 + $0x3d0] sm:$0xff]
    %v1317 = vld [vmem:[#allocation2 + $0x3d8] sm:$0xff]
    %v1318 = vld [vmem:[#allocation2 + $0x3e0] sm:$0xff]
    %v1319 = vld [vmem:[#allocation2 + $0x3e8] sm:$0xff]
    %v1320 = vld [vmem:[#allocation2 + $0x3f0] sm:$0xff]
    %v1321 = vld [vmem:[#allocation2 + $0x3f8] sm:$0xff]
    %v1322 = vld [vmem:[#allocation2 + $0x400] sm:$0xff]
    %v1323 = vld [vmem:[#allocation2 + $0x408] sm:$0xff]
    %v1324 = vld [vmem:[#allocation2 + $0x410] sm:$0xff]
    %v1325 = vld [vmem:[#allocation2 + $0x418] sm:$0xff]
    %v1326 = vld [vmem:[#allocation2 + $0x420] sm:$0xff]
    %v1327 = vld [vmem:[#allocation2 + $0x428] sm:$0xff]
    %v1328 = vld [vmem:[#allocation2 + $0x430] sm:$0xff]
    %v1329 = vld [vmem:[#allocation2 + $0x438] sm:$0xff]
    %v1330 = vld [vmem:[#allocation2 + $0x440] sm:$0xff]
    %v1331 = vld [vmem:[#allocation2 + $0x448] sm:$0xff]
    %v1332 = vld [vmem:[#allocation2 + $0x450] sm:$0xff]
    %v1333 = vld [vmem:[#allocation2 + $0x458] sm:$0xff]
    %v1334 = vld [vmem:[#allocation2 + $0x460] sm:$0xff]
    %v1335 = vld [vmem:[#allocation2 + $0x468] sm:$0xff]
    %v1336 = vld [vmem:[#allocation2 + $0x470] sm:$0xff]
    %v1337 = vld [vmem:[#allocation2 + $0x478] sm:$0xff]
    %v1338 = vld [vmem:[#allocation2 + $0x480] sm:$0xff]
    %v1339 = vld [vmem:[#allocation2 + $0x488] sm:$0xff]
    %v1340 = vld [vmem:[#allocation2 + $0x490] sm:$0xff]
    %v1341 = vld [vmem:[#allocation2 + $0x498] sm:$0xff]
    %v1342 = vld [vmem:[#allocation2 + $0x4a0] sm:$0xff]
    %v1343 = vld [vmem:[#allocation2 + $0x4a8] sm:$0xff]
    %v1344 = vld [vmem:[#allocation2 + $0x4b0] sm:$0xff]
    %v1345 = vld [vmem:[#allocation2 + $0x4b8] sm:$0xff]
    %v1346 = vld [vmem:[#allocation2 + $0x4c0] sm:$0xff]
    %v1347 = vld [vmem:[#allocation2 + $0x4c8] sm:$0xff]
    %v1348 = vld [vmem:[#allocation2 + $0x4d0] sm:$0xff]
    %v1349 = vld [vmem:[#allocation2 + $0x4d8] sm:$0xff]
    %v1350 = vld [vmem:[#allocation2 + $0x4e0] sm:$0xff]
    %v1351 = vld [vmem:[#allocation2 + $0x4e8] sm:$0xff]
    %v1352 = vld [vmem:[#allocation2 + $0x4f0] sm:$0xff]
    %v1353 = vld [vmem:[#allocation2 + $0x4f8] sm:$0xff]
    %v1355 = vsel %vm548, %v1198, 0
    %v1358 = vsel %vm548, %v1203, 0
    %v1361 = vsel %vm548, %v1208, 0
    %v1364 = vsel %vm548, %v1213, 0
    %v1367 = vsel %vm548, %v1218, 0
    %v1370 = vsel %vm548, %v1223, 0
    %v1373 = vsel %vm548, %v1228, 0
    %v1376 = vsel %vm548, %v1233, 0
    %v1379 = vsel %vm548, %v1238, 0
    %v1382 = vsel %vm548, %v1243, 0
    %v1385 = vsel %vm548, %v1248, 0
    %v1388 = vsel %vm548, %v1253, 0
    %v1391 = vsel %vm548, %v1258, 0
    %v1394 = vsel %vm548, %v1263, 0
    %v1397 = vsel %vm548, %v1268, 0
    %v1400 = vsel %vm548, %v1273, 0
    %v1403 = vsel %vm548, %v1278, 0
    %v1406 = vsel %vm548, %v1283, 0
    %v1409 = vsel %vm548, %v1288, 0
    %v1412 = vsel %vm548, %v1293, 0
    %v1415 = vsel %vm548, %v1298, 0
    %v1418 = vsel %vm548, %v1303, 0
    %v1421 = vsel %vm548, %v1308, 0
    %v1424 = vsel %vm548, %v1313, 0
    %v1427 = vsel %vm548, %v1318, 0
    %v1430 = vsel %vm548, %v1323, 0
    %v1433 = vsel %vm548, %v1328, 0
    %v1436 = vsel %vm548, %v1333, 0
    %v1439 = vsel %vm548, %v1338, 0
    %v1442 = vsel %vm548, %v1343, 0
    %v1445 = vsel %vm548, %v1348, 0
    %v1448 = vsel %vm548, %v1353, 0
    %1450 = vmatprep.subr.bf16.mxu0 %v1127
    %1451 = vmatpush1.bf16.msra.mxu0 %v1126
    %1452 = vmatprep.subr.bf16.mxu0 %v1129
    %1453 = vmatpush1.bf16.msra.mxu0 %v1128
    %1454 = vmatprep.subr.bf16.mxu0 %v1131
    %1455 = vmatpush1.bf16.msra.mxu0 %v1130
    %1456 = vmatprep.subr.bf16.mxu0 %v1133
    %1457 = vmatpush1.bf16.msra.mxu0 %v1132
    %1458 = vmatprep.subr.bf16.mxu0 %v1135
    %1459 = vmatpush1.bf16.msra.mxu0 %v1134
    %1460 = vmatprep.subr.bf16.mxu0 %v1137
    %1461 = vmatpush1.bf16.msra.mxu0 %v1136
    %1462 = vmatprep.subr.bf16.mxu0 %v1139
    %1463 = vmatpush1.bf16.msra.mxu0 %v1138
    %1464 = vmatprep.subr.bf16.mxu0 %v1141
    %1465 = vmatpush1.bf16.msra.mxu0 %v1140
    %1466 = vmatprep.subr.bf16.mxu0 %v1143
    %1467 = vmatpush1.bf16.msra.mxu0 %v1142
    %1468 = vmatprep.subr.bf16.mxu0 %v1145
    %1469 = vmatpush1.bf16.msra.mxu0 %v1144
    %1470 = vmatprep.subr.bf16.mxu0 %v1147
    %1471 = vmatpush1.bf16.msra.mxu0 %v1146
    %1472 = vmatprep.subr.bf16.mxu0 %v1149
    %1473 = vmatpush1.bf16.msra.mxu0 %v1148
    %1474 = vmatprep.subr.bf16.mxu0 %v1151
    %1475 = vmatpush1.bf16.msra.mxu0 %v1150
    %1476 = vmatprep.subr.bf16.mxu0 %v1153
    %1477 = vmatpush1.bf16.msra.mxu0 %v1152
    %1478 = vmatprep.subr.bf16.mxu0 %v1155
    %1479 = vmatpush1.bf16.msra.mxu0 %v1154
    %1480 = vmatprep.subr.bf16.mxu0 %v1157
    %1481 = vmatpush1.bf16.msra.mxu0 %v1156
    %1482 = vmatprep.mubr.bf16.mxu0 %v1195
    %1483 = vmatmul.mubr.bf16.gmra.mrb[0].mxu0 %v1194
    %v1484 = vpop.f32.mrb[0].mxu0
    %v1485 = vadd.f32 0.0, %v1484
    %v1486 = vpop.f32.mrb[0].mxu0
    %v1487 = vadd.f32 0.0, %v1486
    %v1488 = vpop.f32.mrb[0].mxu0
    %v1489 = vadd.f32 0.0, %v1488
    %v1490 = vpop.f32.mrb[0].mxu0
    %v1491 = vadd.f32 0.0, %v1490
    %1492 = vmatprep.mubr.bf16.mxu0 %v1200
    %1493 = vmatmul.mubr.bf16.gmra.mrb[0].mxu0 %v1199
    %v1494 = vpop.f32.mrb[0].mxu0
    %v1495 = vadd.f32 0.0, %v1494
    %v1496 = vpop.f32.mrb[0].mxu0
    %v1497 = vadd.f32 0.0, %v1496
    %v1498 = vpop.f32.mrb[0].mxu0
    %v1499 = vadd.f32 0.0, %v1498
    %v1500 = vpop.f32.mrb[0].mxu0
    %v1501 = vadd.f32 0.0, %v1500
    %1502 = vmatprep.mubr.bf16.mxu0 %v1205
    %1503 = vmatmul.mubr.bf16.gmra.mrb[0].mxu0 %v1204
    %v1504 = vpop.f32.mrb[0].mxu0
    %v1505 = vadd.f32 0.0, %v1504
    %v1506 = vpop.f32.mrb[0].mxu0
    %v1507 = vadd.f32 0.0, %v1506
    %v1508 = vpop.f32.mrb[0].mxu0
    %v1509 = vadd.f32 0.0, %v1508
    %v1510 = vpop.f32.mrb[0].mxu0
    %v1511 = vadd.f32 0.0, %v1510
    %1512 = vmatprep.mubr.bf16.mxu0 %v1210
    %1513 = vmatmul.mubr.bf16.gmra.mrb[0].mxu0 %v1209
    %v1514 = vpop.f32.mrb[0].mxu0
    %v1515 = vadd.f32 0.0, %v1514
    %v1516 = vpop.f32.mrb[0].mxu0
    %v1517 = vadd.f32 0.0, %v1516
    %v1518 = vpop.f32.mrb[0].mxu0
    %v1519 = vadd.f32 0.0, %v1518
    %v1520 = vpop.f32.mrb[0].mxu0
    %v1521 = vadd.f32 0.0, %v1520
    %1522 = vmatprep.mubr.bf16.mxu0 %v1215
    %1523 = vmatmul.mubr.bf16.gmra.mrb[0].mxu0 %v1214
    %v1524 = vpop.f32.mrb[0].mxu0
    %v1525 = vadd.f32 0.0, %v1524
    %v1526 = vpop.f32.mrb[0].mxu0
    %v1527 = vadd.f32 0.0, %v1526
    %v1528 = vpop.f32.mrb[0].mxu0
    %v1529 = vadd.f32 0.0, %v1528
    %v1530 = vpop.f32.mrb[0].mxu0
    %v1531 = vadd.f32 0.0, %v1530
    %1532 = vmatprep.mubr.bf16.mxu0 %v1220
    %1533 = vmatmul.mubr.bf16.gmra.mrb[0].mxu0 %v1219
    %v1534 = vpop.f32.mrb[0].mxu0
    %v1535 = vadd.f32 0.0, %v1534
    %v1536 = vpop.f32.mrb[0].mxu0
    %v1537 = vadd.f32 0.0, %v1536
    %v1538 = vpop.f32.mrb[0].mxu0
    %v1539 = vadd.f32 0.0, %v1538
    %v1540 = vpop.f32.mrb[0].mxu0
    %v1541 = vadd.f32 0.0, %v1540
    %1542 = vmatprep.mubr.bf16.mxu0 %v1225
    %1543 = vmatmul.mubr.bf16.gmra.mrb[0].mxu0 %v1224
    %v1544 = vpop.f32.mrb[0].mxu0
    %v1545 = vadd.f32 0.0, %v1544
    %v1546 = vpop.f32.mrb[0].mxu0
    %v1547 = vadd.f32 0.0, %v1546
    %v1548 = vpop.f32.mrb[0].mxu0
    %v1549 = vadd.f32 0.0, %v1548
    %v1550 = vpop.f32.mrb[0].mxu0
    %v1551 = vadd.f32 0.0, %v1550
    %1552 = vmatprep.mubr.bf16.mxu0 %v1230
    %1553 = vmatmul.mubr.bf16.gmra.mrb[0].mxu0 %v1229
    %v1554 = vpop.f32.mrb[0].mxu0
    %v1555 = vadd.f32 0.0, %v1554
    %v1556 = vpop.f32.mrb[0].mxu0
    %v1557 = vadd.f32 0.0, %v1556
    %v1558 = vpop.f32.mrb[0].mxu0
    %v1559 = vadd.f32 0.0, %v1558
    %v1560 = vpop.f32.mrb[0].mxu0
    %v1561 = vadd.f32 0.0, %v1560
    %1562 = vmatprep.mubr.bf16.mxu0 %v1235
    %1563 = vmatmul.mubr.bf16.gmra.mrb[0].mxu0 %v1234
    %v1564 = vpop.f32.mrb[0].mxu0
    %v1565 = vadd.f32 0.0, %v1564
    %v1566 = vpop.f32.mrb[0].mxu0
    %v1567 = vadd.f32 0.0, %v1566
    %v1568 = vpop.f32.mrb[0].mxu0
    %v1569 = vadd.f32 0.0, %v1568
    %v1570 = vpop.f32.mrb[0].mxu0
    %v1571 = vadd.f32 0.0, %v1570
    %1572 = vmatprep.mubr.bf16.mxu0 %v1240
    %1573 = vmatmul.mubr.bf16.gmra.mrb[0].mxu0 %v1239
    %v1574 = vpop.f32.mrb[0].mxu0
    %v1575 = vadd.f32 0.0, %v1574
    %v1576 = vpop.f32.mrb[0].mxu0
    %v1577 = vadd.f32 0.0, %v1576
    %v1578 = vpop.f32.mrb[0].mxu0
    %v1579 = vadd.f32 0.0, %v1578
    %v1580 = vpop.f32.mrb[0].mxu0
    %v1581 = vadd.f32 0.0, %v1580
    %1582 = vmatprep.mubr.bf16.mxu0 %v1245
    %1583 = vmatmul.mubr.bf16.gmra.mrb[0].mxu0 %v1244
    %v1584 = vpop.f32.mrb[0].mxu0
    %v1585 = vadd.f32 0.0, %v1584
    %v1586 = vpop.f32.mrb[0].mxu0
    %v1587 = vadd.f32 0.0, %v1586
    %v1588 = vpop.f32.mrb[0].mxu0
    %v1589 = vadd.f32 0.0, %v1588
    %v1590 = vpop.f32.mrb[0].mxu0
    %v1591 = vadd.f32 0.0, %v1590
    %1592 = vmatprep.mubr.bf16.mxu0 %v1250
    %1593 = vmatmul.mubr.bf16.gmra.mrb[0].mxu0 %v1249
    %v1594 = vpop.f32.mrb[0].mxu0
    %v1595 = vadd.f32 0.0, %v1594
    %v1596 = vpop.f32.mrb[0].mxu0
    %v1597 = vadd.f32 0.0, %v1596
    %v1598 = vpop.f32.mrb[0].mxu0
    %v1599 = vadd.f32 0.0, %v1598
    %v1600 = vpop.f32.mrb[0].mxu0
    %v1601 = vadd.f32 0.0, %v1600
    %1602 = vmatprep.mubr.bf16.mxu0 %v1255
    %1603 = vmatmul.mubr.bf16.gmra.mrb[0].mxu0 %v1254
    %v1604 = vpop.f32.mrb[0].mxu0
    %v1605 = vadd.f32 0.0, %v1604
    %v1606 = vpop.f32.mrb[0].mxu0
    %v1607 = vadd.f32 0.0, %v1606
    %v1608 = vpop.f32.mrb[0].mxu0
    %v1609 = vadd.f32 0.0, %v1608
    %v1610 = vpop.f32.mrb[0].mxu0
    %v1611 = vadd.f32 0.0, %v1610
    %1612 = vmatprep.mubr.bf16.mxu0 %v1260
    %1613 = vmatmul.mubr.bf16.gmra.mrb[0].mxu0 %v1259
    %v1614 = vpop.f32.mrb[0].mxu0
    %v1615 = vadd.f32 0.0, %v1614
    %v1616 = vpop.f32.mrb[0].mxu0
    %v1617 = vadd.f32 0.0, %v1616
    %v1618 = vpop.f32.mrb[0].mxu0
    %v1619 = vadd.f32 0.0, %v1618
    %v1620 = vpop.f32.mrb[0].mxu0
    %v1621 = vadd.f32 0.0, %v1620
    %1622 = vmatprep.mubr.bf16.mxu0 %v1265
    %1623 = vmatmul.mubr.bf16.gmra.mrb[0].mxu0 %v1264
    %v1624 = vpop.f32.mrb[0].mxu0
    %v1625 = vadd.f32 0.0, %v1624
    %v1626 = vpop.f32.mrb[0].mxu0
    %v1627 = vadd.f32 0.0, %v1626
    %v1628 = vpop.f32.mrb[0].mxu0
    %v1629 = vadd.f32 0.0, %v1628
    %v1630 = vpop.f32.mrb[0].mxu0
    %v1631 = vadd.f32 0.0, %v1630
    %1632 = vmatprep.mubr.bf16.mxu0 %v1270
    %1633 = vmatmul.mubr.bf16.gmra.mrb[0].mxu0 %v1269
    %v1634 = vpop.f32.mrb[0].mxu0
    %v1635 = vadd.f32 0.0, %v1634
    %v1636 = vpop.f32.mrb[0].mxu0
    %v1637 = vadd.f32 0.0, %v1636
    %v1638 = vpop.f32.mrb[0].mxu0
    %v1639 = vadd.f32 0.0, %v1638
    %v1640 = vpop.f32.mrb[0].mxu0
    %v1641 = vadd.f32 0.0, %v1640
    %1642 = vmatprep.mubr.bf16.mxu0 %v1275
    %1643 = vmatmul.mubr.bf16.gmra.mrb[0].mxu0 %v1274
    %v1644 = vpop.f32.mrb[0].mxu0
    %v1645 = vadd.f32 0.0, %v1644
    %v1646 = vpop.f32.mrb[0].mxu0
    %v1647 = vadd.f32 0.0, %v1646
    %v1648 = vpop.f32.mrb[0].mxu0
    %v1649 = vadd.f32 0.0, %v1648
    %v1650 = vpop.f32.mrb[0].mxu0
    %v1651 = vadd.f32 0.0, %v1650
    %1652 = vmatprep.mubr.bf16.mxu0 %v1280
    %1653 = vmatmul.mubr.bf16.gmra.mrb[0].mxu0 %v1279
    %v1654 = vpop.f32.mrb[0].mxu0
    %v1655 = vadd.f32 0.0, %v1654
    %v1656 = vpop.f32.mrb[0].mxu0
    %v1657 = vadd.f32 0.0, %v1656
    %v1658 = vpop.f32.mrb[0].mxu0
    %v1659 = vadd.f32 0.0, %v1658
    %v1660 = vpop.f32.mrb[0].mxu0
    %v1661 = vadd.f32 0.0, %v1660
    %1662 = vmatprep.mubr.bf16.mxu0 %v1285
    %1663 = vmatmul.mubr.bf16.gmra.mrb[0].mxu0 %v1284
    %v1664 = vpop.f32.mrb[0].mxu0
    %v1665 = vadd.f32 0.0, %v1664
    %v1666 = vpop.f32.mrb[0].mxu0
    %v1667 = vadd.f32 0.0, %v1666
    %v1668 = vpop.f32.mrb[0].mxu0
    %v1669 = vadd.f32 0.0, %v1668
    %v1670 = vpop.f32.mrb[0].mxu0
    %v1671 = vadd.f32 0.0, %v1670
    %1672 = vmatprep.mubr.bf16.mxu0 %v1290
    %1673 = vmatmul.mubr.bf16.gmra.mrb[0].mxu0 %v1289
    %v1674 = vpop.f32.mrb[0].mxu0
    %v1675 = vadd.f32 0.0, %v1674
    %v1676 = vpop.f32.mrb[0].mxu0
    %v1677 = vadd.f32 0.0, %v1676
    %v1678 = vpop.f32.mrb[0].mxu0
    %v1679 = vadd.f32 0.0, %v1678
    %v1680 = vpop.f32.mrb[0].mxu0
    %v1681 = vadd.f32 0.0, %v1680
    %1682 = vmatprep.mubr.bf16.mxu0 %v1295
    %1683 = vmatmul.mubr.bf16.gmra.mrb[0].mxu0 %v1294
    %v1684 = vpop.f32.mrb[0].mxu0
    %v1685 = vadd.f32 0.0, %v1684
    %v1686 = vpop.f32.mrb[0].mxu0
    %v1687 = vadd.f32 0.0, %v1686
    %v1688 = vpop.f32.mrb[0].mxu0
    %v1689 = vadd.f32 0.0, %v1688
    %v1690 = vpop.f32.mrb[0].mxu0
    %v1691 = vadd.f32 0.0, %v1690
    %1692 = vmatprep.mubr.bf16.mxu0 %v1300
    %1693 = vmatmul.mubr.bf16.gmra.mrb[0].mxu0 %v1299
    %v1694 = vpop.f32.mrb[0].mxu0
    %v1695 = vadd.f32 0.0, %v1694
    %v1696 = vpop.f32.mrb[0].mxu0
    %v1697 = vadd.f32 0.0, %v1696
    %v1698 = vpop.f32.mrb[0].mxu0
    %v1699 = vadd.f32 0.0, %v1698
    %v1700 = vpop.f32.mrb[0].mxu0
    %v1701 = vadd.f32 0.0, %v1700
    %1702 = vmatprep.mubr.bf16.mxu0 %v1305
    %1703 = vmatmul.mubr.bf16.gmra.mrb[0].mxu0 %v1304
    %v1704 = vpop.f32.mrb[0].mxu0
    %v1705 = vadd.f32 0.0, %v1704
    %v1706 = vpop.f32.mrb[0].mxu0
    %v1707 = vadd.f32 0.0, %v1706
    %v1708 = vpop.f32.mrb[0].mxu0
    %v1709 = vadd.f32 0.0, %v1708
    %v1710 = vpop.f32.mrb[0].mxu0
    %v1711 = vadd.f32 0.0, %v1710
    %1712 = vmatprep.mubr.bf16.mxu0 %v1310
    %1713 = vmatmul.mubr.bf16.gmra.mrb[0].mxu0 %v1309
    %v1714 = vpop.f32.mrb[0].mxu0
    %v1715 = vadd.f32 0.0, %v1714
    %v1716 = vpop.f32.mrb[0].mxu0
    %v1717 = vadd.f32 0.0, %v1716
    %v1718 = vpop.f32.mrb[0].mxu0
    %v1719 = vadd.f32 0.0, %v1718
    %v1720 = vpop.f32.mrb[0].mxu0
    %v1721 = vadd.f32 0.0, %v1720
    %1722 = vmatprep.mubr.bf16.mxu0 %v1315
    %1723 = vmatmul.mubr.bf16.gmra.mrb[0].mxu0 %v1314
    %v1724 = vpop.f32.mrb[0].mxu0
    %v1725 = vadd.f32 0.0, %v1724
    %v1726 = vpop.f32.mrb[0].mxu0
    %v1727 = vadd.f32 0.0, %v1726
    %v1728 = vpop.f32.mrb[0].mxu0
    %v1729 = vadd.f32 0.0, %v1728
    %v1730 = vpop.f32.mrb[0].mxu0
    %v1731 = vadd.f32 0.0, %v1730
    %1732 = vmatprep.mubr.bf16.mxu0 %v1320
    %1733 = vmatmul.mubr.bf16.gmra.mrb[0].mxu0 %v1319
    %v1734 = vpop.f32.mrb[0].mxu0
    %v1735 = vadd.f32 0.0, %v1734
    %v1736 = vpop.f32.mrb[0].mxu0
    %v1737 = vadd.f32 0.0, %v1736
    %v1738 = vpop.f32.mrb[0].mxu0
    %v1739 = vadd.f32 0.0, %v1738
    %v1740 = vpop.f32.mrb[0].mxu0
    %v1741 = vadd.f32 0.0, %v1740
    %1742 = vmatprep.mubr.bf16.mxu0 %v1325
    %1743 = vmatmul.mubr.bf16.gmra.mrb[0].mxu0 %v1324
    %v1744 = vpop.f32.mrb[0].mxu0
    %v1745 = vadd.f32 0.0, %v1744
    %v1746 = vpop.f32.mrb[0].mxu0
    %v1747 = vadd.f32 0.0, %v1746
    %v1748 = vpop.f32.mrb[0].mxu0
    %v1749 = vadd.f32 0.0, %v1748
    %v1750 = vpop.f32.mrb[0].mxu0
    %v1751 = vadd.f32 0.0, %v1750
    %1752 = vmatprep.mubr.bf16.mxu0 %v1330
    %1753 = vmatmul.mubr.bf16.gmra.mrb[0].mxu0 %v1329
    %v1754 = vpop.f32.mrb[0].mxu0
    %v1755 = vadd.f32 0.0, %v1754
    %v1756 = vpop.f32.mrb[0].mxu0
    %v1757 = vadd.f32 0.0, %v1756
    %v1758 = vpop.f32.mrb[0].mxu0
    %v1759 = vadd.f32 0.0, %v1758
    %v1760 = vpop.f32.mrb[0].mxu0
    %v1761 = vadd.f32 0.0, %v1760
    %1762 = vmatprep.mubr.bf16.mxu0 %v1335
    %1763 = vmatmul.mubr.bf16.gmra.mrb[0].mxu0 %v1334
    %v1764 = vpop.f32.mrb[0].mxu0
    %v1765 = vadd.f32 0.0, %v1764
    %v1766 = vpop.f32.mrb[0].mxu0
    %v1767 = vadd.f32 0.0, %v1766
    %v1768 = vpop.f32.mrb[0].mxu0
    %v1769 = vadd.f32 0.0, %v1768
    %v1770 = vpop.f32.mrb[0].mxu0
    %v1771 = vadd.f32 0.0, %v1770
    %1772 = vmatprep.mubr.bf16.mxu0 %v1340
    %1773 = vmatmul.mubr.bf16.gmra.mrb[0].mxu0 %v1339
    %v1774 = vpop.f32.mrb[0].mxu0
    %v1775 = vadd.f32 0.0, %v1774
    %v1776 = vpop.f32.mrb[0].mxu0
    %v1777 = vadd.f32 0.0, %v1776
    %v1778 = vpop.f32.mrb[0].mxu0
    %v1779 = vadd.f32 0.0, %v1778
    %v1780 = vpop.f32.mrb[0].mxu0
    %v1781 = vadd.f32 0.0, %v1780
    %1782 = vmatprep.mubr.bf16.mxu0 %v1345
    %1783 = vmatmul.mubr.bf16.gmra.mrb[0].mxu0 %v1344
    %v1784 = vpop.f32.mrb[0].mxu0
    %v1785 = vadd.f32 0.0, %v1784
    %v1786 = vpop.f32.mrb[0].mxu0
    %v1787 = vadd.f32 0.0, %v1786
    %v1788 = vpop.f32.mrb[0].mxu0
    %v1789 = vadd.f32 0.0, %v1788
    %v1790 = vpop.f32.mrb[0].mxu0
    %v1791 = vadd.f32 0.0, %v1790
    %1792 = vmatprep.mubr.bf16.mxu0 %v1350
    %1793 = vmatmul.mubr.bf16.gmra.mrb[0].mxu0 %v1349
    %v1794 = vpop.f32.mrb[0].mxu0
    %v1795 = vadd.f32 0.0, %v1794
    %v1796 = vpop.f32.mrb[0].mxu0
    %v1797 = vadd.f32 0.0, %v1796
    %v1798 = vpop.f32.mrb[0].mxu0
    %v1799 = vadd.f32 0.0, %v1798
    %v1800 = vpop.f32.mrb[0].mxu0
    %v1801 = vadd.f32 0.0, %v1800
    %1802 = vdwg.mxu0
    %1803 = vmatprep.subr.bf16.mxu0 %v1159
    %1804 = vmatpush1.bf16.msra.mxu0 %v1158
    %1805 = vmatprep.subr.bf16.mxu0 %v1161
    %1806 = vmatpush1.bf16.msra.mxu0 %v1160
    %1807 = vmatprep.subr.bf16.mxu0 %v1163
    %1808 = vmatpush1.bf16.msra.mxu0 %v1162
    %1809 = vmatprep.subr.bf16.mxu0 %v1165
    %1810 = vmatpush1.bf16.msra.mxu0 %v1164
    %1811 = vmatprep.subr.bf16.mxu0 %v1167
    %1812 = vmatpush1.bf16.msra.mxu0 %v1166
    %1813 = vmatprep.subr.bf16.mxu0 %v1169
    %1814 = vmatpush1.bf16.msra.mxu0 %v1168
    %1815 = vmatprep.subr.bf16.mxu0 %v1171
    %1816 = vmatpush1.bf16.msra.mxu0 %v1170
    %1817 = vmatprep.subr.bf16.mxu0 %v1173
    %1818 = vmatpush1.bf16.msra.mxu0 %v1172
    %1819 = vmatprep.subr.bf16.mxu0 %v1175
    %1820 = vmatpush1.bf16.msra.mxu0 %v1174
    %1821 = vmatprep.subr.bf16.mxu0 %v1177
    %1822 = vmatpush1.bf16.msra.mxu0 %v1176
    %1823 = vmatprep.subr.bf16.mxu0 %v1179
    %1824 = vmatpush1.bf16.msra.mxu0 %v1178
    %1825 = vmatprep.subr.bf16.mxu0 %v1181
    %1826 = vmatpush1.bf16.msra.mxu0 %v1180
    %1827 = vmatprep.subr.bf16.mxu0 %v1183
    %1828 = vmatpush1.bf16.msra.mxu0 %v1182
    %1829 = vmatprep.subr.bf16.mxu0 %v1185
    %1830 = vmatpush1.bf16.msra.mxu0 %v1184
    %1831 = vmatprep.subr.bf16.mxu0 %v1187
    %1832 = vmatpush1.bf16.msra.mxu0 %v1186
    %1833 = vmatprep.subr.bf16.mxu0 %v1189
    %1834 = vmatpush1.bf16.msra.mxu0 %v1188
    %1835 = vmatprep.mubr.bf16.mxu0 %v1197
    %1836 = vmatmul.mubr.bf16.gmra.mrb[0].mxu0 %v1196
    %v1837 = vpop.f32.mrb[0].mxu0
    %v1838 = vadd.f32 %v1485, %v1837
    %v1839 = vpop.f32.mrb[0].mxu0
    %v1840 = vadd.f32 %v1487, %v1839
    %v1841 = vpop.f32.mrb[0].mxu0
    %v1842 = vadd.f32 %v1489, %v1841
    %v1843 = vpop.f32.mrb[0].mxu0
    %v1844 = vadd.f32 %v1491, %v1843
    %1845 = vmatprep.mubr.bf16.mxu0 %v1202
    %1846 = vmatmul.mubr.bf16.gmra.mrb[0].mxu0 %v1201
    %v1847 = vpop.f32.mrb[0].mxu0
    %v1848 = vadd.f32 %v1495, %v1847
    %v1849 = vpop.f32.mrb[0].mxu0
    %v1850 = vadd.f32 %v1497, %v1849
    %v1851 = vpop.f32.mrb[0].mxu0
    %v1852 = vadd.f32 %v1499, %v1851
    %v1853 = vpop.f32.mrb[0].mxu0
    %v1854 = vadd.f32 %v1501, %v1853
    %1855 = vmatprep.mubr.bf16.mxu0 %v1207
    %1856 = vmatmul.mubr.bf16.gmra.mrb[0].mxu0 %v1206
    %v1857 = vpop.f32.mrb[0].mxu0
    %v1858 = vadd.f32 %v1505, %v1857
    %v1859 = vpop.f32.mrb[0].mxu0
    %v1860 = vadd.f32 %v1507, %v1859
    %v1861 = vpop.f32.mrb[0].mxu0
    %v1862 = vadd.f32 %v1509, %v1861
    %v1863 = vpop.f32.mrb[0].mxu0
    %v1864 = vadd.f32 %v1511, %v1863
    %1865 = vmatprep.mubr.bf16.mxu0 %v1212
    %1866 = vmatmul.mubr.bf16.gmra.mrb[0].mxu0 %v1211
    %v1867 = vpop.f32.mrb[0].mxu0
    %v1868 = vadd.f32 %v1515, %v1867
    %v1869 = vpop.f32.mrb[0].mxu0
    %v1870 = vadd.f32 %v1517, %v1869
    %v1871 = vpop.f32.mrb[0].mxu0
    %v1872 = vadd.f32 %v1519, %v1871
    %v1873 = vpop.f32.mrb[0].mxu0
    %v1874 = vadd.f32 %v1521, %v1873
    %1875 = vmatprep.mubr.bf16.mxu0 %v1217
    %1876 = vmatmul.mubr.bf16.gmra.mrb[0].mxu0 %v1216
    %v1877 = vpop.f32.mrb[0].mxu0
    %v1878 = vadd.f32 %v1525, %v1877
    %v1879 = vpop.f32.mrb[0].mxu0
    %v1880 = vadd.f32 %v1527, %v1879
    %v1881 = vpop.f32.mrb[0].mxu0
    %v1882 = vadd.f32 %v1529, %v1881
    %v1883 = vpop.f32.mrb[0].mxu0
    %v1884 = vadd.f32 %v1531, %v1883
    %1885 = vmatprep.mubr.bf16.mxu0 %v1222
    %1886 = vmatmul.mubr.bf16.gmra.mrb[0].mxu0 %v1221
    %v1887 = vpop.f32.mrb[0].mxu0
    %v1888 = vadd.f32 %v1535, %v1887
    %v1889 = vpop.f32.mrb[0].mxu0
    %v1890 = vadd.f32 %v1537, %v1889
    %v1891 = vpop.f32.mrb[0].mxu0
    %v1892 = vadd.f32 %v1539, %v1891
    %v1893 = vpop.f32.mrb[0].mxu0
    %v1894 = vadd.f32 %v1541, %v1893
    %1895 = vmatprep.mubr.bf16.mxu0 %v1227
    %1896 = vmatmul.mubr.bf16.gmra.mrb[0].mxu0 %v1226
    %v1897 = vpop.f32.mrb[0].mxu0
    %v1898 = vadd.f32 %v1545, %v1897
    %v1899 = vpop.f32.mrb[0].mxu0
    %v1900 = vadd.f32 %v1547, %v1899
    %v1901 = vpop.f32.mrb[0].mxu0
    %v1902 = vadd.f32 %v1549, %v1901
    %v1903 = vpop.f32.mrb[0].mxu0
    %v1904 = vadd.f32 %v1551, %v1903
    %1905 = vmatprep.mubr.bf16.mxu0 %v1232
    %1906 = vmatmul.mubr.bf16.gmra.mrb[0].mxu0 %v1231
    %v1907 = vpop.f32.mrb[0].mxu0
    %v1908 = vadd.f32 %v1555, %v1907
    %v1909 = vpop.f32.mrb[0].mxu0
    %v1910 = vadd.f32 %v1557, %v1909
    %v1911 = vpop.f32.mrb[0].mxu0
    %v1912 = vadd.f32 %v1559, %v1911
    %v1913 = vpop.f32.mrb[0].mxu0
    %v1914 = vadd.f32 %v1561, %v1913
    %1915 = vmatprep.mubr.bf16.mxu0 %v1237
    %1916 = vmatmul.mubr.bf16.gmra.mrb[0].mxu0 %v1236
    %v1917 = vpop.f32.mrb[0].mxu0
    %v1918 = vadd.f32 %v1565, %v1917
    %v1919 = vpop.f32.mrb[0].mxu0
    %v1920 = vadd.f32 %v1567, %v1919
    %v1921 = vpop.f32.mrb[0].mxu0
    %v1922 = vadd.f32 %v1569, %v1921
    %v1923 = vpop.f32.mrb[0].mxu0
    %v1924 = vadd.f32 %v1571, %v1923
    %1925 = vmatprep.mubr.bf16.mxu0 %v1242
    %1926 = vmatmul.mubr.bf16.gmra.mrb[0].mxu0 %v1241
    %v1927 = vpop.f32.mrb[0].mxu0
    %v1928 = vadd.f32 %v1575, %v1927
    %v1929 = vpop.f32.mrb[0].mxu0
    %v1930 = vadd.f32 %v1577, %v1929
    %v1931 = vpop.f32.mrb[0].mxu0
    %v1932 = vadd.f32 %v1579, %v1931
    %v1933 = vpop.f32.mrb[0].mxu0
    %v1934 = vadd.f32 %v1581, %v1933
    %1935 = vmatprep.mubr.bf16.mxu0 %v1247
    %1936 = vmatmul.mubr.bf16.gmra.mrb[0].mxu0 %v1246
    %v1937 = vpop.f32.mrb[0].mxu0
    %v1938 = vadd.f32 %v1585, %v1937
    %v1939 = vpop.f32.mrb[0].mxu0
    %v1940 = vadd.f32 %v1587, %v1939
    %v1941 = vpop.f32.mrb[0].mxu0
    %v1942 = vadd.f32 %v1589, %v1941
    %v1943 = vpop.f32.mrb[0].mxu0
    %v1944 = vadd.f32 %v1591, %v1943
    %1945 = vmatprep.mubr.bf16.mxu0 %v1252
    %1946 = vmatmul.mubr.bf16.gmra.mrb[0].mxu0 %v1251
    %v1947 = vpop.f32.mrb[0].mxu0
    %v1948 = vadd.f32 %v1595, %v1947
    %v1949 = vpop.f32.mrb[0].mxu0
    %v1950 = vadd.f32 %v1597, %v1949
    %v1951 = vpop.f32.mrb[0].mxu0
    %v1952 = vadd.f32 %v1599, %v1951
    %v1953 = vpop.f32.mrb[0].mxu0
    %v1954 = vadd.f32 %v1601, %v1953
    %1955 = vmatprep.mubr.bf16.mxu0 %v1257
    %1956 = vmatmul.mubr.bf16.gmra.mrb[0].mxu0 %v1256
    %v1957 = vpop.f32.mrb[0].mxu0
    %v1958 = vadd.f32 %v1605, %v1957
    %v1959 = vpop.f32.mrb[0].mxu0
    %v1960 = vadd.f32 %v1607, %v1959
    %v1961 = vpop.f32.mrb[0].mxu0
    %v1962 = vadd.f32 %v1609, %v1961
    %v1963 = vpop.f32.mrb[0].mxu0
    %v1964 = vadd.f32 %v1611, %v1963
    %1965 = vmatprep.mubr.bf16.mxu0 %v1262
    %1966 = vmatmul.mubr.bf16.gmra.mrb[0].mxu0 %v1261
    %v1967 = vpop.f32.mrb[0].mxu0
    %v1968 = vadd.f32 %v1615, %v1967
    %v1969 = vpop.f32.mrb[0].mxu0
    %v1970 = vadd.f32 %v1617, %v1969
    %v1971 = vpop.f32.mrb[0].mxu0
    %v1972 = vadd.f32 %v1619, %v1971
    %v1973 = vpop.f32.mrb[0].mxu0
    %v1974 = vadd.f32 %v1621, %v1973
    %1975 = vmatprep.mubr.bf16.mxu0 %v1267
    %1976 = vmatmul.mubr.bf16.gmra.mrb[0].mxu0 %v1266
    %v1977 = vpop.f32.mrb[0].mxu0
    %v1978 = vadd.f32 %v1625, %v1977
    %v1979 = vpop.f32.mrb[0].mxu0
    %v1980 = vadd.f32 %v1627, %v1979
    %v1981 = vpop.f32.mrb[0].mxu0
    %v1982 = vadd.f32 %v1629, %v1981
    %v1983 = vpop.f32.mrb[0].mxu0
    %v1984 = vadd.f32 %v1631, %v1983
    %1985 = vmatprep.mubr.bf16.mxu0 %v1272
    %1986 = vmatmul.mubr.bf16.gmra.mrb[0].mxu0 %v1271
    %v1987 = vpop.f32.mrb[0].mxu0
    %v1988 = vadd.f32 %v1635, %v1987
    %v1989 = vpop.f32.mrb[0].mxu0
    %v1990 = vadd.f32 %v1637, %v1989
    %v1991 = vpop.f32.mrb[0].mxu0
    %v1992 = vadd.f32 %v1639, %v1991
    %v1993 = vpop.f32.mrb[0].mxu0
    %v1994 = vadd.f32 %v1641, %v1993
    %1995 = vmatprep.mubr.bf16.mxu0 %v1277
    %1996 = vmatmul.mubr.bf16.gmra.mrb[0].mxu0 %v1276
    %v1997 = vpop.f32.mrb[0].mxu0
    %v1998 = vadd.f32 %v1645, %v1997
    %v1999 = vpop.f32.mrb[0].mxu0
    %v2000 = vadd.f32 %v1647, %v1999
    %v2001 = vpop.f32.mrb[0].mxu0
    %v2002 = vadd.f32 %v1649, %v2001
    %v2003 = vpop.f32.mrb[0].mxu0
    %v2004 = vadd.f32 %v1651, %v2003
    %2005 = vmatprep.mubr.bf16.mxu0 %v1282
    %2006 = vmatmul.mubr.bf16.gmra.mrb[0].mxu0 %v1281
    %v2007 = vpop.f32.mrb[0].mxu0
    %v2008 = vadd.f32 %v1655, %v2007
    %v2009 = vpop.f32.mrb[0].mxu0
    %v2010 = vadd.f32 %v1657, %v2009
    %v2011 = vpop.f32.mrb[0].mxu0
    %v2012 = vadd.f32 %v1659, %v2011
    %v2013 = vpop.f32.mrb[0].mxu0
    %v2014 = vadd.f32 %v1661, %v2013
    %2015 = vmatprep.mubr.bf16.mxu0 %v1287
    %2016 = vmatmul.mubr.bf16.gmra.mrb[0].mxu0 %v1286
    %v2017 = vpop.f32.mrb[0].mxu0
    %v2018 = vadd.f32 %v1665, %v2017
    %v2019 = vpop.f32.mrb[0].mxu0
    %v2020 = vadd.f32 %v1667, %v2019
    %v2021 = vpop.f32.mrb[0].mxu0
    %v2022 = vadd.f32 %v1669, %v2021
    %v2023 = vpop.f32.mrb[0].mxu0
    %v2024 = vadd.f32 %v1671, %v2023
    %2025 = vmatprep.mubr.bf16.mxu0 %v1292
    %2026 = vmatmul.mubr.bf16.gmra.mrb[0].mxu0 %v1291
    %v2027 = vpop.f32.mrb[0].mxu0
    %v2028 = vadd.f32 %v1675, %v2027
    %v2029 = vpop.f32.mrb[0].mxu0
    %v2030 = vadd.f32 %v1677, %v2029
    %v2031 = vpop.f32.mrb[0].mxu0
    %v2032 = vadd.f32 %v1679, %v2031
    %v2033 = vpop.f32.mrb[0].mxu0
    %v2034 = vadd.f32 %v1681, %v2033
    %2035 = vmatprep.mubr.bf16.mxu0 %v1297
    %2036 = vmatmul.mubr.bf16.gmra.mrb[0].mxu0 %v1296
    %v2037 = vpop.f32.mrb[0].mxu0
    %v2038 = vadd.f32 %v1685, %v2037
    %v2039 = vpop.f32.mrb[0].mxu0
    %v2040 = vadd.f32 %v1687, %v2039
    %v2041 = vpop.f32.mrb[0].mxu0
    %v2042 = vadd.f32 %v1689, %v2041
    %v2043 = vpop.f32.mrb[0].mxu0
    %v2044 = vadd.f32 %v1691, %v2043
    %2045 = vmatprep.mubr.bf16.mxu0 %v1302
    %2046 = vmatmul.mubr.bf16.gmra.mrb[0].mxu0 %v1301
    %v2047 = vpop.f32.mrb[0].mxu0
    %v2048 = vadd.f32 %v1695, %v2047
    %v2049 = vpop.f32.mrb[0].mxu0
    %v2050 = vadd.f32 %v1697, %v2049
    %v2051 = vpop.f32.mrb[0].mxu0
    %v2052 = vadd.f32 %v1699, %v2051
    %v2053 = vpop.f32.mrb[0].mxu0
    %v2054 = vadd.f32 %v1701, %v2053
    %2055 = vmatprep.mubr.bf16.mxu0 %v1307
    %2056 = vmatmul.mubr.bf16.gmra.mrb[0].mxu0 %v1306
    %v2057 = vpop.f32.mrb[0].mxu0
    %v2058 = vadd.f32 %v1705, %v2057
    %v2059 = vpop.f32.mrb[0].mxu0
    %v2060 = vadd.f32 %v1707, %v2059
    %v2061 = vpop.f32.mrb[0].mxu0
    %v2062 = vadd.f32 %v1709, %v2061
    %v2063 = vpop.f32.mrb[0].mxu0
    %v2064 = vadd.f32 %v1711, %v2063
    %2065 = vmatprep.mubr.bf16.mxu0 %v1312
    %2066 = vmatmul.mubr.bf16.gmra.mrb[0].mxu0 %v1311
    %v2067 = vpop.f32.mrb[0].mxu0
    %v2068 = vadd.f32 %v1715, %v2067
    %v2069 = vpop.f32.mrb[0].mxu0
    %v2070 = vadd.f32 %v1717, %v2069
    %v2071 = vpop.f32.mrb[0].mxu0
    %v2072 = vadd.f32 %v1719, %v2071
    %v2073 = vpop.f32.mrb[0].mxu0
    %v2074 = vadd.f32 %v1721, %v2073
    %2075 = vmatprep.mubr.bf16.mxu0 %v1317
    %2076 = vmatmul.mubr.bf16.gmra.mrb[0].mxu0 %v1316
    %v2077 = vpop.f32.mrb[0].mxu0
    %v2078 = vadd.f32 %v1725, %v2077
    %v2079 = vpop.f32.mrb[0].mxu0
    %v2080 = vadd.f32 %v1727, %v2079
    %v2081 = vpop.f32.mrb[0].mxu0
    %v2082 = vadd.f32 %v1729, %v2081
    %v2083 = vpop.f32.mrb[0].mxu0
    %v2084 = vadd.f32 %v1731, %v2083
    %2085 = vmatprep.mubr.bf16.mxu0 %v1322
    %2086 = vmatmul.mubr.bf16.gmra.mrb[0].mxu0 %v1321
    %v2087 = vpop.f32.mrb[0].mxu0
    %v2088 = vadd.f32 %v1735, %v2087
    %v2089 = vpop.f32.mrb[0].mxu0
    %v2090 = vadd.f32 %v1737, %v2089
    %v2091 = vpop.f32.mrb[0].mxu0
    %v2092 = vadd.f32 %v1739, %v2091
    %v2093 = vpop.f32.mrb[0].mxu0
    %v2094 = vadd.f32 %v1741, %v2093
    %2095 = vmatprep.mubr.bf16.mxu0 %v1327
    %2096 = vmatmul.mubr.bf16.gmra.mrb[0].mxu0 %v1326
    %v2097 = vpop.f32.mrb[0].mxu0
    %v2098 = vadd.f32 %v1745, %v2097
    %v2099 = vpop.f32.mrb[0].mxu0
    %v2100 = vadd.f32 %v1747, %v2099
    %v2101 = vpop.f32.mrb[0].mxu0
    %v2102 = vadd.f32 %v1749, %v2101
    %v2103 = vpop.f32.mrb[0].mxu0
    %v2104 = vadd.f32 %v1751, %v2103
    %2105 = vmatprep.mubr.bf16.mxu0 %v1332
    %2106 = vmatmul.mubr.bf16.gmra.mrb[0].mxu0 %v1331
    %v2107 = vpop.f32.mrb[0].mxu0
    %v2108 = vadd.f32 %v1755, %v2107
    %v2109 = vpop.f32.mrb[0].mxu0
    %v2110 = vadd.f32 %v1757, %v2109
    %v2111 = vpop.f32.mrb[0].mxu0
    %v2112 = vadd.f32 %v1759, %v2111
    %v2113 = vpop.f32.mrb[0].mxu0
    %v2114 = vadd.f32 %v1761, %v2113
    %2115 = vmatprep.mubr.bf16.mxu0 %v1337
    %2116 = vmatmul.mubr.bf16.gmra.mrb[0].mxu0 %v1336
    %v2117 = vpop.f32.mrb[0].mxu0
    %v2118 = vadd.f32 %v1765, %v2117
    %v2119 = vpop.f32.mrb[0].mxu0
    %v2120 = vadd.f32 %v1767, %v2119
    %v2121 = vpop.f32.mrb[0].mxu0
    %v2122 = vadd.f32 %v1769, %v2121
    %v2123 = vpop.f32.mrb[0].mxu0
    %v2124 = vadd.f32 %v1771, %v2123
    %2125 = vmatprep.mubr.bf16.mxu0 %v1342
    %2126 = vmatmul.mubr.bf16.gmra.mrb[0].mxu0 %v1341
    %v2127 = vpop.f32.mrb[0].mxu0
    %v2128 = vadd.f32 %v1775, %v2127
    %v2129 = vpop.f32.mrb[0].mxu0
    %v2130 = vadd.f32 %v1777, %v2129
    %v2131 = vpop.f32.mrb[0].mxu0
    %v2132 = vadd.f32 %v1779, %v2131
    %v2133 = vpop.f32.mrb[0].mxu0
    %v2134 = vadd.f32 %v1781, %v2133
    %2135 = vmatprep.mubr.bf16.mxu0 %v1347
    %2136 = vmatmul.mubr.bf16.gmra.mrb[0].mxu0 %v1346
    %v2137 = vpop.f32.mrb[0].mxu0
    %v2138 = vadd.f32 %v1785, %v2137
    %v2139 = vpop.f32.mrb[0].mxu0
    %v2140 = vadd.f32 %v1787, %v2139
    %v2141 = vpop.f32.mrb[0].mxu0
    %v2142 = vadd.f32 %v1789, %v2141
    %v2143 = vpop.f32.mrb[0].mxu0
    %v2144 = vadd.f32 %v1791, %v2143
    %2145 = vmatprep.mubr.bf16.mxu0 %v1352
    %2146 = vmatmul.mubr.bf16.gmra.mrb[0].mxu0 %v1351
    %v2147 = vpop.f32.mrb[0].mxu0
    %v2148 = vadd.f32 %v1795, %v2147
    %v2149 = vpop.f32.mrb[0].mxu0
    %v2150 = vadd.f32 %v1797, %v2149
    %v2151 = vpop.f32.mrb[0].mxu0
    %v2152 = vadd.f32 %v1799, %v2151
    %v2153 = vpop.f32.mrb[0].mxu0
    %v2154 = vadd.f32 %v1801, %v2153
    %2155 = vdwg.mxu0
    %2156 = vmatprep.subr.bf16.mxu0 %v195
    %2157 = vmatpush1.bf16.msra.mxu0 %v195
    %2158 = vmatprep.subr.bf16.mxu0 0
    %2159 = vmatpush1.bf16.msra.mxu0 0
    %2160 = vmatprep.subr.bf16.mxu0 0
    %2161 = vmatpush1.bf16.msra.mxu0 0
    %2162 = vmatprep.subr.bf16.mxu0 0
    %2163 = vmatpush1.bf16.msra.mxu0 0
    %2164 = vmatprep.subr.bf16.mxu0 0
    %2165 = vmatpush1.bf16.msra.mxu0 0
    %2166 = vmatprep.subr.bf16.mxu0 0
    %2167 = vmatpush1.bf16.msra.mxu0 0
    %2168 = vmatprep.subr.bf16.mxu0 0
    %2169 = vmatpush1.bf16.msra.mxu0 0
    %2170 = vmatprep.subr.bf16.mxu0 0
    %2171 = vmatpush1.bf16.msra.mxu0 0
    %2172 = vmatprep.subr.bf16.mxu0 0
    %2173 = vmatpush1.bf16.msra.mxu0 0
    %2174 = vmatprep.subr.bf16.mxu0 0
    %2175 = vmatpush1.bf16.msra.mxu0 0
    %2176 = vmatprep.subr.bf16.mxu0 0
    %2177 = vmatpush1.bf16.msra.mxu0 0
    %2178 = vmatprep.subr.bf16.mxu0 0
    %2179 = vmatpush1.bf16.msra.mxu0 0
    %2180 = vmatprep.subr.bf16.mxu0 0
    %2181 = vmatpush1.bf16.msra.mxu0 0
    %2182 = vmatprep.subr.bf16.mxu0 0
    %2183 = vmatpush1.bf16.msra.mxu0 0
    %2184 = vmatprep.subr.bf16.mxu0 0
    %2185 = vmatpush1.bf16.msra.mxu0 0
    %2186 = vmatprep.subr.bf16.mxu0 0
    %2187 = vmatpush1.bf16.msra.mxu0 0
    %2188 = vmatprep.mubr.bf16.mxu0 0
    %2189 = vmatmul.mubr.bf16.gmra.mrb[0].mxu0 %v1355
    %v2190 = vpop.f32.mrb[0].mxu0
    %v2191 = vadd.f32 %v1838, %v2190
    %v2192 = vpop.f32.mrb[0].mxu0
    %v2193 = vadd.f32 %v1840, %v2192
    %v2194 = vpop.f32.mrb[0].mxu0
    %v2195 = vadd.f32 %v1842, %v2194
    %v2196 = vpop.f32.mrb[0].mxu0
    %v2197 = vadd.f32 %v1844, %v2196
    %2198 = vmatprep.mubr.bf16.mxu0 0
    %2199 = vmatmul.mubr.bf16.gmra.mrb[0].mxu0 %v1358
    %v2200 = vpop.f32.mrb[0].mxu0
    %v2201 = vadd.f32 %v1848, %v2200
    %v2202 = vpop.f32.mrb[0].mxu0
    %v2203 = vadd.f32 %v1850, %v2202
    %v2204 = vpop.f32.mrb[0].mxu0
    %v2205 = vadd.f32 %v1852, %v2204
    %v2206 = vpop.f32.mrb[0].mxu0
    %v2207 = vadd.f32 %v1854, %v2206
    %2208 = vmatprep.mubr.bf16.mxu0 0
    %2209 = vmatmul.mubr.bf16.gmra.mrb[0].mxu0 %v1361
    %v2210 = vpop.f32.mrb[0].mxu0
    %v2211 = vadd.f32 %v1858, %v2210
    %v2212 = vpop.f32.mrb[0].mxu0
    %v2213 = vadd.f32 %v1860, %v2212
    %v2214 = vpop.f32.mrb[0].mxu0
    %v2215 = vadd.f32 %v1862, %v2214
    %v2216 = vpop.f32.mrb[0].mxu0
    %v2217 = vadd.f32 %v1864, %v2216
    %2218 = vmatprep.mubr.bf16.mxu0 0
    %2219 = vmatmul.mubr.bf16.gmra.mrb[0].mxu0 %v1364
    %v2220 = vpop.f32.mrb[0].mxu0
    %v2221 = vadd.f32 %v1868, %v2220
    %v2222 = vpop.f32.mrb[0].mxu0
    %v2223 = vadd.f32 %v1870, %v2222
    %v2224 = vpop.f32.mrb[0].mxu0
    %v2225 = vadd.f32 %v1872, %v2224
    %v2226 = vpop.f32.mrb[0].mxu0
    %v2227 = vadd.f32 %v1874, %v2226
    %2228 = vmatprep.mubr.bf16.mxu0 0
    %2229 = vmatmul.mubr.bf16.gmra.mrb[0].mxu0 %v1367
    %v2230 = vpop.f32.mrb[0].mxu0
    %v2231 = vadd.f32 %v1878, %v2230
    %v2232 = vpop.f32.mrb[0].mxu0
    %v2233 = vadd.f32 %v1880, %v2232
    %v2234 = vpop.f32.mrb[0].mxu0
    %v2235 = vadd.f32 %v1882, %v2234
    %v2236 = vpop.f32.mrb[0].mxu0
    %v2237 = vadd.f32 %v1884, %v2236
    %2238 = vmatprep.mubr.bf16.mxu0 0
    %2239 = vmatmul.mubr.bf16.gmra.mrb[0].mxu0 %v1370
    %v2240 = vpop.f32.mrb[0].mxu0
    %v2241 = vadd.f32 %v1888, %v2240
    %v2242 = vpop.f32.mrb[0].mxu0
    %v2243 = vadd.f32 %v1890, %v2242
    %v2244 = vpop.f32.mrb[0].mxu0
    %v2245 = vadd.f32 %v1892, %v2244
    %v2246 = vpop.f32.mrb[0].mxu0
    %v2247 = vadd.f32 %v1894, %v2246
    %2248 = vmatprep.mubr.bf16.mxu0 0
    %2249 = vmatmul.mubr.bf16.gmra.mrb[0].mxu0 %v1373
    %v2250 = vpop.f32.mrb[0].mxu0
    %v2251 = vadd.f32 %v1898, %v2250
    %v2252 = vpop.f32.mrb[0].mxu0
    %v2253 = vadd.f32 %v1900, %v2252
    %v2254 = vpop.f32.mrb[0].mxu0
    %v2255 = vadd.f32 %v1902, %v2254
    %v2256 = vpop.f32.mrb[0].mxu0
    %v2257 = vadd.f32 %v1904, %v2256
    %2258 = vmatprep.mubr.bf16.mxu0 0
    %2259 = vmatmul.mubr.bf16.gmra.mrb[0].mxu0 %v1376
    %v2260 = vpop.f32.mrb[0].mxu0
    %v2261 = vadd.f32 %v1908, %v2260
    %v2262 = vpop.f32.mrb[0].mxu0
    %v2263 = vadd.f32 %v1910, %v2262
    %v2264 = vpop.f32.mrb[0].mxu0
    %v2265 = vadd.f32 %v1912, %v2264
    %v2266 = vpop.f32.mrb[0].mxu0
    %v2267 = vadd.f32 %v1914, %v2266
    %2268 = vmatprep.mubr.bf16.mxu0 0
    %2269 = vmatmul.mubr.bf16.gmra.mrb[0].mxu0 %v1379
    %v2270 = vpop.f32.mrb[0].mxu0
    %v2271 = vadd.f32 %v1918, %v2270
    %v2272 = vpop.f32.mrb[0].mxu0
    %v2273 = vadd.f32 %v1920, %v2272
    %v2274 = vpop.f32.mrb[0].mxu0
    %v2275 = vadd.f32 %v1922, %v2274
    %v2276 = vpop.f32.mrb[0].mxu0
    %v2277 = vadd.f32 %v1924, %v2276
    %2278 = vmatprep.mubr.bf16.mxu0 0
    %2279 = vmatmul.mubr.bf16.gmra.mrb[0].mxu0 %v1382
    %v2280 = vpop.f32.mrb[0].mxu0
    %v2281 = vadd.f32 %v1928, %v2280
    %v2282 = vpop.f32.mrb[0].mxu0
    %v2283 = vadd.f32 %v1930, %v2282
    %v2284 = vpop.f32.mrb[0].mxu0
    %v2285 = vadd.f32 %v1932, %v2284
    %v2286 = vpop.f32.mrb[0].mxu0
    %v2287 = vadd.f32 %v1934, %v2286
    %2288 = vmatprep.mubr.bf16.mxu0 0
    %2289 = vmatmul.mubr.bf16.gmra.mrb[0].mxu0 %v1385
    %v2290 = vpop.f32.mrb[0].mxu0
    %v2291 = vadd.f32 %v1938, %v2290
    %v2292 = vpop.f32.mrb[0].mxu0
    %v2293 = vadd.f32 %v1940, %v2292
    %v2294 = vpop.f32.mrb[0].mxu0
    %v2295 = vadd.f32 %v1942, %v2294
    %v2296 = vpop.f32.mrb[0].mxu0
    %v2297 = vadd.f32 %v1944, %v2296
    %2298 = vmatprep.mubr.bf16.mxu0 0
    %2299 = vmatmul.mubr.bf16.gmra.mrb[0].mxu0 %v1388
    %v2300 = vpop.f32.mrb[0].mxu0
    %v2301 = vadd.f32 %v1948, %v2300
    %v2302 = vpop.f32.mrb[0].mxu0
    %v2303 = vadd.f32 %v1950, %v2302
    %v2304 = vpop.f32.mrb[0].mxu0
    %v2305 = vadd.f32 %v1952, %v2304
    %v2306 = vpop.f32.mrb[0].mxu0
    %v2307 = vadd.f32 %v1954, %v2306
    %2308 = vmatprep.mubr.bf16.mxu0 0
    %2309 = vmatmul.mubr.bf16.gmra.mrb[0].mxu0 %v1391
    %v2310 = vpop.f32.mrb[0].mxu0
    %v2311 = vadd.f32 %v1958, %v2310
    %v2312 = vpop.f32.mrb[0].mxu0
    %v2313 = vadd.f32 %v1960, %v2312
    %v2314 = vpop.f32.mrb[0].mxu0
    %v2315 = vadd.f32 %v1962, %v2314
    %v2316 = vpop.f32.mrb[0].mxu0
    %v2317 = vadd.f32 %v1964, %v2316
    %2318 = vmatprep.mubr.bf16.mxu0 0
    %2319 = vmatmul.mubr.bf16.gmra.mrb[0].mxu0 %v1394
    %v2320 = vpop.f32.mrb[0].mxu0
    %v2321 = vadd.f32 %v1968, %v2320
    %v2322 = vpop.f32.mrb[0].mxu0
    %v2323 = vadd.f32 %v1970, %v2322
    %v2324 = vpop.f32.mrb[0].mxu0
    %v2325 = vadd.f32 %v1972, %v2324
    %v2326 = vpop.f32.mrb[0].mxu0
    %v2327 = vadd.f32 %v1974, %v2326
    %2328 = vmatprep.mubr.bf16.mxu0 0
    %2329 = vmatmul.mubr.bf16.gmra.mrb[0].mxu0 %v1397
    %v2330 = vpop.f32.mrb[0].mxu0
    %v2331 = vadd.f32 %v1978, %v2330
    %v2332 = vpop.f32.mrb[0].mxu0
    %v2333 = vadd.f32 %v1980, %v2332
    %v2334 = vpop.f32.mrb[0].mxu0
    %v2335 = vadd.f32 %v1982, %v2334
    %v2336 = vpop.f32.mrb[0].mxu0
    %v2337 = vadd.f32 %v1984, %v2336
    %2338 = vmatprep.mubr.bf16.mxu0 0
    %2339 = vmatmul.mubr.bf16.gmra.mrb[0].mxu0 %v1400
    %v2340 = vpop.f32.mrb[0].mxu0
    %v2341 = vadd.f32 %v1988, %v2340
    %v2342 = vpop.f32.mrb[0].mxu0
    %v2343 = vadd.f32 %v1990, %v2342
    %v2344 = vpop.f32.mrb[0].mxu0
    %v2345 = vadd.f32 %v1992, %v2344
    %v2346 = vpop.f32.mrb[0].mxu0
    %v2347 = vadd.f32 %v1994, %v2346
    %2348 = vmatprep.mubr.bf16.mxu0 0
    %2349 = vmatmul.mubr.bf16.gmra.mrb[0].mxu0 %v1403
    %v2350 = vpop.f32.mrb[0].mxu0
    %v2351 = vadd.f32 %v1998, %v2350
    %v2352 = vpop.f32.mrb[0].mxu0
    %v2353 = vadd.f32 %v2000, %v2352
    %v2354 = vpop.f32.mrb[0].mxu0
    %v2355 = vadd.f32 %v2002, %v2354
    %v2356 = vpop.f32.mrb[0].mxu0
    %v2357 = vadd.f32 %v2004, %v2356
    %2358 = vmatprep.mubr.bf16.mxu0 0
    %2359 = vmatmul.mubr.bf16.gmra.mrb[0].mxu0 %v1406
    %v2360 = vpop.f32.mrb[0].mxu0
    %v2361 = vadd.f32 %v2008, %v2360
    %v2362 = vpop.f32.mrb[0].mxu0
    %v2363 = vadd.f32 %v2010, %v2362
    %v2364 = vpop.f32.mrb[0].mxu0
    %v2365 = vadd.f32 %v2012, %v2364
    %v2366 = vpop.f32.mrb[0].mxu0
    %v2367 = vadd.f32 %v2014, %v2366
    %2368 = vmatprep.mubr.bf16.mxu0 0
    %2369 = vmatmul.mubr.bf16.gmra.mrb[0].mxu0 %v1409
    %v2370 = vpop.f32.mrb[0].mxu0
    %v2371 = vadd.f32 %v2018, %v2370
    %v2372 = vpop.f32.mrb[0].mxu0
    %v2373 = vadd.f32 %v2020, %v2372
    %v2374 = vpop.f32.mrb[0].mxu0
    %v2375 = vadd.f32 %v2022, %v2374
    %v2376 = vpop.f32.mrb[0].mxu0
    %v2377 = vadd.f32 %v2024, %v2376
    %2378 = vmatprep.mubr.bf16.mxu0 0
    %2379 = vmatmul.mubr.bf16.gmra.mrb[0].mxu0 %v1412
    %v2380 = vpop.f32.mrb[0].mxu0
    %v2381 = vadd.f32 %v2028, %v2380
    %v2382 = vpop.f32.mrb[0].mxu0
    %v2383 = vadd.f32 %v2030, %v2382
    %v2384 = vpop.f32.mrb[0].mxu0
    %v2385 = vadd.f32 %v2032, %v2384
    %v2386 = vpop.f32.mrb[0].mxu0
    %v2387 = vadd.f32 %v2034, %v2386
    %2388 = vmatprep.mubr.bf16.mxu0 0
    %2389 = vmatmul.mubr.bf16.gmra.mrb[0].mxu0 %v1415
    %v2390 = vpop.f32.mrb[0].mxu0
    %v2391 = vadd.f32 %v2038, %v2390
    %v2392 = vpop.f32.mrb[0].mxu0
    %v2393 = vadd.f32 %v2040, %v2392
    %v2394 = vpop.f32.mrb[0].mxu0
    %v2395 = vadd.f32 %v2042, %v2394
    %v2396 = vpop.f32.mrb[0].mxu0
    %v2397 = vadd.f32 %v2044, %v2396
    %2398 = vmatprep.mubr.bf16.mxu0 0
    %2399 = vmatmul.mubr.bf16.gmra.mrb[0].mxu0 %v1418
    %v2400 = vpop.f32.mrb[0].mxu0
    %v2401 = vadd.f32 %v2048, %v2400
    %v2402 = vpop.f32.mrb[0].mxu0
    %v2403 = vadd.f32 %v2050, %v2402
    %v2404 = vpop.f32.mrb[0].mxu0
    %v2405 = vadd.f32 %v2052, %v2404
    %v2406 = vpop.f32.mrb[0].mxu0
    %v2407 = vadd.f32 %v2054, %v2406
    %2408 = vmatprep.mubr.bf16.mxu0 0
    %2409 = vmatmul.mubr.bf16.gmra.mrb[0].mxu0 %v1421
    %v2410 = vpop.f32.mrb[0].mxu0
    %v2411 = vadd.f32 %v2058, %v2410
    %v2412 = vpop.f32.mrb[0].mxu0
    %v2413 = vadd.f32 %v2060, %v2412
    %v2414 = vpop.f32.mrb[0].mxu0
    %v2415 = vadd.f32 %v2062, %v2414
    %v2416 = vpop.f32.mrb[0].mxu0
    %v2417 = vadd.f32 %v2064, %v2416
    %2418 = vmatprep.mubr.bf16.mxu0 0
    %2419 = vmatmul.mubr.bf16.gmra.mrb[0].mxu0 %v1424
    %v2420 = vpop.f32.mrb[0].mxu0
    %v2421 = vadd.f32 %v2068, %v2420
    %v2422 = vpop.f32.mrb[0].mxu0
    %v2423 = vadd.f32 %v2070, %v2422
    %v2424 = vpop.f32.mrb[0].mxu0
    %v2425 = vadd.f32 %v2072, %v2424
    %v2426 = vpop.f32.mrb[0].mxu0
    %v2427 = vadd.f32 %v2074, %v2426
    %2428 = vmatprep.mubr.bf16.mxu0 0
    %2429 = vmatmul.mubr.bf16.gmra.mrb[0].mxu0 %v1427
    %v2430 = vpop.f32.mrb[0].mxu0
    %v2431 = vadd.f32 %v2078, %v2430
    %v2432 = vpop.f32.mrb[0].mxu0
    %v2433 = vadd.f32 %v2080, %v2432
    %v2434 = vpop.f32.mrb[0].mxu0
    %v2435 = vadd.f32 %v2082, %v2434
    %v2436 = vpop.f32.mrb[0].mxu0
    %v2437 = vadd.f32 %v2084, %v2436
    %2438 = vmatprep.mubr.bf16.mxu0 0
    %2439 = vmatmul.mubr.bf16.gmra.mrb[0].mxu0 %v1430
    %v2440 = vpop.f32.mrb[0].mxu0
    %v2441 = vadd.f32 %v2088, %v2440
    %v2442 = vpop.f32.mrb[0].mxu0
    %v2443 = vadd.f32 %v2090, %v2442
    %v2444 = vpop.f32.mrb[0].mxu0
    %v2445 = vadd.f32 %v2092, %v2444
    %v2446 = vpop.f32.mrb[0].mxu0
    %v2447 = vadd.f32 %v2094, %v2446
    %2448 = vmatprep.mubr.bf16.mxu0 0
    %2449 = vmatmul.mubr.bf16.gmra.mrb[0].mxu0 %v1433
    %v2450 = vpop.f32.mrb[0].mxu0
    %v2451 = vadd.f32 %v2098, %v2450
    %v2452 = vpop.f32.mrb[0].mxu0
    %v2453 = vadd.f32 %v2100, %v2452
    %v2454 = vpop.f32.mrb[0].mxu0
    %v2455 = vadd.f32 %v2102, %v2454
    %v2456 = vpop.f32.mrb[0].mxu0
    %v2457 = vadd.f32 %v2104, %v2456
    %2458 = vmatprep.mubr.bf16.mxu0 0
    %2459 = vmatmul.mubr.bf16.gmra.mrb[0].mxu0 %v1436
    %v2460 = vpop.f32.mrb[0].mxu0
    %v2461 = vadd.f32 %v2108, %v2460
    %v2462 = vpop.f32.mrb[0].mxu0
    %v2463 = vadd.f32 %v2110, %v2462
    %v2464 = vpop.f32.mrb[0].mxu0
    %v2465 = vadd.f32 %v2112, %v2464
    %v2466 = vpop.f32.mrb[0].mxu0
    %v2467 = vadd.f32 %v2114, %v2466
    %2468 = vmatprep.mubr.bf16.mxu0 0
    %2469 = vmatmul.mubr.bf16.gmra.mrb[0].mxu0 %v1439
    %v2470 = vpop.f32.mrb[0].mxu0
    %v2471 = vadd.f32 %v2118, %v2470
    %v2472 = vpop.f32.mrb[0].mxu0
    %v2473 = vadd.f32 %v2120, %v2472
    %v2474 = vpop.f32.mrb[0].mxu0
    %v2475 = vadd.f32 %v2122, %v2474
    %v2476 = vpop.f32.mrb[0].mxu0
    %v2477 = vadd.f32 %v2124, %v2476
    %2478 = vmatprep.mubr.bf16.mxu0 0
    %2479 = vmatmul.mubr.bf16.gmra.mrb[0].mxu0 %v1442
    %v2480 = vpop.f32.mrb[0].mxu0
    %v2481 = vadd.f32 %v2128, %v2480
    %v2482 = vpop.f32.mrb[0].mxu0
    %v2483 = vadd.f32 %v2130, %v2482
    %v2484 = vpop.f32.mrb[0].mxu0
    %v2485 = vadd.f32 %v2132, %v2484
    %v2486 = vpop.f32.mrb[0].mxu0
    %v2487 = vadd.f32 %v2134, %v2486
    %2488 = vmatprep.mubr.bf16.mxu0 0
    %2489 = vmatmul.mubr.bf16.gmra.mrb[0].mxu0 %v1445
    %v2490 = vpop.f32.mrb[0].mxu0
    %v2491 = vadd.f32 %v2138, %v2490
    %v2492 = vpop.f32.mrb[0].mxu0
    %v2493 = vadd.f32 %v2140, %v2492
    %v2494 = vpop.f32.mrb[0].mxu0
    %v2495 = vadd.f32 %v2142, %v2494
    %v2496 = vpop.f32.mrb[0].mxu0
    %v2497 = vadd.f32 %v2144, %v2496
    %2498 = vmatprep.mubr.bf16.mxu0 0
    %2499 = vmatmul.mubr.bf16.gmra.mrb[0].mxu0 %v1448
    %v2500 = vpop.f32.mrb[0].mxu0
    %v2501 = vadd.f32 %v2148, %v2500
    %v2502 = vpop.f32.mrb[0].mxu0
    %v2503 = vadd.f32 %v2150, %v2502
    %v2504 = vpop.f32.mrb[0].mxu0
    %v2505 = vadd.f32 %v2152, %v2504
    %v2506 = vpop.f32.mrb[0].mxu0
    %v2507 = vadd.f32 %v2154, %v2506
    %2508 = vdwg.mxu0
    %v2509 = vmax.f32 %v2191, 0.0
    %v2510 = vmax.f32 %v2193, 0.0
    %v2511 = vmax.f32 %v2195, 0.0
    %v2512 = vmax.f32 %v2197, 0.0
    %v2513 = vmax.f32 %v2201, 0.0
    %v2514 = vmax.f32 %v2203, 0.0
    %v2515 = vmax.f32 %v2205, 0.0
    %v2516 = vmax.f32 %v2207, 0.0
    %v2517 = vmax.f32 %v2211, 0.0
    %v2518 = vmax.f32 %v2213, 0.0
    %v2519 = vmax.f32 %v2215, 0.0
    %v2520 = vmax.f32 %v2217, 0.0
    %v2521 = vmax.f32 %v2221, 0.0
    %v2522 = vmax.f32 %v2223, 0.0
    %v2523 = vmax.f32 %v2225, 0.0
    %v2524 = vmax.f32 %v2227, 0.0
    %v2525 = vmax.f32 %v2231, 0.0
    %v2526 = vmax.f32 %v2233, 0.0
    %v2527 = vmax.f32 %v2235, 0.0
    %v2528 = vmax.f32 %v2237, 0.0
    %v2529 = vmax.f32 %v2241, 0.0
    %v2530 = vmax.f32 %v2243, 0.0
    %v2531 = vmax.f32 %v2245, 0.0
    %v2532 = vmax.f32 %v2247, 0.0
    %v2533 = vmax.f32 %v2251, 0.0
    %v2534 = vmax.f32 %v2253, 0.0
    %v2535 = vmax.f32 %v2255, 0.0
    %v2536 = vmax.f32 %v2257, 0.0
    %v2537 = vmax.f32 %v2261, 0.0
    %v2538 = vmax.f32 %v2263, 0.0
    %v2539 = vmax.f32 %v2265, 0.0
    %v2540 = vmax.f32 %v2267, 0.0
    %v2541 = vmax.f32 %v2271, 0.0
    %v2542 = vmax.f32 %v2273, 0.0
    %v2543 = vmax.f32 %v2275, 0.0
    %v2544 = vmax.f32 %v2277, 0.0
    %v2545 = vmax.f32 %v2281, 0.0
    %v2546 = vmax.f32 %v2283, 0.0
    %v2547 = vmax.f32 %v2285, 0.0
    %v2548 = vmax.f32 %v2287, 0.0
    %v2549 = vmax.f32 %v2291, 0.0
    %v2550 = vmax.f32 %v2293, 0.0
    %v2551 = vmax.f32 %v2295, 0.0
    %v2552 = vmax.f32 %v2297, 0.0
    %v2553 = vmax.f32 %v2301, 0.0
    %v2554 = vmax.f32 %v2303, 0.0
    %v2555 = vmax.f32 %v2305, 0.0
    %v2556 = vmax.f32 %v2307, 0.0
    %v2557 = vmax.f32 %v2311, 0.0
    %v2558 = vmax.f32 %v2313, 0.0
    %v2559 = vmax.f32 %v2315, 0.0
    %v2560 = vmax.f32 %v2317, 0.0
    %v2561 = vmax.f32 %v2321, 0.0
    %v2562 = vmax.f32 %v2323, 0.0
    %v2563 = vmax.f32 %v2325, 0.0
    %v2564 = vmax.f32 %v2327, 0.0
    %v2565 = vmax.f32 %v2331, 0.0
    %v2566 = vmax.f32 %v2333, 0.0
    %v2567 = vmax.f32 %v2335, 0.0
    %v2568 = vmax.f32 %v2337, 0.0
    %v2569 = vmax.f32 %v2341, 0.0
    %v2570 = vmax.f32 %v2343, 0.0
    %v2571 = vmax.f32 %v2345, 0.0
    %v2572 = vmax.f32 %v2347, 0.0
    %v2573 = vmax.f32 %v2351, 0.0
    %v2574 = vmax.f32 %v2353, 0.0
    %v2575 = vmax.f32 %v2355, 0.0
    %v2576 = vmax.f32 %v2357, 0.0
    %v2577 = vmax.f32 %v2361, 0.0
    %v2578 = vmax.f32 %v2363, 0.0
    %v2579 = vmax.f32 %v2365, 0.0
    %v2580 = vmax.f32 %v2367, 0.0
    %v2581 = vmax.f32 %v2371, 0.0
    %v2582 = vmax.f32 %v2373, 0.0
    %v2583 = vmax.f32 %v2375, 0.0
    %v2584 = vmax.f32 %v2377, 0.0
    %v2585 = vmax.f32 %v2381, 0.0
    %v2586 = vmax.f32 %v2383, 0.0
    %v2587 = vmax.f32 %v2385, 0.0
    %v2588 = vmax.f32 %v2387, 0.0
    %v2589 = vmax.f32 %v2391, 0.0
    %v2590 = vmax.f32 %v2393, 0.0
    %v2591 = vmax.f32 %v2395, 0.0
    %v2592 = vmax.f32 %v2397, 0.0
    %v2593 = vmax.f32 %v2401, 0.0
    %v2594 = vmax.f32 %v2403, 0.0
    %v2595 = vmax.f32 %v2405, 0.0
    %v2596 = vmax.f32 %v2407, 0.0
    %v2597 = vmax.f32 %v2411, 0.0
    %v2598 = vmax.f32 %v2413, 0.0
    %v2599 = vmax.f32 %v2415, 0.0
    %v2600 = vmax.f32 %v2417, 0.0
    %v2601 = vmax.f32 %v2421, 0.0
    %v2602 = vmax.f32 %v2423, 0.0
    %v2603 = vmax.f32 %v2425, 0.0
    %v2604 = vmax.f32 %v2427, 0.0
    %v2605 = vmax.f32 %v2431, 0.0
    %v2606 = vmax.f32 %v2433, 0.0
    %v2607 = vmax.f32 %v2435, 0.0
    %v2608 = vmax.f32 %v2437, 0.0
    %v2609 = vmax.f32 %v2441, 0.0
    %v2610 = vmax.f32 %v2443, 0.0
    %v2611 = vmax.f32 %v2445, 0.0
    %v2612 = vmax.f32 %v2447, 0.0
    %v2613 = vmax.f32 %v2451, 0.0
    %v2614 = vmax.f32 %v2453, 0.0
    %v2615 = vmax.f32 %v2455, 0.0
    %v2616 = vmax.f32 %v2457, 0.0
    %v2617 = vmax.f32 %v2461, 0.0
    %v2618 = vmax.f32 %v2463, 0.0
    %v2619 = vmax.f32 %v2465, 0.0
    %v2620 = vmax.f32 %v2467, 0.0
    %v2621 = vmax.f32 %v2471, 0.0
    %v2622 = vmax.f32 %v2473, 0.0
    %v2623 = vmax.f32 %v2475, 0.0
    %v2624 = vmax.f32 %v2477, 0.0
    %v2625 = vmax.f32 %v2481, 0.0
    %v2626 = vmax.f32 %v2483, 0.0
    %v2627 = vmax.f32 %v2485, 0.0
    %v2628 = vmax.f32 %v2487, 0.0
    %v2629 = vmax.f32 %v2491, 0.0
    %v2630 = vmax.f32 %v2493, 0.0
    %v2631 = vmax.f32 %v2495, 0.0
    %v2632 = vmax.f32 %v2497, 0.0
    %v2633 = vmax.f32 %v2501, 0.0
    %v2634 = vmax.f32 %v2503, 0.0
    %v2635 = vmax.f32 %v2505, 0.0
    %v2636 = vmax.f32 %v2507, 0.0
    %v2637 = vpack.c.bf16 %v2511, %v2509
    %v2638 = vpack.c.bf16 %v2512, %v2510
    %v2639 = vpack.c.bf16 %v2515, %v2513
    %v2640 = vpack.c.bf16 %v2516, %v2514
    %v2641 = vpack.c.bf16 %v2519, %v2517
    %v2642 = vpack.c.bf16 %v2520, %v2518
    %v2643 = vpack.c.bf16 %v2523, %v2521
    %v2644 = vpack.c.bf16 %v2524, %v2522
    %v2645 = vpack.c.bf16 %v2527, %v2525
    %v2646 = vpack.c.bf16 %v2528, %v2526
    %v2647 = vpack.c.bf16 %v2531, %v2529
    %v2648 = vpack.c.bf16 %v2532, %v2530
    %v2649 = vpack.c.bf16 %v2535, %v2533
    %v2650 = vpack.c.bf16 %v2536, %v2534
    %v2651 = vpack.c.bf16 %v2539, %v2537
    %v2652 = vpack.c.bf16 %v2540, %v2538
    %v2653 = vpack.c.bf16 %v2543, %v2541
    %v2654 = vpack.c.bf16 %v2544, %v2542
    %v2655 = vpack.c.bf16 %v2547, %v2545
    %v2656 = vpack.c.bf16 %v2548, %v2546
    %v2657 = vpack.c.bf16 %v2551, %v2549
    %v2658 = vpack.c.bf16 %v2552, %v2550
    %v2659 = vpack.c.bf16 %v2555, %v2553
    %v2660 = vpack.c.bf16 %v2556, %v2554
    %v2661 = vpack.c.bf16 %v2559, %v2557
    %v2662 = vpack.c.bf16 %v2560, %v2558
    %v2663 = vpack.c.bf16 %v2563, %v2561
    %v2664 = vpack.c.bf16 %v2564, %v2562
    %v2665 = vpack.c.bf16 %v2567, %v2565
    %v2666 = vpack.c.bf16 %v2568, %v2566
    %v2667 = vpack.c.bf16 %v2571, %v2569
    %v2668 = vpack.c.bf16 %v2572, %v2570
    %v2669 = vpack.c.bf16 %v2575, %v2573
    %v2670 = vpack.c.bf16 %v2576, %v2574
    %v2671 = vpack.c.bf16 %v2579, %v2577
    %v2672 = vpack.c.bf16 %v2580, %v2578
    %v2673 = vpack.c.bf16 %v2583, %v2581
    %v2674 = vpack.c.bf16 %v2584, %v2582
    %v2675 = vpack.c.bf16 %v2587, %v2585
    %v2676 = vpack.c.bf16 %v2588, %v2586
    %v2677 = vpack.c.bf16 %v2591, %v2589
    %v2678 = vpack.c.bf16 %v2592, %v2590
    %v2679 = vpack.c.bf16 %v2595, %v2593
    %v2680 = vpack.c.bf16 %v2596, %v2594
    %v2681 = vpack.c.bf16 %v2599, %v2597
    %v2682 = vpack.c.bf16 %v2600, %v2598
    %v2683 = vpack.c.bf16 %v2603, %v2601
    %v2684 = vpack.c.bf16 %v2604, %v2602
    %v2685 = vpack.c.bf16 %v2607, %v2605
    %v2686 = vpack.c.bf16 %v2608, %v2606
    %v2687 = vpack.c.bf16 %v2611, %v2609
    %v2688 = vpack.c.bf16 %v2612, %v2610
    %v2689 = vpack.c.bf16 %v2615, %v2613
    %v2690 = vpack.c.bf16 %v2616, %v2614
    %v2691 = vpack.c.bf16 %v2619, %v2617
    %v2692 = vpack.c.bf16 %v2620, %v2618
    %v2693 = vpack.c.bf16 %v2623, %v2621
    %v2694 = vpack.c.bf16 %v2624, %v2622
    %v2695 = vpack.c.bf16 %v2627, %v2625
    %v2696 = vpack.c.bf16 %v2628, %v2626
    %v2697 = vpack.c.bf16 %v2631, %v2629
    %v2698 = vpack.c.bf16 %v2632, %v2630
    %v2699 = vpack.c.bf16 %v2635, %v2633
    %v2700 = vpack.c.bf16 %v2636, %v2634
    %v2701 = vld [vmem:[#allocation2 + $0x500] sm:$0x1]
    %v2702 = vld [vmem:[#allocation2 + $0x508] sm:$0x1]
    %v2703 = vld [vmem:[#allocation2 + $0x510] sm:$0x1]
    %v2704 = vld [vmem:[#allocation2 + $0x518] sm:$0x1]
    %v2705 = vld [vmem:[#allocation2 + $0x520] sm:$0x1]
    %v2707 = vsel %vm548, %v2705, 0
    %2709 = vmatprep.subr.bf16.mxu0 %v2638
    %2710 = vmatpush1.bf16.msra.mxu0 %v2637
    %2711 = vmatprep.subr.bf16.mxu0 %v2640
    %2712 = vmatpush1.bf16.msra.mxu0 %v2639
    %2713 = vmatprep.subr.bf16.mxu0 %v2642
    %2714 = vmatpush1.bf16.msra.mxu0 %v2641
    %2715 = vmatprep.subr.bf16.mxu0 %v2644
    %2716 = vmatpush1.bf16.msra.mxu0 %v2643
    %2717 = vmatprep.subr.bf16.mxu0 %v2646
    %2718 = vmatpush1.bf16.msra.mxu0 %v2645
    %2719 = vmatprep.subr.bf16.mxu0 %v2648
    %2720 = vmatpush1.bf16.msra.mxu0 %v2647
    %2721 = vmatprep.subr.bf16.mxu0 %v2650
    %2722 = vmatpush1.bf16.msra.mxu0 %v2649
    %2723 = vmatprep.subr.bf16.mxu0 %v2652
    %2724 = vmatpush1.bf16.msra.mxu0 %v2651
    %2725 = vmatprep.subr.bf16.mxu0 %v2654
    %2726 = vmatpush1.bf16.msra.mxu0 %v2653
    %2727 = vmatprep.subr.bf16.mxu0 %v2656
    %2728 = vmatpush1.bf16.msra.mxu0 %v2655
    %2729 = vmatprep.subr.bf16.mxu0 %v2658
    %2730 = vmatpush1.bf16.msra.mxu0 %v2657
    %2731 = vmatprep.subr.bf16.mxu0 %v2660
    %2732 = vmatpush1.bf16.msra.mxu0 %v2659
    %2733 = vmatprep.subr.bf16.mxu0 %v2662
    %2734 = vmatpush1.bf16.msra.mxu0 %v2661
    %2735 = vmatprep.subr.bf16.mxu0 %v2664
    %2736 = vmatpush1.bf16.msra.mxu0 %v2663
    %2737 = vmatprep.subr.bf16.mxu0 %v2666
    %2738 = vmatpush1.bf16.msra.mxu0 %v2665
    %2739 = vmatprep.subr.bf16.mxu0 %v2668
    %2740 = vmatpush1.bf16.msra.mxu0 %v2667
    %2741 = vmatprep.mubr.bf16.mxu0 %v2702
    %2742 = vmatmul.mubr.bf16.gmra.mrb[0].mxu0 %v2701
    %v2743 = vpop.f32.mrb[0].mxu0
    %v2744 = vadd.f32 0.0, %v2743
    %v2745 = vpop.f32.mrb[0].mxu0
    %v2746 = vadd.f32 0.0, %v2745
    %v2747 = vpop.f32.mrb[0].mxu0
    %v2748 = vpop.f32.mrb[0].mxu0
    %2749 = vdwg.mxu0
    %2750 = vmatprep.subr.bf16.mxu0 %v2670
    %2751 = vmatpush1.bf16.msra.mxu0 %v2669
    %2752 = vmatprep.subr.bf16.mxu0 %v2672
    %2753 = vmatpush1.bf16.msra.mxu0 %v2671
    %2754 = vmatprep.subr.bf16.mxu0 %v2674
    %2755 = vmatpush1.bf16.msra.mxu0 %v2673
    %2756 = vmatprep.subr.bf16.mxu0 %v2676
    %2757 = vmatpush1.bf16.msra.mxu0 %v2675
    %2758 = vmatprep.subr.bf16.mxu0 %v2678
    %2759 = vmatpush1.bf16.msra.mxu0 %v2677
    %2760 = vmatprep.subr.bf16.mxu0 %v2680
    %2761 = vmatpush1.bf16.msra.mxu0 %v2679
    %2762 = vmatprep.subr.bf16.mxu0 %v2682
    %2763 = vmatpush1.bf16.msra.mxu0 %v2681
    %2764 = vmatprep.subr.bf16.mxu0 %v2684
    %2765 = vmatpush1.bf16.msra.mxu0 %v2683
    %2766 = vmatprep.subr.bf16.mxu0 %v2686
    %2767 = vmatpush1.bf16.msra.mxu0 %v2685
    %2768 = vmatprep.subr.bf16.mxu0 %v2688
    %2769 = vmatpush1.bf16.msra.mxu0 %v2687
    %2770 = vmatprep.subr.bf16.mxu0 %v2690
    %2771 = vmatpush1.bf16.msra.mxu0 %v2689
    %2772 = vmatprep.subr.bf16.mxu0 %v2692
    %2773 = vmatpush1.bf16.msra.mxu0 %v2691
    %2774 = vmatprep.subr.bf16.mxu0 %v2694
    %2775 = vmatpush1.bf16.msra.mxu0 %v2693
    %2776 = vmatprep.subr.bf16.mxu0 %v2696
    %2777 = vmatpush1.bf16.msra.mxu0 %v2695
    %2778 = vmatprep.subr.bf16.mxu0 %v2698
    %2779 = vmatpush1.bf16.msra.mxu0 %v2697
    %2780 = vmatprep.subr.bf16.mxu0 %v2700
    %2781 = vmatpush1.bf16.msra.mxu0 %v2699
    %2782 = vmatprep.mubr.bf16.mxu0 %v2704
    %2783 = vmatmul.mubr.bf16.gmra.mrb[0].mxu0 %v2703
    %v2784 = vpop.f32.mrb[0].mxu0
    %v2785 = vadd.f32 %v2744, %v2784
    %v2786 = vpop.f32.mrb[0].mxu0
    %v2787 = vadd.f32 %v2746, %v2786
    %v2788 = vpop.f32.mrb[0].mxu0
    %v2789 = vpop.f32.mrb[0].mxu0
    %2790 = vdwg.mxu0
    %2791 = vmatprep.subr.bf16.mxu0 %v195
    %2792 = vmatpush1.bf16.msra.mxu0 %v195
    %2793 = vmatprep.subr.bf16.mxu0 0
    %2794 = vmatpush1.bf16.msra.mxu0 0
    %2795 = vmatprep.subr.bf16.mxu0 0
    %2796 = vmatpush1.bf16.msra.mxu0 0
    %2797 = vmatprep.subr.bf16.mxu0 0
    %2798 = vmatpush1.bf16.msra.mxu0 0
    %2799 = vmatprep.subr.bf16.mxu0 0
    %2800 = vmatpush1.bf16.msra.mxu0 0
    %2801 = vmatprep.subr.bf16.mxu0 0
    %2802 = vmatpush1.bf16.msra.mxu0 0
    %2803 = vmatprep.subr.bf16.mxu0 0
    %2804 = vmatpush1.bf16.msra.mxu0 0
    %2805 = vmatprep.subr.bf16.mxu0 0
    %2806 = vmatpush1.bf16.msra.mxu0 0
    %2807 = vmatprep.subr.bf16.mxu0 0
    %2808 = vmatpush1.bf16.msra.mxu0 0
    %2809 = vmatprep.subr.bf16.mxu0 0
    %2810 = vmatpush1.bf16.msra.mxu0 0
    %2811 = vmatprep.subr.bf16.mxu0 0
    %2812 = vmatpush1.bf16.msra.mxu0 0
    %2813 = vmatprep.subr.bf16.mxu0 0
    %2814 = vmatpush1.bf16.msra.mxu0 0
    %2815 = vmatprep.subr.bf16.mxu0 0
    %2816 = vmatpush1.bf16.msra.mxu0 0
    %2817 = vmatprep.subr.bf16.mxu0 0
    %2818 = vmatpush1.bf16.msra.mxu0 0
    %2819 = vmatprep.subr.bf16.mxu0 0
    %2820 = vmatpush1.bf16.msra.mxu0 0
    %2821 = vmatprep.subr.bf16.mxu0 0
    %2822 = vmatpush1.bf16.msra.mxu0 0
    %2823 = vmatprep.mubr.bf16.mxu0 0
    %2824 = vmatmul.mubr.bf16.gmra.mrb[0].mxu0 %v2707
    %v2825 = vpop.f32.mrb[0].mxu0
    %v2826 = vadd.f32 %v2785, %v2825
    %v2827 = vpop.f32.mrb[0].mxu0
    %v2828 = vadd.f32 %v2787, %v2827
    %v2829 = vpop.f32.mrb[0].mxu0
    %v2830 = vpop.f32.mrb[0].mxu0
    %2831 = vdwg.mxu0
    %v2832 = vmax.f32 %v2826, 0.0
    %v2833 = vmax.f32 %v2828, 0.0
    %v2835 = vrot.slane %v2833, 7
    %vm2837 = vcmask 1040384
    %v2838 = vsel %vm2837, %v2832, %v2835
    %v2839 = vpack.c.bf16 %v2838, %v2838
    %s2840 = smul.u32 4, 48
    %s2841 = smul.u32 %s2840, 1
    %s2842 = sshll.u32 %s2841, 4
    %2843 = dma.done %s54, %s2842
    %v2844 = vld [vmem:[%s2] sm:$0x1]
    %v2845 = vld [vmem:[%s2 + $0x1] sm:$0x1]
    %v2846 = vld [vmem:[%s2 + $0x2] sm:$0x1]
    %v2847 = vld [vmem:[#allocation3] sm:$0xff]
    %v2848 = vld [vmem:[#allocation3 + $0x8] sm:$0xff]
    %v2849 = vld [vmem:[#allocation3 + $0x10] sm:$0xff]
    %v2850 = vld [vmem:[#allocation3 + $0x18] sm:$0xff]
    %v2851 = vld [vmem:[#allocation3 + $0x20] sm:$0xff]
    %v2852 = vld [vmem:[#allocation3 + $0x28] sm:$0xff]
    %v2853 = vld [vmem:[#allocation3 + $0x30] sm:$0xff]
    %v2854 = vld [vmem:[#allocation3 + $0x38] sm:$0xff]
    %v2855 = vlaneseq
    %v2856 = vshrl.u32 %v2855, 7
    %v2857 = vsub.s32 0, %v2856
    %v2858 = vrot.slane %v2844, %v2857
    %2859 = vmatprep.subr.bf16.mxu0 0
    %2860 = vmatpush1.bf16.msra.mxu0 %v2847
    %2861 = vmatprep.subr.bf16.mxu0 0
    %2862 = vmatpush1.bf16.msra.mxu0 %v2848
    %2863 = vmatprep.subr.bf16.mxu0 0
    %2864 = vmatpush1.bf16.msra.mxu0 %v2849
    %2865 = vmatprep.subr.bf16.mxu0 0
    %2866 = vmatpush1.bf16.msra.mxu0 %v2850
    %2867 = vmatprep.subr.bf16.mxu0 0
    %2868 = vmatpush1.bf16.msra.mxu0 %v2851
    %2869 = vmatprep.subr.bf16.mxu0 0
    %2870 = vmatpush1.bf16.msra.mxu0 %v2852
    %2871 = vmatprep.subr.bf16.mxu0 0
    %2872 = vmatpush1.bf16.msra.mxu0 %v2853
    %2873 = vmatprep.subr.bf16.mxu0 0
    %2874 = vmatpush1.bf16.msra.mxu0 %v2854
    %2875 = vmatprep.subr.bf16.mxu0 0
    %2876 = vmatpush1.bf16.msra.mxu0 0
    %2877 = vmatprep.subr.bf16.mxu0 0
    %2878 = vmatpush1.bf16.msra.mxu0 0
    %2879 = vmatprep.subr.bf16.mxu0 0
    %2880 = vmatpush1.bf16.msra.mxu0 0
    %2881 = vmatprep.subr.bf16.mxu0 0
    %2882 = vmatpush1.bf16.msra.mxu0 0
    %2883 = vmatprep.subr.bf16.mxu0 0
    %2884 = vmatpush1.bf16.msra.mxu0 0
    %2885 = vmatprep.subr.bf16.mxu0 0
    %2886 = vmatpush1.bf16.msra.mxu0 0
    %2887 = vmatprep.subr.bf16.mxu0 0
    %2888 = vmatpush1.bf16.msra.mxu0 0
    %2889 = vmatprep.subr.bf16.mxu0 0
    %2890 = vmatpush1.bf16.msra.mxu0 0
    %2891 = vmatprep.mubr.bf16.mxu0 0
    %2892 = vmatmul.mubr.bf16.gmra.mrb[0].mxu0 %v2839
    %v2893 = vpop.f32.mrb[0].mxu0
    %v2894 = vadd.f32 %v2858, %v2893
    %v2895 = vpop.f32.mrb[0].mxu0
    %v2896 = vpop.f32.mrb[0].mxu0
    %v2897 = vpop.f32.mrb[0].mxu0
    %2898 = vdwg.mxu0
    %v2899 = vmax.f32 %v2894, 0.0
    %v2900 = vpack.c.bf16 %v2899, %v2899
    %v2901 = vld [vmem:[#allocation3 + $0x40] sm:$0xff]
    %v2902 = vld [vmem:[#allocation3 + $0x48] sm:$0xff]
    %v2903 = vld [vmem:[#allocation3 + $0x50] sm:$0xff]
    %v2904 = vld [vmem:[#allocation3 + $0x58] sm:$0xff]
    %v2905 = vld [vmem:[#allocation3 + $0x60] sm:$0xff]
    %v2906 = vld [vmem:[#allocation3 + $0x68] sm:$0xff]
    %v2907 = vld [vmem:[#allocation3 + $0x70] sm:$0xff]
    %v2908 = vld [vmem:[#allocation3 + $0x78] sm:$0xff]
    %v2909 = vlaneseq
    %v2910 = vshrl.u32 %v2909, 7
    %v2911 = vsub.s32 0, %v2910
    %v2912 = vrot.slane %v2845, %v2911
    %2913 = vmatprep.subr.bf16.mxu0 0
    %2914 = vmatpush1.bf16.msra.mxu0 %v2901
    %2915 = vmatprep.subr.bf16.mxu0 0
    %2916 = vmatpush1.bf16.msra.mxu0 %v2902
    %2917 = vmatprep.subr.bf16.mxu0 0
    %2918 = vmatpush1.bf16.msra.mxu0 %v2903
    %2919 = vmatprep.subr.bf16.mxu0 0
    %2920 = vmatpush1.bf16.msra.mxu0 %v2904
    %2921 = vmatprep.subr.bf16.mxu0 0
    %2922 = vmatpush1.bf16.msra.mxu0 %v2905
    %2923 = vmatprep.subr.bf16.mxu0 0
    %2924 = vmatpush1.bf16.msra.mxu0 %v2906
    %2925 = vmatprep.subr.bf16.mxu0 0
    %2926 = vmatpush1.bf16.msra.mxu0 %v2907
    %2927 = vmatprep.subr.bf16.mxu0 0
    %2928 = vmatpush1.bf16.msra.mxu0 %v2908
    %2929 = vmatprep.subr.bf16.mxu0 0
    %2930 = vmatpush1.bf16.msra.mxu0 0
    %2931 = vmatprep.subr.bf16.mxu0 0
    %2932 = vmatpush1.bf16.msra.mxu0 0
    %2933 = vmatprep.subr.bf16.mxu0 0
    %2934 = vmatpush1.bf16.msra.mxu0 0
    %2935 = vmatprep.subr.bf16.mxu0 0
    %2936 = vmatpush1.bf16.msra.mxu0 0
    %2937 = vmatprep.subr.bf16.mxu0 0
    %2938 = vmatpush1.bf16.msra.mxu0 0
    %2939 = vmatprep.subr.bf16.mxu0 0
    %2940 = vmatpush1.bf16.msra.mxu0 0
    %2941 = vmatprep.subr.bf16.mxu0 0
    %2942 = vmatpush1.bf16.msra.mxu0 0
    %2943 = vmatprep.subr.bf16.mxu0 0
    %2944 = vmatpush1.bf16.msra.mxu0 0
    %2945 = vmatprep.mubr.bf16.mxu0 0
    %2946 = vmatmul.mubr.bf16.gmra.mrb[0].mxu0 %v2900
    %v2947 = vpop.f32.mrb[0].mxu0
    %v2948 = vadd.f32 %v2912, %v2947
    %v2949 = vpop.f32.mrb[0].mxu0
    %v2950 = vpop.f32.mrb[0].mxu0
    %v2951 = vpop.f32.mrb[0].mxu0
    %2952 = vdwg.mxu0
    %v2953 = vmax.f32 %v2948, 0.0
    %v2954 = vpack.c.bf16 %v2953, %v2953
    %v2955 = vld [vmem:[#allocation3 + $0x80] sm:$0xff]
    %v2956 = vld [vmem:[#allocation3 + $0x88] sm:$0xff]
    %v2957 = vld [vmem:[#allocation3 + $0x90] sm:$0xff]
    %v2958 = vld [vmem:[#allocation3 + $0x98] sm:$0xff]
    %v2959 = vld [vmem:[#allocation3 + $0xa0] sm:$0xff]
    %v2960 = vld [vmem:[#allocation3 + $0xa8] sm:$0xff]
    %v2961 = vld [vmem:[#allocation3 + $0xb0] sm:$0xff]
    %v2962 = vld [vmem:[#allocation3 + $0xb8] sm:$0xff]
    %v2963 = vlaneseq
    %v2964 = vshrl.u32 %v2963, 7
    %v2965 = vsub.s32 0, %v2964
    %v2966 = vrot.slane %v2846, %v2965
    %2967 = vmatprep.subr.bf16.mxu0 0
    %2968 = vmatpush1.bf16.msra.mxu0 %v2955
    %2969 = vmatprep.subr.bf16.mxu0 0
    %2970 = vmatpush1.bf16.msra.mxu0 %v2956
    %2971 = vmatprep.subr.bf16.mxu0 0
    %2972 = vmatpush1.bf16.msra.mxu0 %v2957
    %2973 = vmatprep.subr.bf16.mxu0 0
    %2974 = vmatpush1.bf16.msra.mxu0 %v2958
    %2975 = vmatprep.subr.bf16.mxu0 0
    %2976 = vmatpush1.bf16.msra.mxu0 %v2959
    %2977 = vmatprep.subr.bf16.mxu0 0
    %2978 = vmatpush1.bf16.msra.mxu0 %v2960
    %2979 = vmatprep.subr.bf16.mxu0 0
    %2980 = vmatpush1.bf16.msra.mxu0 %v2961
    %2981 = vmatprep.subr.bf16.mxu0 0
    %2982 = vmatpush1.bf16.msra.mxu0 %v2962
    %2983 = vmatprep.subr.bf16.mxu0 0
    %2984 = vmatpush1.bf16.msra.mxu0 0
    %2985 = vmatprep.subr.bf16.mxu0 0
    %2986 = vmatpush1.bf16.msra.mxu0 0
    %2987 = vmatprep.subr.bf16.mxu0 0
    %2988 = vmatpush1.bf16.msra.mxu0 0
    %2989 = vmatprep.subr.bf16.mxu0 0
    %2990 = vmatpush1.bf16.msra.mxu0 0
    %2991 = vmatprep.subr.bf16.mxu0 0
    %2992 = vmatpush1.bf16.msra.mxu0 0
    %2993 = vmatprep.subr.bf16.mxu0 0
    %2994 = vmatpush1.bf16.msra.mxu0 0
    %2995 = vmatprep.subr.bf16.mxu0 0
    %2996 = vmatpush1.bf16.msra.mxu0 0
    %2997 = vmatprep.subr.bf16.mxu0 0
    %2998 = vmatpush1.bf16.msra.mxu0 0
    %2999 = vmatprep.mubr.bf16.mxu0 0
    %3000 = vmatmul.mubr.bf16.gmra.mrb[0].mxu0 %v2954
    %v3001 = vpop.f32.mrb[0].mxu0
    %v3002 = vadd.f32 %v2966, %v3001
    %v3003 = vpop.f32.mrb[0].mxu0
    %v3004 = vpop.f32.mrb[0].mxu0
    %v3005 = vpop.f32.mrb[0].mxu0
    %3006 = vdwg.mxu0
    %3007 = vst [vmem:[#allocation5] sm:$0x3] %v3002
    // Predicated region
    $region48: #{tpu_custom_call.1} parent=1 // pred_check
      _
    $region49: #{tpu_custom_call.1} parent=1 // pred_check_branch
      %3009 = sbr.rel (0) target = $region51
    $region50: #{tpu_custom_call.1} parent=1 // pred_region
      %s3011 = ssub.s32 32, 32
      %3012 = vsyncadd [#allocation6], %s3011
      %s3014 = sshll.u32 [#allocation5], 4
      %s3015 = int_to_ptr.vmem [resolvable:$true] %s3014
      %3017 = dma.vmem_to_hbm [thread:$0]  %s3015, 32, %s5, [#allocation6]
    $region51: #{tpu_custom_call.1} parent=1 // pred_fallthru
      _
    // Predicated region
    $region52: #{tpu_custom_call.1} parent=1 // pred_check
      _
    $region53: #{tpu_custom_call.1} parent=1 // pred_check_branch
      %3019 = sbr.rel (0) target = $region55
    $region54: #{tpu_custom_call.1} parent=1 // pred_region
      %3020 = dma.done [#allocation6], 32
    $region55: #{tpu_custom_call.1} parent=1 // pred_fallthru
      _
    %3021 = vsyncpa [#allocation6], 1
  %3022 = vsyncmov [#allocation4]
  %s3023 = vpop.sfrf %3022
  %p3024 = scmp.eq.s32.totalorder %s3023, 0
  %p3025 = pneg %p3024
  %3027 = shalt.err (%p3025)
  %s3028 = scalar_lea.sflag [#allocation4], 1
  %3029 = vsyncmov %s3028
  %s3030 = vpop.sfrf %3029
  %p3031 = scmp.eq.s32.totalorder %s3030, 0
  %p3032 = pneg %p3031
  %3034 = shalt.err (%p3032)

</llo_original>
